<compile_context>
chip_gen: v7x
topology: tpu7x:2x2x1
jax: 0.10.0
libtpu: 0.0.40
codegen_flags: <defaults>
</compile_context>

<pallas_src>
import functools

import jax
import jax.numpy as jnp
from jax.experimental import pallas as pl
from jax.experimental.pallas import tpu as pltpu


# ----------------------------------------------------------------------------
# Kernel
# ----------------------------------------------------------------------------
def lstm_char_kernel(tok_ref, embf_ref, embb_ref, wih_ref, b_ref, whh_ref,
                     wout_ref, bout_ref, out_ref, xcat_ref, gin_ref,
                     *, B, Bp, Hp, L):
    """Single invocation:
       fused embedding gather -> one-shot input projection -> unrolled bidirectional
       LSTM recurrence -> Linear -> Softmax.
       Gate column layout everywhere: [i1 i2 f1 f2 g1 g2 o1 o2], each block Hp wide."""
    G = 2 * Hp  # per-gate slice width = 128 lanes (one vreg)

    # ---- Fused embedding gather (replaces wrapper gather/transpose/reverse/concat) ----
    # Row (t, b) of xcat = [emb[tok[b, t]] | emb[tok[b, L-1-t]]]; padded batch rows stay 0.
    xcat_ref[...] = jnp.zeros_like(xcat_ref)
    for t in range(L):
        for b in range(B):
            tf = tok_ref[b, t]              # forward-direction token (scalar, SMEM)
            tb = tok_ref[b, L - 1 - t]      # backward direction is time-reversed
            r = t * Bp + b
            # embf/embb rows are pre-shifted into the left/right column half, so this is
            # a single full 128-lane row store (no lane-offset masked store).
            xcat_ref[r:r + 1, :] = embf_ref[tf] + embb_ref[tb]

    # ---- One-shot input projection: all timesteps, both directions ---------------------
    # (L*Bp, 2E) @ (2E, 8Hp) + bias. Kept in a VMEM scratch so the unrolled loop only
    # loads one aligned (Bp, 8Hp) band per step (no big live value across the loop).
    gin_ref[...] = (jnp.dot(xcat_ref[...], wih_ref[...],
                            preferred_element_type=jnp.float32) + b_ref[...])

    # ---- Unrolled recurrence (L static & small) ----------------------------------------
    h = jnp.zeros((Bp, 2 * Hp), jnp.float32)     # [h1 | h2], padded lanes provably stay 0
    c = jnp.zeros((Bp, 2 * Hp), jnp.float32)     # [c1 | c2]
    for t in range(L):
        gi = gin_ref[t * Bp:(t + 1) * Bp, :]     # sublane-aligned (Bp, 8Hp) band
        gates = gi + jnp.dot(h, whh_ref[...], preferred_element_type=jnp.float32)
        i = jax.nn.sigmoid(gates[:, 0 * G:1 * G])   # [i1 | i2]  (one vreg)
        f = jax.nn.sigmoid(gates[:, 1 * G:2 * G])   # [f1 | f2]
        g = jnp.tanh(gates[:, 2 * G:3 * G])         # [g1 | g2]
        o = jax.nn.sigmoid(gates[:, 3 * G:4 * G])   # [o1 | o2]
        c = f * c + i * g
        h = o * jnp.tanh(c)

    # ---- h is already concat([h1, h2]) in the padded layout: Linear + Softmax ----------
    logits = (jnp.dot(h, wout_ref[...], preferred_element_type=jnp.float32)
              + bout_ref[...])                                  # (Bp, O)
    m = jnp.max(logits, axis=1, keepdims=True)
    e = jnp.exp(logits - m)
    probs = e / jnp.sum(e, axis=1, keepdims=True)
    out_ref[...] = probs[:B, :].astype(out_ref.dtype)           # drop padded batch rows


# ----------------------------------------------------------------------------
# One-time weight packing (hoisted out of the per-call forward path)
# ----------------------------------------------------------------------------
def _pack_gate_cols(w, d, H, Hp):
    """(rows, 4H) weights of direction d -> (rows, 8*Hp) gate-interleaved, zero-padded.
       Column blocks (width Hp each): [i1 i2 f1 f2 g1 g2 o1 o2]; block index = 2*g + d."""
    rows = w.shape[0]
    out = jnp.zeros((rows, 8 * Hp), jnp.float32)
    for g in range(4):
        blk = 2 * g + d
        out = out.at[:, blk * Hp: blk * Hp + H].set(w[:, g * H:(g + 1) * H])
    return out


def pack_params(params):
    """Pack / pad weights once (at param-load time). Zero padding keeps numerics exact."""
    H = params["whh1"].shape[0]
    E = params["wih1"].shape[0]
    O = params["wout"].shape[1]
    Hp = ((H + 63) // 64) * 64        # per-direction hidden padded: one gate slice = 128 lanes

    # Embedding rows pre-shifted into the left / right half of a (1, 2E) xcat row.
    w_emb = params["w_emb"].astype(jnp.float32)                 # (V, E)
    V = w_emb.shape[0]
    emb_f = jnp.zeros((V, 1, 2 * E), jnp.float32).at[:, 0, :E].set(w_emb)
    emb_b = jnp.zeros((V, 1, 2 * E), jnp.float32).at[:, 0, E:].set(w_emb)

    # Input projection (2E, 8Hp): rows 0:E act on x[t] (dir-1 cols), rows E:2E on x[L-1-t].
    wih_big = jnp.concatenate([_pack_gate_cols(params["wih1"], 0, H, Hp),
                               _pack_gate_cols(params["wih2"], 1, H, Hp)], axis=0)

    # Hidden projection (2Hp, 8Hp): block-diagonal over directions, zero-padded rows/cols.
    whh1_p = jnp.zeros((Hp, 8 * Hp), jnp.float32).at[:H, :].set(
        _pack_gate_cols(params["whh1"], 0, H, Hp))
    whh2_p = jnp.zeros((Hp, 8 * Hp), jnp.float32).at[:H, :].set(
        _pack_gate_cols(params["whh2"], 1, H, Hp))
    whh_big = jnp.concatenate([whh1_p, whh2_p], axis=0)

    # Combined bias (1, 8Hp); padded entries are exactly 0 (=> padded c/h lanes stay 0).
    b_big = (_pack_gate_cols(params["b1"], 0, H, Hp)
             + _pack_gate_cols(params["b2"], 1, H, Hp))

    # Output projection rows re-indexed to the padded [h1 | pad | h2 | pad] state layout.
    wout_big = jnp.zeros((2 * Hp, O), jnp.float32)
    wout_big = wout_big.at[:H, :].set(params["wout"][:H, :])
    wout_big = wout_big.at[Hp:Hp + H, :].set(params["wout"][H:, :])

    return {"emb_f": emb_f, "emb_b": emb_b, "wih": wih_big, "b": b_big,
            "whh": whh_big, "wout": wout_big,
            "bout": params["bout"].astype(jnp.float32),
            "E": E, "H": H, "Hp": Hp, "O": O}


# ----------------------------------------------------------------------------
# Forward wrapper: a single pallas_call, no per-call XLA glue ops
# ----------------------------------------------------------------------------
def lstm_character_forward(x_tokens, mask, packed):
    """Matches LSTMCharacter.forward(x, mask). `mask` is accepted but (as in the PyTorch
    module) never used beyond a transpose, so it is ignored here."""
    del mask
    B, L = x_tokens.shape
    E, Hp, O = packed["E"], packed["Hp"], packed["O"]
    Bp = ((B + 7) // 8) * 8           # pad batch so each per-step band is sublane-aligned

    kernel = functools.partial(lstm_char_kernel, B=B, Bp=Bp, Hp=Hp, L=L)
    vmem = pl.BlockSpec(memory_space=pltpu.MemorySpace.VMEM)
    smem = pl.BlockSpec(memory_space=pltpu.MemorySpace.SMEM)

    return pl.pallas_call(
        kernel,
        out_shape=jax.ShapeDtypeStruct((B, O), jnp.float32),
        in_specs=[smem] + [vmem] * 7,
        out_specs=vmem,
        scratch_shapes=[pltpu.VMEM((L * Bp, 2 * E), jnp.float32),    # xcat gather buffer
                        pltpu.VMEM((L * Bp, 8 * Hp), jnp.float32)],  # all-step gate preacts
    )(x_tokens.astype(jnp.int32), packed["emb_f"], packed["emb_b"],
      packed["wih"], packed["b"], packed["whh"], packed["wout"], packed["bout"])


# ----------------------------------------------------------------------------
# Params + pure-JAX reference (correctness check)
# ----------------------------------------------------------------------------
def init_params(key, input_dim, hidden_dim, output_dim, embed_dim=64):
    ks = jax.random.split(key, 11)
    s = 0.1
    H, E, O = hidden_dim, embed_dim, output_dim
    return {
        "w_emb": s * jax.random.normal(ks[0], (input_dim, E), jnp.float32),
        # LSTMCell weights stored pre-transposed: (in_features, 4H) / (H, 4H);
        # biases combined (b_ih + b_hh) with shape (1, 4H). Gate order (i, f, g, o).
        "wih1": s * jax.random.normal(ks[1], (E, 4 * H), jnp.float32),
        "whh1": s * jax.random.normal(ks[2], (H, 4 * H), jnp.float32),
        "b1": (s * jax.random.normal(ks[3], (4 * H,), jnp.float32)
               + s * jax.random.normal(ks[4], (4 * H,), jnp.float32))[None, :],
        "wih2": s * jax.random.normal(ks[5], (E, 4 * H), jnp.float32),
        "whh2": s * jax.random.normal(ks[6], (H, 4 * H), jnp.float32),
        "b2": (s * jax.random.normal(ks[7], (4 * H,), jnp.float32)
               + s * jax.random.normal(ks[8], (4 * H,), jnp.float32))[None, :],
        "wout": s * jax.random.normal(ks[9], (2 * H, O), jnp.float32),
        "bout": s * jax.random.normal(ks[10], (O,), jnp.float32)[None, :],
    }


def reference_forward(x_tokens, params):
    """Pure-JAX re-implementation of the PyTorch forward (for correctness check)."""
    emb = params["w_emb"][x_tokens].astype(jnp.float32)          # (B, L, E)
    B, L, _ = emb.shape
    H = params["whh1"].shape[0]
    h1 = c1 = h2 = c2 = jnp.zeros((B, H), jnp.float32)

    def cell(x, h, c, wih, whh, b):
        gates = x @ wih + h @ whh + b
        i = jax.nn.sigmoid(gates[:, :H])
        f = jax.nn.sigmoid(gates[:, H:2 * H])
        g = jnp.tanh(gates[:, 2 * H:3 * H])
        o = jax.nn.sigmoid(gates[:, 3 * H:])
        c = f * c + i * g
        return o * jnp.tanh(c), c

    for i in range(L):
        h1, c1 = cell(emb[:, i], h1, c1, params["wih1"], params["whh1"], params["b1"])
        h2, c2 = cell(emb[:, L - 1 - i], h2, c2,
                      params["wih2"], params["whh2"], params["b2"])
    hcat = jnp.concatenate([h1, h2], axis=1)
    logits = hcat @ params["wout"] + params["bout"]
    return jax.nn.softmax(logits, axis=1)


if __name__ == "__main__":
    input_dim = 50     # vocabulary size for the character embedding
    hidden_dim = 32
    output_dim = 8
    batch = 2
    length = 8

    key = jax.random.PRNGKey(0)
    k_param, k_tok = jax.random.split(key)
    params = init_params(k_param, input_dim, hidden_dim, output_dim)
    packed = pack_params(params)        # hoisted: packed once, reused for every forward

    x = jax.random.randint(k_tok, (batch, length), 0, input_dim, dtype=jnp.int32)
    mask = jnp.ones((batch, length), jnp.float32)   # unused by forward (as in PyTorch)

    out = lstm_character_forward(x, mask, packed)
    out = jax.block_until_ready(out)

    ref = reference_forward(x, params)
    assert out.shape == (batch, output_dim)
    assert jnp.allclose(out, ref, rtol=1e-4, atol=1e-5), "mismatch vs pure-JAX reference"

    print("KERNEL_OK")
</pallas_src>

<mosaic_0001>
module attributes {stable_mosaic.version = 11 : i64} {
  func.func @lstm_char_kernel(%arg0: memref<2x8xi32, #tpu.memory_space<smem>>, %arg1: memref<50x1x128xf32, #tpu.memory_space<vmem>>, %arg2: memref<50x1x128xf32, #tpu.memory_space<vmem>>, %arg3: memref<128x512xf32, #tpu.memory_space<vmem>>, %arg4: memref<1x512xf32, #tpu.memory_space<vmem>>, %arg5: memref<128x512xf32, #tpu.memory_space<vmem>>, %arg6: memref<128x8xf32, #tpu.memory_space<vmem>>, %arg7: memref<1x8xf32, #tpu.memory_space<vmem>>, %arg8: memref<2x8xf32, #tpu.memory_space<vmem>>, %arg9: memref<64x128xf32, #tpu.memory_space<vmem>>, %arg10: memref<64x512xf32, #tpu.memory_space<vmem>>) attributes {dimension_semantics = [], scalar_prefetch = 0 : i64, scratch_operands = 2 : i64, tpu.core_type = #tpu.core_type<tc>} {
    %cst = arith.constant 0.000000e+00 : f32
    %0 = vector.broadcast %cst : f32 to vector<64x128xf32>
    %c0 = arith.constant 0 : index
    %c0_0 = arith.constant 0 : index
    %1 = vector.load %arg9[%c0, %c0_0] : memref<64x128xf32, #tpu.memory_space<vmem>>, vector<64x128xf32>
    tpu.vector_store %arg9[%c0, %c0_0], %0 {strides = array<i32>} : memref<64x128xf32, #tpu.memory_space<vmem>>, vector<64x128xf32>,
    %c0_1 = arith.constant 0 : index
    %c0_2 = arith.constant 0 : index
    %2 = memref.load %arg0[%c0_1, %c0_2] : memref<2x8xi32, #tpu.memory_space<smem>>
    %c0_3 = arith.constant 0 : index
    %c7 = arith.constant 7 : index
    %3 = memref.load %arg0[%c0_3, %c7] : memref<2x8xi32, #tpu.memory_space<smem>>
    %4 = arith.index_cast %2 : i32 to index
    %c0_4 = arith.constant 0 : index
    %c0_5 = arith.constant 0 : index
    %5 = vector.load %arg1[%4, %c0_4, %c0_5] : memref<50x1x128xf32, #tpu.memory_space<vmem>>, vector<1x1x128xf32>
    %6 = vector.shape_cast %5 : vector<1x1x128xf32> to vector<1x128xf32>
    %7 = arith.index_cast %3 : i32 to index
    %c0_6 = arith.constant 0 : index
    %c0_7 = arith.constant 0 : index
    %8 = vector.load %arg2[%7, %c0_6, %c0_7] : memref<50x1x128xf32, #tpu.memory_space<vmem>>, vector<1x1x128xf32>
    %9 = vector.shape_cast %8 : vector<1x1x128xf32> to vector<1x128xf32>
    %10 = arith.addf %6, %9 : vector<1x128xf32>
    %c0_8 = arith.constant 0 : index
    %c0_9 = arith.constant 0 : index
    %11 = vector.load %arg9[%c0_8, %c0_9] : memref<64x128xf32, #tpu.memory_space<vmem>>, vector<1x128xf32>
    tpu.vector_store %arg9[%c0_8, %c0_9], %10 {strides = array<i32>} : memref<64x128xf32, #tpu.memory_space<vmem>>, vector<1x128xf32>,
    %c1 = arith.constant 1 : index
    %c0_10 = arith.constant 0 : index
    %12 = memref.load %arg0[%c1, %c0_10] : memref<2x8xi32, #tpu.memory_space<smem>>
    %c1_11 = arith.constant 1 : index
    %c7_12 = arith.constant 7 : index
    %13 = memref.load %arg0[%c1_11, %c7_12] : memref<2x8xi32, #tpu.memory_space<smem>>
    %14 = arith.index_cast %12 : i32 to index
    %c0_13 = arith.constant 0 : index
    %c0_14 = arith.constant 0 : index
    %15 = vector.load %arg1[%14, %c0_13, %c0_14] : memref<50x1x128xf32, #tpu.memory_space<vmem>>, vector<1x1x128xf32>
    %16 = vector.shape_cast %15 : vector<1x1x128xf32> to vector<1x128xf32>
    %17 = arith.index_cast %13 : i32 to index
    %c0_15 = arith.constant 0 : index
    %c0_16 = arith.constant 0 : index
    %18 = vector.load %arg2[%17, %c0_15, %c0_16] : memref<50x1x128xf32, #tpu.memory_space<vmem>>, vector<1x1x128xf32>
    %19 = vector.shape_cast %18 : vector<1x1x128xf32> to vector<1x128xf32>
    %20 = arith.addf %16, %19 : vector<1x128xf32>
    %c1_17 = arith.constant 1 : index
    %c0_18 = arith.constant 0 : index
    %21 = vector.load %arg9[%c1_17, %c0_18] : memref<64x128xf32, #tpu.memory_space<vmem>>, vector<1x128xf32>
    tpu.vector_store %arg9[%c1_17, %c0_18], %20 {strides = array<i32>} : memref<64x128xf32, #tpu.memory_space<vmem>>, vector<1x128xf32>,
    %c0_19 = arith.constant 0 : index
    %c1_20 = arith.constant 1 : index
    %22 = memref.load %arg0[%c0_19, %c1_20] : memref<2x8xi32, #tpu.memory_space<smem>>
    %c0_21 = arith.constant 0 : index
    %c6 = arith.constant 6 : index
    %23 = memref.load %arg0[%c0_21, %c6] : memref<2x8xi32, #tpu.memory_space<smem>>
    %24 = arith.index_cast %22 : i32 to index
    %c0_22 = arith.constant 0 : index
    %c0_23 = arith.constant 0 : index
    %25 = vector.load %arg1[%24, %c0_22, %c0_23] : memref<50x1x128xf32, #tpu.memory_space<vmem>>, vector<1x1x128xf32>
    %26 = vector.shape_cast %25 : vector<1x1x128xf32> to vector<1x128xf32>
    %27 = arith.index_cast %23 : i32 to index
    %c0_24 = arith.constant 0 : index
    %c0_25 = arith.constant 0 : index
    %28 = vector.load %arg2[%27, %c0_24, %c0_25] : memref<50x1x128xf32, #tpu.memory_space<vmem>>, vector<1x1x128xf32>
    %29 = vector.shape_cast %28 : vector<1x1x128xf32> to vector<1x128xf32>
    %30 = arith.addf %26, %29 : vector<1x128xf32>
    %c8 = arith.constant 8 : index
    %c0_26 = arith.constant 0 : index
    %31 = vector.load %arg9[%c8, %c0_26] : memref<64x128xf32, #tpu.memory_space<vmem>>, vector<1x128xf32>
    tpu.vector_store %arg9[%c8, %c0_26], %30 {strides = array<i32>} : memref<64x128xf32, #tpu.memory_space<vmem>>, vector<1x128xf32>,
    %c1_27 = arith.constant 1 : index
    %c1_28 = arith.constant 1 : index
    %32 = memref.load %arg0[%c1_27, %c1_28] : memref<2x8xi32, #tpu.memory_space<smem>>
    %c1_29 = arith.constant 1 : index
    %c6_30 = arith.constant 6 : index
    %33 = memref.load %arg0[%c1_29, %c6_30] : memref<2x8xi32, #tpu.memory_space<smem>>
    %34 = arith.index_cast %32 : i32 to index
    %c0_31 = arith.constant 0 : index
    %c0_32 = arith.constant 0 : index
    %35 = vector.load %arg1[%34, %c0_31, %c0_32] : memref<50x1x128xf32, #tpu.memory_space<vmem>>, vector<1x1x128xf32>
    %36 = vector.shape_cast %35 : vector<1x1x128xf32> to vector<1x128xf32>
    %37 = arith.index_cast %33 : i32 to index
    %c0_33 = arith.constant 0 : index
    %c0_34 = arith.constant 0 : index
    %38 = vector.load %arg2[%37, %c0_33, %c0_34] : memref<50x1x128xf32, #tpu.memory_space<vmem>>, vector<1x1x128xf32>
    %39 = vector.shape_cast %38 : vector<1x1x128xf32> to vector<1x128xf32>
    %40 = arith.addf %36, %39 : vector<1x128xf32>
    %c9 = arith.constant 9 : index
    %c0_35 = arith.constant 0 : index
    %41 = vector.load %arg9[%c9, %c0_35] : memref<64x128xf32, #tpu.memory_space<vmem>>, vector<1x128xf32>
    tpu.vector_store %arg9[%c9, %c0_35], %40 {strides = array<i32>} : memref<64x128xf32, #tpu.memory_space<vmem>>, vector<1x128xf32>,
    %c0_36 = arith.constant 0 : index
    %c2 = arith.constant 2 : index
    %42 = memref.load %arg0[%c0_36, %c2] : memref<2x8xi32, #tpu.memory_space<smem>>
    %c0_37 = arith.constant 0 : index
    %c5 = arith.constant 5 : index
    %43 = memref.load %arg0[%c0_37, %c5] : memref<2x8xi32, #tpu.memory_space<smem>>
    %44 = arith.index_cast %42 : i32 to index
    %c0_38 = arith.constant 0 : index
    %c0_39 = arith.constant 0 : index
    %45 = vector.load %arg1[%44, %c0_38, %c0_39] : memref<50x1x128xf32, #tpu.memory_space<vmem>>, vector<1x1x128xf32>
    %46 = vector.shape_cast %45 : vector<1x1x128xf32> to vector<1x128xf32>
    %47 = arith.index_cast %43 : i32 to index
    %c0_40 = arith.constant 0 : index
    %c0_41 = arith.constant 0 : index
    %48 = vector.load %arg2[%47, %c0_40, %c0_41] : memref<50x1x128xf32, #tpu.memory_space<vmem>>, vector<1x1x128xf32>
    %49 = vector.shape_cast %48 : vector<1x1x128xf32> to vector<1x128xf32>
    %50 = arith.addf %46, %49 : vector<1x128xf32>
    %c16 = arith.constant 16 : index
    %c0_42 = arith.constant 0 : index
    %51 = vector.load %arg9[%c16, %c0_42] : memref<64x128xf32, #tpu.memory_space<vmem>>, vector<1x128xf32>
    tpu.vector_store %arg9[%c16, %c0_42], %50 {strides = array<i32>} : memref<64x128xf32, #tpu.memory_space<vmem>>, vector<1x128xf32>,
    %c1_43 = arith.constant 1 : index
    %c2_44 = arith.constant 2 : index
    %52 = memref.load %arg0[%c1_43, %c2_44] : memref<2x8xi32, #tpu.memory_space<smem>>
    %c1_45 = arith.constant 1 : index
    %c5_46 = arith.constant 5 : index
    %53 = memref.load %arg0[%c1_45, %c5_46] : memref<2x8xi32, #tpu.memory_space<smem>>
    %54 = arith.index_cast %52 : i32 to index
    %c0_47 = arith.constant 0 : index
    %c0_48 = arith.constant 0 : index
    %55 = vector.load %arg1[%54, %c0_47, %c0_48] : memref<50x1x128xf32, #tpu.memory_space<vmem>>, vector<1x1x128xf32>
    %56 = vector.shape_cast %55 : vector<1x1x128xf32> to vector<1x128xf32>
    %57 = arith.index_cast %53 : i32 to index
    %c0_49 = arith.constant 0 : index
    %c0_50 = arith.constant 0 : index
    %58 = vector.load %arg2[%57, %c0_49, %c0_50] : memref<50x1x128xf32, #tpu.memory_space<vmem>>, vector<1x1x128xf32>
    %59 = vector.shape_cast %58 : vector<1x1x128xf32> to vector<1x128xf32>
    %60 = arith.addf %56, %59 : vector<1x128xf32>
    %c17 = arith.constant 17 : index
    %c0_51 = arith.constant 0 : index
    %61 = vector.load %arg9[%c17, %c0_51] : memref<64x128xf32, #tpu.memory_space<vmem>>, vector<1x128xf32>
    tpu.vector_store %arg9[%c17, %c0_51], %60 {strides = array<i32>} : memref<64x128xf32, #tpu.memory_space<vmem>>, vector<1x128xf32>,
    %c0_52 = arith.constant 0 : index
    %c3 = arith.constant 3 : index
    %62 = memref.load %arg0[%c0_52, %c3] : memref<2x8xi32, #tpu.memory_space<smem>>
    %c0_53 = arith.constant 0 : index
    %c4 = arith.constant 4 : index
    %63 = memref.load %arg0[%c0_53, %c4] : memref<2x8xi32, #tpu.memory_space<smem>>
    %64 = arith.index_cast %62 : i32 to index
    %c0_54 = arith.constant 0 : index
    %c0_55 = arith.constant 0 : index
    %65 = vector.load %arg1[%64, %c0_54, %c0_55] : memref<50x1x128xf32, #tpu.memory_space<vmem>>, vector<1x1x128xf32>
    %66 = vector.shape_cast %65 : vector<1x1x128xf32> to vector<1x128xf32>
    %67 = arith.index_cast %63 : i32 to index
    %c0_56 = arith.constant 0 : index
    %c0_57 = arith.constant 0 : index
    %68 = vector.load %arg2[%67, %c0_56, %c0_57] : memref<50x1x128xf32, #tpu.memory_space<vmem>>, vector<1x1x128xf32>
    %69 = vector.shape_cast %68 : vector<1x1x128xf32> to vector<1x128xf32>
    %70 = arith.addf %66, %69 : vector<1x128xf32>
    %c24 = arith.constant 24 : index
    %c0_58 = arith.constant 0 : index
    %71 = vector.load %arg9[%c24, %c0_58] : memref<64x128xf32, #tpu.memory_space<vmem>>, vector<1x128xf32>
    tpu.vector_store %arg9[%c24, %c0_58], %70 {strides = array<i32>} : memref<64x128xf32, #tpu.memory_space<vmem>>, vector<1x128xf32>,
    %c1_59 = arith.constant 1 : index
    %c3_60 = arith.constant 3 : index
    %72 = memref.load %arg0[%c1_59, %c3_60] : memref<2x8xi32, #tpu.memory_space<smem>>
    %c1_61 = arith.constant 1 : index
    %c4_62 = arith.constant 4 : index
    %73 = memref.load %arg0[%c1_61, %c4_62] : memref<2x8xi32, #tpu.memory_space<smem>>
    %74 = arith.index_cast %72 : i32 to index
    %c0_63 = arith.constant 0 : index
    %c0_64 = arith.constant 0 : index
    %75 = vector.load %arg1[%74, %c0_63, %c0_64] : memref<50x1x128xf32, #tpu.memory_space<vmem>>, vector<1x1x128xf32>
    %76 = vector.shape_cast %75 : vector<1x1x128xf32> to vector<1x128xf32>
    %77 = arith.index_cast %73 : i32 to index
    %c0_65 = arith.constant 0 : index
    %c0_66 = arith.constant 0 : index
    %78 = vector.load %arg2[%77, %c0_65, %c0_66] : memref<50x1x128xf32, #tpu.memory_space<vmem>>, vector<1x1x128xf32>
    %79 = vector.shape_cast %78 : vector<1x1x128xf32> to vector<1x128xf32>
    %80 = arith.addf %76, %79 : vector<1x128xf32>
    %c25 = arith.constant 25 : index
    %c0_67 = arith.constant 0 : index
    %81 = vector.load %arg9[%c25, %c0_67] : memref<64x128xf32, #tpu.memory_space<vmem>>, vector<1x128xf32>
    tpu.vector_store %arg9[%c25, %c0_67], %80 {strides = array<i32>} : memref<64x128xf32, #tpu.memory_space<vmem>>, vector<1x128xf32>,
    %c0_68 = arith.constant 0 : index
    %c4_69 = arith.constant 4 : index
    %82 = memref.load %arg0[%c0_68, %c4_69] : memref<2x8xi32, #tpu.memory_space<smem>>
    %c0_70 = arith.constant 0 : index
    %c3_71 = arith.constant 3 : index
    %83 = memref.load %arg0[%c0_70, %c3_71] : memref<2x8xi32, #tpu.memory_space<smem>>
    %84 = arith.index_cast %82 : i32 to index
    %c0_72 = arith.constant 0 : index
    %c0_73 = arith.constant 0 : index
    %85 = vector.load %arg1[%84, %c0_72, %c0_73] : memref<50x1x128xf32, #tpu.memory_space<vmem>>, vector<1x1x128xf32>
    %86 = vector.shape_cast %85 : vector<1x1x128xf32> to vector<1x128xf32>
    %87 = arith.index_cast %83 : i32 to index
    %c0_74 = arith.constant 0 : index
    %c0_75 = arith.constant 0 : index
    %88 = vector.load %arg2[%87, %c0_74, %c0_75] : memref<50x1x128xf32, #tpu.memory_space<vmem>>, vector<1x1x128xf32>
    %89 = vector.shape_cast %88 : vector<1x1x128xf32> to vector<1x128xf32>
    %90 = arith.addf %86, %89 : vector<1x128xf32>
    %c32 = arith.constant 32 : index
    %c0_76 = arith.constant 0 : index
    %91 = vector.load %arg9[%c32, %c0_76] : memref<64x128xf32, #tpu.memory_space<vmem>>, vector<1x128xf32>
    tpu.vector_store %arg9[%c32, %c0_76], %90 {strides = array<i32>} : memref<64x128xf32, #tpu.memory_space<vmem>>, vector<1x128xf32>,
    %c1_77 = arith.constant 1 : index
    %c4_78 = arith.constant 4 : index
    %92 = memref.load %arg0[%c1_77, %c4_78] : memref<2x8xi32, #tpu.memory_space<smem>>
    %c1_79 = arith.constant 1 : index
    %c3_80 = arith.constant 3 : index
    %93 = memref.load %arg0[%c1_79, %c3_80] : memref<2x8xi32, #tpu.memory_space<smem>>
    %94 = arith.index_cast %92 : i32 to index
    %c0_81 = arith.constant 0 : index
    %c0_82 = arith.constant 0 : index
    %95 = vector.load %arg1[%94, %c0_81, %c0_82] : memref<50x1x128xf32, #tpu.memory_space<vmem>>, vector<1x1x128xf32>
    %96 = vector.shape_cast %95 : vector<1x1x128xf32> to vector<1x128xf32>
    %97 = arith.index_cast %93 : i32 to index
    %c0_83 = arith.constant 0 : index
    %c0_84 = arith.constant 0 : index
    %98 = vector.load %arg2[%97, %c0_83, %c0_84] : memref<50x1x128xf32, #tpu.memory_space<vmem>>, vector<1x1x128xf32>
    %99 = vector.shape_cast %98 : vector<1x1x128xf32> to vector<1x128xf32>
    %100 = arith.addf %96, %99 : vector<1x128xf32>
    %c33 = arith.constant 33 : index
    %c0_85 = arith.constant 0 : index
    %101 = vector.load %arg9[%c33, %c0_85] : memref<64x128xf32, #tpu.memory_space<vmem>>, vector<1x128xf32>
    tpu.vector_store %arg9[%c33, %c0_85], %100 {strides = array<i32>} : memref<64x128xf32, #tpu.memory_space<vmem>>, vector<1x128xf32>,
    %c0_86 = arith.constant 0 : index
    %c5_87 = arith.constant 5 : index
    %102 = memref.load %arg0[%c0_86, %c5_87] : memref<2x8xi32, #tpu.memory_space<smem>>
    %c0_88 = arith.constant 0 : index
    %c2_89 = arith.constant 2 : index
    %103 = memref.load %arg0[%c0_88, %c2_89] : memref<2x8xi32, #tpu.memory_space<smem>>
    %104 = arith.index_cast %102 : i32 to index
    %c0_90 = arith.constant 0 : index
    %c0_91 = arith.constant 0 : index
    %105 = vector.load %arg1[%104, %c0_90, %c0_91] : memref<50x1x128xf32, #tpu.memory_space<vmem>>, vector<1x1x128xf32>
    %106 = vector.shape_cast %105 : vector<1x1x128xf32> to vector<1x128xf32>
    %107 = arith.index_cast %103 : i32 to index
    %c0_92 = arith.constant 0 : index
    %c0_93 = arith.constant 0 : index
    %108 = vector.load %arg2[%107, %c0_92, %c0_93] : memref<50x1x128xf32, #tpu.memory_space<vmem>>, vector<1x1x128xf32>
    %109 = vector.shape_cast %108 : vector<1x1x128xf32> to vector<1x128xf32>
    %110 = arith.addf %106, %109 : vector<1x128xf32>
    %c40 = arith.constant 40 : index
    %c0_94 = arith.constant 0 : index
    %111 = vector.load %arg9[%c40, %c0_94] : memref<64x128xf32, #tpu.memory_space<vmem>>, vector<1x128xf32>
    tpu.vector_store %arg9[%c40, %c0_94], %110 {strides = array<i32>} : memref<64x128xf32, #tpu.memory_space<vmem>>, vector<1x128xf32>,
    %c1_95 = arith.constant 1 : index
    %c5_96 = arith.constant 5 : index
    %112 = memref.load %arg0[%c1_95, %c5_96] : memref<2x8xi32, #tpu.memory_space<smem>>
    %c1_97 = arith.constant 1 : index
    %c2_98 = arith.constant 2 : index
    %113 = memref.load %arg0[%c1_97, %c2_98] : memref<2x8xi32, #tpu.memory_space<smem>>
    %114 = arith.index_cast %112 : i32 to index
    %c0_99 = arith.constant 0 : index
    %c0_100 = arith.constant 0 : index
    %115 = vector.load %arg1[%114, %c0_99, %c0_100] : memref<50x1x128xf32, #tpu.memory_space<vmem>>, vector<1x1x128xf32>
    %116 = vector.shape_cast %115 : vector<1x1x128xf32> to vector<1x128xf32>
    %117 = arith.index_cast %113 : i32 to index
    %c0_101 = arith.constant 0 : index
    %c0_102 = arith.constant 0 : index
    %118 = vector.load %arg2[%117, %c0_101, %c0_102] : memref<50x1x128xf32, #tpu.memory_space<vmem>>, vector<1x1x128xf32>
    %119 = vector.shape_cast %118 : vector<1x1x128xf32> to vector<1x128xf32>
    %120 = arith.addf %116, %119 : vector<1x128xf32>
    %c41 = arith.constant 41 : index
    %c0_103 = arith.constant 0 : index
    %121 = vector.load %arg9[%c41, %c0_103] : memref<64x128xf32, #tpu.memory_space<vmem>>, vector<1x128xf32>
    tpu.vector_store %arg9[%c41, %c0_103], %120 {strides = array<i32>} : memref<64x128xf32, #tpu.memory_space<vmem>>, vector<1x128xf32>,
    %c0_104 = arith.constant 0 : index
    %c6_105 = arith.constant 6 : index
    %122 = memref.load %arg0[%c0_104, %c6_105] : memref<2x8xi32, #tpu.memory_space<smem>>
    %c0_106 = arith.constant 0 : index
    %c1_107 = arith.constant 1 : index
    %123 = memref.load %arg0[%c0_106, %c1_107] : memref<2x8xi32, #tpu.memory_space<smem>>
    %124 = arith.index_cast %122 : i32 to index
    %c0_108 = arith.constant 0 : index
    %c0_109 = arith.constant 0 : index
    %125 = vector.load %arg1[%124, %c0_108, %c0_109] : memref<50x1x128xf32, #tpu.memory_space<vmem>>, vector<1x1x128xf32>
    %126 = vector.shape_cast %125 : vector<1x1x128xf32> to vector<1x128xf32>
    %127 = arith.index_cast %123 : i32 to index
    %c0_110 = arith.constant 0 : index
    %c0_111 = arith.constant 0 : index
    %128 = vector.load %arg2[%127, %c0_110, %c0_111] : memref<50x1x128xf32, #tpu.memory_space<vmem>>, vector<1x1x128xf32>
    %129 = vector.shape_cast %128 : vector<1x1x128xf32> to vector<1x128xf32>
    %130 = arith.addf %126, %129 : vector<1x128xf32>
    %c48 = arith.constant 48 : index
    %c0_112 = arith.constant 0 : index
    %131 = vector.load %arg9[%c48, %c0_112] : memref<64x128xf32, #tpu.memory_space<vmem>>, vector<1x128xf32>
    tpu.vector_store %arg9[%c48, %c0_112], %130 {strides = array<i32>} : memref<64x128xf32, #tpu.memory_space<vmem>>, vector<1x128xf32>,
    %c1_113 = arith.constant 1 : index
    %c6_114 = arith.constant 6 : index
    %132 = memref.load %arg0[%c1_113, %c6_114] : memref<2x8xi32, #tpu.memory_space<smem>>
    %c1_115 = arith.constant 1 : index
    %c1_116 = arith.constant 1 : index
    %133 = memref.load %arg0[%c1_115, %c1_116] : memref<2x8xi32, #tpu.memory_space<smem>>
    %134 = arith.index_cast %132 : i32 to index
    %c0_117 = arith.constant 0 : index
    %c0_118 = arith.constant 0 : index
    %135 = vector.load %arg1[%134, %c0_117, %c0_118] : memref<50x1x128xf32, #tpu.memory_space<vmem>>, vector<1x1x128xf32>
    %136 = vector.shape_cast %135 : vector<1x1x128xf32> to vector<1x128xf32>
    %137 = arith.index_cast %133 : i32 to index
    %c0_119 = arith.constant 0 : index
    %c0_120 = arith.constant 0 : index
    %138 = vector.load %arg2[%137, %c0_119, %c0_120] : memref<50x1x128xf32, #tpu.memory_space<vmem>>, vector<1x1x128xf32>
    %139 = vector.shape_cast %138 : vector<1x1x128xf32> to vector<1x128xf32>
    %140 = arith.addf %136, %139 : vector<1x128xf32>
    %c49 = arith.constant 49 : index
    %c0_121 = arith.constant 0 : index
    %141 = vector.load %arg9[%c49, %c0_121] : memref<64x128xf32, #tpu.memory_space<vmem>>, vector<1x128xf32>
    tpu.vector_store %arg9[%c49, %c0_121], %140 {strides = array<i32>} : memref<64x128xf32, #tpu.memory_space<vmem>>, vector<1x128xf32>,
    %c0_122 = arith.constant 0 : index
    %c7_123 = arith.constant 7 : index
    %142 = memref.load %arg0[%c0_122, %c7_123] : memref<2x8xi32, #tpu.memory_space<smem>>
    %c0_124 = arith.constant 0 : index
    %c0_125 = arith.constant 0 : index
    %143 = memref.load %arg0[%c0_124, %c0_125] : memref<2x8xi32, #tpu.memory_space<smem>>
    %144 = arith.index_cast %142 : i32 to index
    %c0_126 = arith.constant 0 : index
    %c0_127 = arith.constant 0 : index
    %145 = vector.load %arg1[%144, %c0_126, %c0_127] : memref<50x1x128xf32, #tpu.memory_space<vmem>>, vector<1x1x128xf32>
    %146 = vector.shape_cast %145 : vector<1x1x128xf32> to vector<1x128xf32>
    %147 = arith.index_cast %143 : i32 to index
    %c0_128 = arith.constant 0 : index
    %c0_129 = arith.constant 0 : index
    %148 = vector.load %arg2[%147, %c0_128, %c0_129] : memref<50x1x128xf32, #tpu.memory_space<vmem>>, vector<1x1x128xf32>
    %149 = vector.shape_cast %148 : vector<1x1x128xf32> to vector<1x128xf32>
    %150 = arith.addf %146, %149 : vector<1x128xf32>
    %c56 = arith.constant 56 : index
    %c0_130 = arith.constant 0 : index
    %151 = vector.load %arg9[%c56, %c0_130] : memref<64x128xf32, #tpu.memory_space<vmem>>, vector<1x128xf32>
    tpu.vector_store %arg9[%c56, %c0_130], %150 {strides = array<i32>} : memref<64x128xf32, #tpu.memory_space<vmem>>, vector<1x128xf32>,
    %c1_131 = arith.constant 1 : index
    %c7_132 = arith.constant 7 : index
    %152 = memref.load %arg0[%c1_131, %c7_132] : memref<2x8xi32, #tpu.memory_space<smem>>
    %c1_133 = arith.constant 1 : index
    %c0_134 = arith.constant 0 : index
    %153 = memref.load %arg0[%c1_133, %c0_134] : memref<2x8xi32, #tpu.memory_space<smem>>
    %154 = arith.index_cast %152 : i32 to index
    %c0_135 = arith.constant 0 : index
    %c0_136 = arith.constant 0 : index
    %155 = vector.load %arg1[%154, %c0_135, %c0_136] : memref<50x1x128xf32, #tpu.memory_space<vmem>>, vector<1x1x128xf32>
    %156 = vector.shape_cast %155 : vector<1x1x128xf32> to vector<1x128xf32>
    %157 = arith.index_cast %153 : i32 to index
    %c0_137 = arith.constant 0 : index
    %c0_138 = arith.constant 0 : index
    %158 = vector.load %arg2[%157, %c0_137, %c0_138] : memref<50x1x128xf32, #tpu.memory_space<vmem>>, vector<1x1x128xf32>
    %159 = vector.shape_cast %158 : vector<1x1x128xf32> to vector<1x128xf32>
    %160 = arith.addf %156, %159 : vector<1x128xf32>
    %c57 = arith.constant 57 : index
    %c0_139 = arith.constant 0 : index
    %161 = vector.load %arg9[%c57, %c0_139] : memref<64x128xf32, #tpu.memory_space<vmem>>, vector<1x128xf32>
    tpu.vector_store %arg9[%c57, %c0_139], %160 {strides = array<i32>} : memref<64x128xf32, #tpu.memory_space<vmem>>, vector<1x128xf32>,
    %c0_140 = arith.constant 0 : index
    %c0_141 = arith.constant 0 : index
    %162 = vector.load %arg9[%c0_140, %c0_141] : memref<64x128xf32, #tpu.memory_space<vmem>>, vector<64x128xf32>
    %c0_142 = arith.constant 0 : index
    %c0_143 = arith.constant 0 : index
    %163 = vector.load %arg3[%c0_142, %c0_143] : memref<128x512xf32, #tpu.memory_space<vmem>>, vector<128x512xf32>
    %cst_144 = arith.constant dense<0.000000e+00> : vector<64x512xf32>
    %164 = tpu.matmul %162, %163, %cst_144 {dimension_numbers = #tpu.dot_dimension_numbers<[1], [0], [0], [1], [0, 0, 1, 1], [], []>} : vector<64x128xf32>, vector<128x512xf32>, vector<64x512xf32> -> vector<64x512xf32>
    %c0_145 = arith.constant 0 : index
    %c0_146 = arith.constant 0 : index
    %165 = vector.load %arg4[%c0_145, %c0_146] : memref<1x512xf32, #tpu.memory_space<vmem>>, vector<1x512xf32>
    %166 = vector.broadcast %165 : vector<1x512xf32> to vector<64x512xf32>
    %167 = arith.addf %164, %166 : vector<64x512xf32>
    %c0_147 = arith.constant 0 : index
    %c0_148 = arith.constant 0 : index
    %168 = vector.load %arg10[%c0_147, %c0_148] : memref<64x512xf32, #tpu.memory_space<vmem>>, vector<64x512xf32>
    tpu.vector_store %arg10[%c0_147, %c0_148], %167 {strides = array<i32>} : memref<64x512xf32, #tpu.memory_space<vmem>>, vector<64x512xf32>,
    %cst_149 = arith.constant 0.000000e+00 : f32
    %169 = vector.broadcast %cst_149 : f32 to vector<8x128xf32>
    %cst_150 = arith.constant 0.000000e+00 : f32
    %170 = vector.broadcast %cst_150 : f32 to vector<8x128xf32>
    %c0_151 = arith.constant 0 : index
    %c0_152 = arith.constant 0 : index
    %171 = vector.load %arg10[%c0_151, %c0_152] : memref<64x512xf32, #tpu.memory_space<vmem>>, vector<8x512xf32>
    %c0_153 = arith.constant 0 : index
    %c0_154 = arith.constant 0 : index
    %172 = vector.load %arg5[%c0_153, %c0_154] : memref<128x512xf32, #tpu.memory_space<vmem>>, vector<128x512xf32>
    %cst_155 = arith.constant dense<0.000000e+00> : vector<8x512xf32>
    %173 = tpu.matmul %169, %172, %cst_155 {dimension_numbers = #tpu.dot_dimension_numbers<[1], [0], [0], [1], [0, 0, 1, 1], [], []>} : vector<8x128xf32>, vector<128x512xf32>, vector<8x512xf32> -> vector<8x512xf32>
    %174 = arith.addf %171, %173 : vector<8x512xf32>
    %175 = vector.extract_strided_slice %174 {offsets = [0, 0], sizes = [8, 128], strides = [1, 1]} : vector<8x512xf32> to vector<8x128xf32>
    %176 = arith.negf %175 : vector<8x128xf32>
    %177 = math.exp %176 : vector<8x128xf32>
    %cst_156 = arith.constant 1.000000e+00 : f32
    %178 = vector.broadcast %cst_156 : f32 to vector<8x128xf32>
    %179 = arith.addf %178, %177 : vector<8x128xf32>
    %180 = arith.divf %178, %179 : vector<8x128xf32>
    %181 = vector.extract_strided_slice %174 {offsets = [0, 128], sizes = [8, 128], strides = [1, 1]} : vector<8x512xf32> to vector<8x128xf32>
    %182 = arith.negf %181 : vector<8x128xf32>
    %183 = math.exp %182 : vector<8x128xf32>
    %cst_157 = arith.constant 1.000000e+00 : f32
    %184 = vector.broadcast %cst_157 : f32 to vector<8x128xf32>
    %185 = arith.addf %184, %183 : vector<8x128xf32>
    %186 = arith.divf %184, %185 : vector<8x128xf32>
    %187 = vector.extract_strided_slice %174 {offsets = [0, 256], sizes = [8, 128], strides = [1, 1]} : vector<8x512xf32> to vector<8x128xf32>
    %188 = math.tanh %187 : vector<8x128xf32>
    %189 = vector.extract_strided_slice %174 {offsets = [0, 384], sizes = [8, 128], strides = [1, 1]} : vector<8x512xf32> to vector<8x128xf32>
    %190 = arith.negf %189 : vector<8x128xf32>
    %191 = math.exp %190 : vector<8x128xf32>
    %cst_158 = arith.constant 1.000000e+00 : f32
    %192 = vector.broadcast %cst_158 : f32 to vector<8x128xf32>
    %193 = arith.addf %192, %191 : vector<8x128xf32>
    %194 = arith.divf %192, %193 : vector<8x128xf32>
    %195 = arith.mulf %186, %170 : vector<8x128xf32>
    %196 = arith.mulf %180, %188 : vector<8x128xf32>
    %197 = arith.addf %195, %196 : vector<8x128xf32>
    %198 = math.tanh %197 : vector<8x128xf32>
    %199 = arith.mulf %194, %198 : vector<8x128xf32>
    %c8_159 = arith.constant 8 : index
    %c0_160 = arith.constant 0 : index
    %200 = vector.load %arg10[%c8_159, %c0_160] : memref<64x512xf32, #tpu.memory_space<vmem>>, vector<8x512xf32>
    %c0_161 = arith.constant 0 : index
    %c0_162 = arith.constant 0 : index
    %201 = vector.load %arg5[%c0_161, %c0_162] : memref<128x512xf32, #tpu.memory_space<vmem>>, vector<128x512xf32>
    %cst_163 = arith.constant dense<0.000000e+00> : vector<8x512xf32>
    %202 = tpu.matmul %199, %201, %cst_163 {dimension_numbers = #tpu.dot_dimension_numbers<[1], [0], [0], [1], [0, 0, 1, 1], [], []>} : vector<8x128xf32>, vector<128x512xf32>, vector<8x512xf32> -> vector<8x512xf32>
    %203 = arith.addf %200, %202 : vector<8x512xf32>
    %204 = vector.extract_strided_slice %203 {offsets = [0, 0], sizes = [8, 128], strides = [1, 1]} : vector<8x512xf32> to vector<8x128xf32>
    %205 = arith.negf %204 : vector<8x128xf32>
    %206 = math.exp %205 : vector<8x128xf32>
    %cst_164 = arith.constant 1.000000e+00 : f32
    %207 = vector.broadcast %cst_164 : f32 to vector<8x128xf32>
    %208 = arith.addf %207, %206 : vector<8x128xf32>
    %209 = arith.divf %207, %208 : vector<8x128xf32>
    %210 = vector.extract_strided_slice %203 {offsets = [0, 128], sizes = [8, 128], strides = [1, 1]} : vector<8x512xf32> to vector<8x128xf32>
    %211 = arith.negf %210 : vector<8x128xf32>
    %212 = math.exp %211 : vector<8x128xf32>
    %cst_165 = arith.constant 1.000000e+00 : f32
    %213 = vector.broadcast %cst_165 : f32 to vector<8x128xf32>
    %214 = arith.addf %213, %212 : vector<8x128xf32>
    %215 = arith.divf %213, %214 : vector<8x128xf32>
    %216 = vector.extract_strided_slice %203 {offsets = [0, 256], sizes = [8, 128], strides = [1, 1]} : vector<8x512xf32> to vector<8x128xf32>
    %217 = math.tanh %216 : vector<8x128xf32>
    %218 = vector.extract_strided_slice %203 {offsets = [0, 384], sizes = [8, 128], strides = [1, 1]} : vector<8x512xf32> to vector<8x128xf32>
    %219 = arith.negf %218 : vector<8x128xf32>
    %220 = math.exp %219 : vector<8x128xf32>
    %cst_166 = arith.constant 1.000000e+00 : f32
    %221 = vector.broadcast %cst_166 : f32 to vector<8x128xf32>
    %222 = arith.addf %221, %220 : vector<8x128xf32>
    %223 = arith.divf %221, %222 : vector<8x128xf32>
    %224 = arith.mulf %215, %197 : vector<8x128xf32>
    %225 = arith.mulf %209, %217 : vector<8x128xf32>
    %226 = arith.addf %224, %225 : vector<8x128xf32>
    %227 = math.tanh %226 : vector<8x128xf32>
    %228 = arith.mulf %223, %227 : vector<8x128xf32>
    %c16_167 = arith.constant 16 : index
    %c0_168 = arith.constant 0 : index
    %229 = vector.load %arg10[%c16_167, %c0_168] : memref<64x512xf32, #tpu.memory_space<vmem>>, vector<8x512xf32>
    %c0_169 = arith.constant 0 : index
    %c0_170 = arith.constant 0 : index
    %230 = vector.load %arg5[%c0_169, %c0_170] : memref<128x512xf32, #tpu.memory_space<vmem>>, vector<128x512xf32>
    %cst_171 = arith.constant dense<0.000000e+00> : vector<8x512xf32>
    %231 = tpu.matmul %228, %230, %cst_171 {dimension_numbers = #tpu.dot_dimension_numbers<[1], [0], [0], [1], [0, 0, 1, 1], [], []>} : vector<8x128xf32>, vector<128x512xf32>, vector<8x512xf32> -> vector<8x512xf32>
    %232 = arith.addf %229, %231 : vector<8x512xf32>
    %233 = vector.extract_strided_slice %232 {offsets = [0, 0], sizes = [8, 128], strides = [1, 1]} : vector<8x512xf32> to vector<8x128xf32>
    %234 = arith.negf %233 : vector<8x128xf32>
    %235 = math.exp %234 : vector<8x128xf32>
    %cst_172 = arith.constant 1.000000e+00 : f32
    %236 = vector.broadcast %cst_172 : f32 to vector<8x128xf32>
    %237 = arith.addf %236, %235 : vector<8x128xf32>
    %238 = arith.divf %236, %237 : vector<8x128xf32>
    %239 = vector.extract_strided_slice %232 {offsets = [0, 128], sizes = [8, 128], strides = [1, 1]} : vector<8x512xf32> to vector<8x128xf32>
    %240 = arith.negf %239 : vector<8x128xf32>
    %241 = math.exp %240 : vector<8x128xf32>
    %cst_173 = arith.constant 1.000000e+00 : f32
    %242 = vector.broadcast %cst_173 : f32 to vector<8x128xf32>
    %243 = arith.addf %242, %241 : vector<8x128xf32>
    %244 = arith.divf %242, %243 : vector<8x128xf32>
    %245 = vector.extract_strided_slice %232 {offsets = [0, 256], sizes = [8, 128], strides = [1, 1]} : vector<8x512xf32> to vector<8x128xf32>
    %246 = math.tanh %245 : vector<8x128xf32>
    %247 = vector.extract_strided_slice %232 {offsets = [0, 384], sizes = [8, 128], strides = [1, 1]} : vector<8x512xf32> to vector<8x128xf32>
    %248 = arith.negf %247 : vector<8x128xf32>
    %249 = math.exp %248 : vector<8x128xf32>
    %cst_174 = arith.constant 1.000000e+00 : f32
    %250 = vector.broadcast %cst_174 : f32 to vector<8x128xf32>
    %251 = arith.addf %250, %249 : vector<8x128xf32>
    %252 = arith.divf %250, %251 : vector<8x128xf32>
    %253 = arith.mulf %244, %226 : vector<8x128xf32>
    %254 = arith.mulf %238, %246 : vector<8x128xf32>
    %255 = arith.addf %253, %254 : vector<8x128xf32>
    %256 = math.tanh %255 : vector<8x128xf32>
    %257 = arith.mulf %252, %256 : vector<8x128xf32>
    %c24_175 = arith.constant 24 : index
    %c0_176 = arith.constant 0 : index
    %258 = vector.load %arg10[%c24_175, %c0_176] : memref<64x512xf32, #tpu.memory_space<vmem>>, vector<8x512xf32>
    %c0_177 = arith.constant 0 : index
    %c0_178 = arith.constant 0 : index
    %259 = vector.load %arg5[%c0_177, %c0_178] : memref<128x512xf32, #tpu.memory_space<vmem>>, vector<128x512xf32>
    %cst_179 = arith.constant dense<0.000000e+00> : vector<8x512xf32>
    %260 = tpu.matmul %257, %259, %cst_179 {dimension_numbers = #tpu.dot_dimension_numbers<[1], [0], [0], [1], [0, 0, 1, 1], [], []>} : vector<8x128xf32>, vector<128x512xf32>, vector<8x512xf32> -> vector<8x512xf32>
    %261 = arith.addf %258, %260 : vector<8x512xf32>
    %262 = vector.extract_strided_slice %261 {offsets = [0, 0], sizes = [8, 128], strides = [1, 1]} : vector<8x512xf32> to vector<8x128xf32>
    %263 = arith.negf %262 : vector<8x128xf32>
    %264 = math.exp %263 : vector<8x128xf32>
    %cst_180 = arith.constant 1.000000e+00 : f32
    %265 = vector.broadcast %cst_180 : f32 to vector<8x128xf32>
    %266 = arith.addf %265, %264 : vector<8x128xf32>
    %267 = arith.divf %265, %266 : vector<8x128xf32>
    %268 = vector.extract_strided_slice %261 {offsets = [0, 128], sizes = [8, 128], strides = [1, 1]} : vector<8x512xf32> to vector<8x128xf32>
    %269 = arith.negf %268 : vector<8x128xf32>
    %270 = math.exp %269 : vector<8x128xf32>
    %cst_181 = arith.constant 1.000000e+00 : f32
    %271 = vector.broadcast %cst_181 : f32 to vector<8x128xf32>
    %272 = arith.addf %271, %270 : vector<8x128xf32>
    %273 = arith.divf %271, %272 : vector<8x128xf32>
    %274 = vector.extract_strided_slice %261 {offsets = [0, 256], sizes = [8, 128], strides = [1, 1]} : vector<8x512xf32> to vector<8x128xf32>
    %275 = math.tanh %274 : vector<8x128xf32>
    %276 = vector.extract_strided_slice %261 {offsets = [0, 384], sizes = [8, 128], strides = [1, 1]} : vector<8x512xf32> to vector<8x128xf32>
    %277 = arith.negf %276 : vector<8x128xf32>
    %278 = math.exp %277 : vector<8x128xf32>
    %cst_182 = arith.constant 1.000000e+00 : f32
    %279 = vector.broadcast %cst_182 : f32 to vector<8x128xf32>
    %280 = arith.addf %279, %278 : vector<8x128xf32>
    %281 = arith.divf %279, %280 : vector<8x128xf32>
    %282 = arith.mulf %273, %255 : vector<8x128xf32>
    %283 = arith.mulf %267, %275 : vector<8x128xf32>
    %284 = arith.addf %282, %283 : vector<8x128xf32>
    %285 = math.tanh %284 : vector<8x128xf32>
    %286 = arith.mulf %281, %285 : vector<8x128xf32>
    %c32_183 = arith.constant 32 : index
    %c0_184 = arith.constant 0 : index
    %287 = vector.load %arg10[%c32_183, %c0_184] : memref<64x512xf32, #tpu.memory_space<vmem>>, vector<8x512xf32>
    %c0_185 = arith.constant 0 : index
    %c0_186 = arith.constant 0 : index
    %288 = vector.load %arg5[%c0_185, %c0_186] : memref<128x512xf32, #tpu.memory_space<vmem>>, vector<128x512xf32>
    %cst_187 = arith.constant dense<0.000000e+00> : vector<8x512xf32>
    %289 = tpu.matmul %286, %288, %cst_187 {dimension_numbers = #tpu.dot_dimension_numbers<[1], [0], [0], [1], [0, 0, 1, 1], [], []>} : vector<8x128xf32>, vector<128x512xf32>, vector<8x512xf32> -> vector<8x512xf32>
    %290 = arith.addf %287, %289 : vector<8x512xf32>
    %291 = vector.extract_strided_slice %290 {offsets = [0, 0], sizes = [8, 128], strides = [1, 1]} : vector<8x512xf32> to vector<8x128xf32>
    %292 = arith.negf %291 : vector<8x128xf32>
    %293 = math.exp %292 : vector<8x128xf32>
    %cst_188 = arith.constant 1.000000e+00 : f32
    %294 = vector.broadcast %cst_188 : f32 to vector<8x128xf32>
    %295 = arith.addf %294, %293 : vector<8x128xf32>
    %296 = arith.divf %294, %295 : vector<8x128xf32>
    %297 = vector.extract_strided_slice %290 {offsets = [0, 128], sizes = [8, 128], strides = [1, 1]} : vector<8x512xf32> to vector<8x128xf32>
    %298 = arith.negf %297 : vector<8x128xf32>
    %299 = math.exp %298 : vector<8x128xf32>
    %cst_189 = arith.constant 1.000000e+00 : f32
    %300 = vector.broadcast %cst_189 : f32 to vector<8x128xf32>
    %301 = arith.addf %300, %299 : vector<8x128xf32>
    %302 = arith.divf %300, %301 : vector<8x128xf32>
    %303 = vector.extract_strided_slice %290 {offsets = [0, 256], sizes = [8, 128], strides = [1, 1]} : vector<8x512xf32> to vector<8x128xf32>
    %304 = math.tanh %303 : vector<8x128xf32>
    %305 = vector.extract_strided_slice %290 {offsets = [0, 384], sizes = [8, 128], strides = [1, 1]} : vector<8x512xf32> to vector<8x128xf32>
    %306 = arith.negf %305 : vector<8x128xf32>
    %307 = math.exp %306 : vector<8x128xf32>
    %cst_190 = arith.constant 1.000000e+00 : f32
    %308 = vector.broadcast %cst_190 : f32 to vector<8x128xf32>
    %309 = arith.addf %308, %307 : vector<8x128xf32>
    %310 = arith.divf %308, %309 : vector<8x128xf32>
    %311 = arith.mulf %302, %284 : vector<8x128xf32>
    %312 = arith.mulf %296, %304 : vector<8x128xf32>
    %313 = arith.addf %311, %312 : vector<8x128xf32>
    %314 = math.tanh %313 : vector<8x128xf32>
    %315 = arith.mulf %310, %314 : vector<8x128xf32>
    %c40_191 = arith.constant 40 : index
    %c0_192 = arith.constant 0 : index
    %316 = vector.load %arg10[%c40_191, %c0_192] : memref<64x512xf32, #tpu.memory_space<vmem>>, vector<8x512xf32>
    %c0_193 = arith.constant 0 : index
    %c0_194 = arith.constant 0 : index
    %317 = vector.load %arg5[%c0_193, %c0_194] : memref<128x512xf32, #tpu.memory_space<vmem>>, vector<128x512xf32>
    %cst_195 = arith.constant dense<0.000000e+00> : vector<8x512xf32>
    %318 = tpu.matmul %315, %317, %cst_195 {dimension_numbers = #tpu.dot_dimension_numbers<[1], [0], [0], [1], [0, 0, 1, 1], [], []>} : vector<8x128xf32>, vector<128x512xf32>, vector<8x512xf32> -> vector<8x512xf32>
    %319 = arith.addf %316, %318 : vector<8x512xf32>
    %320 = vector.extract_strided_slice %319 {offsets = [0, 0], sizes = [8, 128], strides = [1, 1]} : vector<8x512xf32> to vector<8x128xf32>
    %321 = arith.negf %320 : vector<8x128xf32>
    %322 = math.exp %321 : vector<8x128xf32>
    %cst_196 = arith.constant 1.000000e+00 : f32
    %323 = vector.broadcast %cst_196 : f32 to vector<8x128xf32>
    %324 = arith.addf %323, %322 : vector<8x128xf32>
    %325 = arith.divf %323, %324 : vector<8x128xf32>
    %326 = vector.extract_strided_slice %319 {offsets = [0, 128], sizes = [8, 128], strides = [1, 1]} : vector<8x512xf32> to vector<8x128xf32>
    %327 = arith.negf %326 : vector<8x128xf32>
    %328 = math.exp %327 : vector<8x128xf32>
    %cst_197 = arith.constant 1.000000e+00 : f32
    %329 = vector.broadcast %cst_197 : f32 to vector<8x128xf32>
    %330 = arith.addf %329, %328 : vector<8x128xf32>
    %331 = arith.divf %329, %330 : vector<8x128xf32>
    %332 = vector.extract_strided_slice %319 {offsets = [0, 256], sizes = [8, 128], strides = [1, 1]} : vector<8x512xf32> to vector<8x128xf32>
    %333 = math.tanh %332 : vector<8x128xf32>
    %334 = vector.extract_strided_slice %319 {offsets = [0, 384], sizes = [8, 128], strides = [1, 1]} : vector<8x512xf32> to vector<8x128xf32>
    %335 = arith.negf %334 : vector<8x128xf32>
    %336 = math.exp %335 : vector<8x128xf32>
    %cst_198 = arith.constant 1.000000e+00 : f32
    %337 = vector.broadcast %cst_198 : f32 to vector<8x128xf32>
    %338 = arith.addf %337, %336 : vector<8x128xf32>
    %339 = arith.divf %337, %338 : vector<8x128xf32>
    %340 = arith.mulf %331, %313 : vector<8x128xf32>
    %341 = arith.mulf %325, %333 : vector<8x128xf32>
    %342 = arith.addf %340, %341 : vector<8x128xf32>
    %343 = math.tanh %342 : vector<8x128xf32>
    %344 = arith.mulf %339, %343 : vector<8x128xf32>
    %c48_199 = arith.constant 48 : index
    %c0_200 = arith.constant 0 : index
    %345 = vector.load %arg10[%c48_199, %c0_200] : memref<64x512xf32, #tpu.memory_space<vmem>>, vector<8x512xf32>
    %c0_201 = arith.constant 0 : index
    %c0_202 = arith.constant 0 : index
    %346 = vector.load %arg5[%c0_201, %c0_202] : memref<128x512xf32, #tpu.memory_space<vmem>>, vector<128x512xf32>
    %cst_203 = arith.constant dense<0.000000e+00> : vector<8x512xf32>
    %347 = tpu.matmul %344, %346, %cst_203 {dimension_numbers = #tpu.dot_dimension_numbers<[1], [0], [0], [1], [0, 0, 1, 1], [], []>} : vector<8x128xf32>, vector<128x512xf32>, vector<8x512xf32> -> vector<8x512xf32>
    %348 = arith.addf %345, %347 : vector<8x512xf32>
    %349 = vector.extract_strided_slice %348 {offsets = [0, 0], sizes = [8, 128], strides = [1, 1]} : vector<8x512xf32> to vector<8x128xf32>
    %350 = arith.negf %349 : vector<8x128xf32>
    %351 = math.exp %350 : vector<8x128xf32>
    %cst_204 = arith.constant 1.000000e+00 : f32
    %352 = vector.broadcast %cst_204 : f32 to vector<8x128xf32>
    %353 = arith.addf %352, %351 : vector<8x128xf32>
    %354 = arith.divf %352, %353 : vector<8x128xf32>
    %355 = vector.extract_strided_slice %348 {offsets = [0, 128], sizes = [8, 128], strides = [1, 1]} : vector<8x512xf32> to vector<8x128xf32>
    %356 = arith.negf %355 : vector<8x128xf32>
    %357 = math.exp %356 : vector<8x128xf32>
    %cst_205 = arith.constant 1.000000e+00 : f32
    %358 = vector.broadcast %cst_205 : f32 to vector<8x128xf32>
    %359 = arith.addf %358, %357 : vector<8x128xf32>
    %360 = arith.divf %358, %359 : vector<8x128xf32>
    %361 = vector.extract_strided_slice %348 {offsets = [0, 256], sizes = [8, 128], strides = [1, 1]} : vector<8x512xf32> to vector<8x128xf32>
    %362 = math.tanh %361 : vector<8x128xf32>
    %363 = vector.extract_strided_slice %348 {offsets = [0, 384], sizes = [8, 128], strides = [1, 1]} : vector<8x512xf32> to vector<8x128xf32>
    %364 = arith.negf %363 : vector<8x128xf32>
    %365 = math.exp %364 : vector<8x128xf32>
    %cst_206 = arith.constant 1.000000e+00 : f32
    %366 = vector.broadcast %cst_206 : f32 to vector<8x128xf32>
    %367 = arith.addf %366, %365 : vector<8x128xf32>
    %368 = arith.divf %366, %367 : vector<8x128xf32>
    %369 = arith.mulf %360, %342 : vector<8x128xf32>
    %370 = arith.mulf %354, %362 : vector<8x128xf32>
    %371 = arith.addf %369, %370 : vector<8x128xf32>
    %372 = math.tanh %371 : vector<8x128xf32>
    %373 = arith.mulf %368, %372 : vector<8x128xf32>
    %c56_207 = arith.constant 56 : index
    %c0_208 = arith.constant 0 : index
    %374 = vector.load %arg10[%c56_207, %c0_208] : memref<64x512xf32, #tpu.memory_space<vmem>>, vector<8x512xf32>
    %c0_209 = arith.constant 0 : index
    %c0_210 = arith.constant 0 : index
    %375 = vector.load %arg5[%c0_209, %c0_210] : memref<128x512xf32, #tpu.memory_space<vmem>>, vector<128x512xf32>
    %cst_211 = arith.constant dense<0.000000e+00> : vector<8x512xf32>
    %376 = tpu.matmul %373, %375, %cst_211 {dimension_numbers = #tpu.dot_dimension_numbers<[1], [0], [0], [1], [0, 0, 1, 1], [], []>} : vector<8x128xf32>, vector<128x512xf32>, vector<8x512xf32> -> vector<8x512xf32>
    %377 = arith.addf %374, %376 : vector<8x512xf32>
    %378 = vector.extract_strided_slice %377 {offsets = [0, 0], sizes = [8, 128], strides = [1, 1]} : vector<8x512xf32> to vector<8x128xf32>
    %379 = arith.negf %378 : vector<8x128xf32>
    %380 = math.exp %379 : vector<8x128xf32>
    %cst_212 = arith.constant 1.000000e+00 : f32
    %381 = vector.broadcast %cst_212 : f32 to vector<8x128xf32>
    %382 = arith.addf %381, %380 : vector<8x128xf32>
    %383 = arith.divf %381, %382 : vector<8x128xf32>
    %384 = vector.extract_strided_slice %377 {offsets = [0, 128], sizes = [8, 128], strides = [1, 1]} : vector<8x512xf32> to vector<8x128xf32>
    %385 = arith.negf %384 : vector<8x128xf32>
    %386 = math.exp %385 : vector<8x128xf32>
    %cst_213 = arith.constant 1.000000e+00 : f32
    %387 = vector.broadcast %cst_213 : f32 to vector<8x128xf32>
    %388 = arith.addf %387, %386 : vector<8x128xf32>
    %389 = arith.divf %387, %388 : vector<8x128xf32>
    %390 = vector.extract_strided_slice %377 {offsets = [0, 256], sizes = [8, 128], strides = [1, 1]} : vector<8x512xf32> to vector<8x128xf32>
    %391 = math.tanh %390 : vector<8x128xf32>
    %392 = vector.extract_strided_slice %377 {offsets = [0, 384], sizes = [8, 128], strides = [1, 1]} : vector<8x512xf32> to vector<8x128xf32>
    %393 = arith.negf %392 : vector<8x128xf32>
    %394 = math.exp %393 : vector<8x128xf32>
    %cst_214 = arith.constant 1.000000e+00 : f32
    %395 = vector.broadcast %cst_214 : f32 to vector<8x128xf32>
    %396 = arith.addf %395, %394 : vector<8x128xf32>
    %397 = arith.divf %395, %396 : vector<8x128xf32>
    %398 = arith.mulf %389, %371 : vector<8x128xf32>
    %399 = arith.mulf %383, %391 : vector<8x128xf32>
    %400 = arith.addf %398, %399 : vector<8x128xf32>
    %401 = math.tanh %400 : vector<8x128xf32>
    %402 = arith.mulf %397, %401 : vector<8x128xf32>
    %c0_215 = arith.constant 0 : index
    %c0_216 = arith.constant 0 : index
    %403 = vector.load %arg6[%c0_215, %c0_216] : memref<128x8xf32, #tpu.memory_space<vmem>>, vector<128x8xf32>
    %cst_217 = arith.constant dense<0.000000e+00> : vector<8x8xf32>
    %404 = tpu.matmul %402, %403, %cst_217 {dimension_numbers = #tpu.dot_dimension_numbers<[1], [0], [0], [1], [0, 0, 1, 1], [], []>} : vector<8x128xf32>, vector<128x8xf32>, vector<8x8xf32> -> vector<8x8xf32>
    %c0_218 = arith.constant 0 : index
    %c0_219 = arith.constant 0 : index
    %405 = vector.load %arg7[%c0_218, %c0_219] : memref<1x8xf32, #tpu.memory_space<vmem>>, vector<1x8xf32>
    %406 = vector.broadcast %405 : vector<1x8xf32> to vector<8x8xf32>
    %407 = arith.addf %404, %406 : vector<8x8xf32>
    %cst_220 = arith.constant dense<0xFF800000> : vector<8xf32>
    %408 = vector.multi_reduction <maximumf>, %407, %cst_220 [1] : vector<8x8xf32> to vector<8xf32>
    %409 = vector.shape_cast %408 : vector<8xf32> to vector<8x1xf32>
    %410 = vector.broadcast %409 : vector<8x1xf32> to vector<8x8xf32>
    %411 = arith.subf %407, %410 : vector<8x8xf32>
    %412 = math.exp %411 : vector<8x8xf32>
    %cst_221 = arith.constant dense<0.000000e+00> : vector<8xf32>
    %413 = vector.multi_reduction <add>, %412, %cst_221 [1] : vector<8x8xf32> to vector<8xf32>
    %414 = vector.shape_cast %413 : vector<8xf32> to vector<8x1xf32>
    %415 = vector.broadcast %414 : vector<8x1xf32> to vector<8x8xf32>
    %416 = arith.divf %412, %415 : vector<8x8xf32>
    %417 = vector.extract_strided_slice %416 {offsets = [0, 0], sizes = [2, 8], strides = [1, 1]} : vector<8x8xf32> to vector<2x8xf32>
    %c0_222 = arith.constant 0 : index
    %c0_223 = arith.constant 0 : index
    %418 = vector.load %arg8[%c0_222, %c0_223] : memref<2x8xf32, #tpu.memory_space<vmem>>, vector<2x8xf32>
    tpu.vector_store %arg8[%c0_222, %c0_223], %417 {strides = array<i32>} : memref<2x8xf32, #tpu.memory_space<vmem>>, vector<2x8xf32>,
    return
  }
}

</mosaic_0001>

<llo_original>
// kernel: tpu_custom_call.1
$region0: #{tpu_custom_call.1}
  #allocation0 [shape = 'u32[]', space=smem, size = 0x4, offset = 0x4, fixed_abs, tag = 'smem constant byte address 0x4 - core index']
  #allocation1 [shape = 'u32[144,128]{1,0:T(1,128)}', space=vmem, size = 0x12000, scoped, tag = 'internal scratch']
  #allocation2 [shape = 'f32[64,128]{1,0:T(8,128)}', space=vmem, size = 0x8000, scoped, tag = 'scratch operand']
  #allocation3 [shape = 'f32[64,512]{1,0:T(8,128)}', space=vmem, size = 0x20000, scoped, tag = 'scratch operand']
  %s0 = inlined_call_operand.vmem [shape: s32[2,8], index: 0, kind: input, shape index: {}]
  %s1 = inlined_call_operand.vmem [shape: f32[50,1,128], index: 1, kind: input, shape index: {}]
  %s2 = inlined_call_operand.vmem [shape: f32[50,1,128], index: 2, kind: input, shape index: {}]
  %s3 = inlined_call_operand.hbm [shape: f32[128,512], index: 3, kind: input, shape index: {}]
  %s4 = inlined_call_operand.vmem [shape: f32[1,512], index: 4, kind: input, shape index: {}]
  %s5 = inlined_call_operand.hbm [shape: f32[128,512], index: 5, kind: input, shape index: {}]
  %s6 = inlined_call_operand.vmem [shape: f32[128,8], index: 6, kind: input, shape index: {}]
  %s7 = inlined_call_operand.vmem [shape: f32[1,8], index: 7, kind: input, shape index: {}]
  %s8 = inlined_call_operand.hbm [shape: f32[2,8], index: 8, kind: output, shape index: {}]
  %s9 = sld [smem:[#allocation0]]
  $region54: #{tpu_custom_call.1} parent=0
    _
  %s11 = ssub.s32 1, %s9
  %s12 = scalar_select 0, %s11, %s9
  $region1: #{tpu_custom_call.1} parent=0
    #allocation4 [shape = 'u8[1024]{0}', space=smem, size = 0x400, scoped, tag = 'input window, operand 0, single buffered']
    #allocation5 [shape = 's32[1]{0}', space=sflag, size = 0x4, scoped, tag = 'scoped memory for tpu_custom_call.1']
    #allocation6 [shape = 's32[1]{0}', space=sflag, size = 0x4, scoped, tag = 'scoped memory for tpu_custom_call.1']
    #allocation7 [shape = 's32[1]{0}', space=sflag, size = 0x4, scoped, tag = 'scoped memory for tpu_custom_call.1']
    #allocation8 [shape = 'u8[262144]{0}', space=vmem, size = 0x40000, scoped, tag = 'input window, operand 3, single buffered']
    #allocation9 [shape = 'u8[262144]{0}', space=vmem, size = 0x40000, scoped, tag = 'input window, operand 5, single buffered']
    #allocation10 [shape = 's32[1]{0}', space=sflag, size = 0x4, scoped, tag = 'scoped memory for tpu_custom_call.1']
    #allocation11 [shape = 'u8[1024]{0}', space=vmem, size = 0x400, scoped, tag = 'output window, operand 0, single buffered']
    %13 = vsyncpa [#allocation7], 0
    %14 = vsyncpa [#allocation5], 0
    %15 = vsyncpa [#allocation10], 0
    %16 = vsyncpa [#allocation6], 0
    // Predicated region
    $region2: #{tpu_custom_call.1} parent=1 // pred_check
      _
    $region3: #{tpu_custom_call.1} parent=1 // pred_check_branch
      %18 = sbr.rel (0) target = $region5
    $region4: #{tpu_custom_call.1} parent=1 // pred_region
      %s20 = ssub.s32 32, 32
      %21 = vsyncadd [#allocation7], %s20
      %s23 = sshll.u32 %s0, 4
      %s24 = int_to_ptr.vmem [resolvable:$true] %s23
      %26 = dma.vmem_to_smem %s24, 32, [#allocation4], [#allocation7]
    $region5: #{tpu_custom_call.1} parent=1 // pred_fallthru
      _
    // Predicated region
    $region6: #{tpu_custom_call.1} parent=1 // pred_check
      _
    $region7: #{tpu_custom_call.1} parent=1 // pred_check_branch
      %28 = sbr.rel (0) target = $region9
    $region8: #{tpu_custom_call.1} parent=1 // pred_region
      _
    $region9: #{tpu_custom_call.1} parent=1 // pred_fallthru
      _
    // Predicated region
    $region10: #{tpu_custom_call.1} parent=1 // pred_check
      _
    $region11: #{tpu_custom_call.1} parent=1 // pred_check_branch
      %30 = sbr.rel (0) target = $region13
    $region12: #{tpu_custom_call.1} parent=1 // pred_region
      _
    $region13: #{tpu_custom_call.1} parent=1 // pred_fallthru
      _
    // Predicated region
    $region14: #{tpu_custom_call.1} parent=1 // pred_check
      _
    $region15: #{tpu_custom_call.1} parent=1 // pred_check_branch
      %32 = sbr.rel (0) target = $region17
    $region16: #{tpu_custom_call.1} parent=1 // pred_region
      %s34 = ssub.s32 8192, 8192
      %35 = vsyncadd [#allocation5], %s34
      %s36 = sshll.u32 [#allocation8], 4
      %s37 = int_to_ptr.vmem [resolvable:$true] %s36
      %42 = dma.hbm_to_vmem [thread:$0]  %s3, 8192, %s37, [#allocation5], 512, 512, 32
    $region17: #{tpu_custom_call.1} parent=1 // pred_fallthru
      _
    // Predicated region
    $region18: #{tpu_custom_call.1} parent=1 // pred_check
      _
    $region19: #{tpu_custom_call.1} parent=1 // pred_check_branch
      %44 = sbr.rel (0) target = $region21
    $region20: #{tpu_custom_call.1} parent=1 // pred_region
      _
    $region21: #{tpu_custom_call.1} parent=1 // pred_fallthru
      _
    // Predicated region
    $region22: #{tpu_custom_call.1} parent=1 // pred_check
      _
    $region23: #{tpu_custom_call.1} parent=1 // pred_check_branch
      %46 = sbr.rel (0) target = $region25
    $region24: #{tpu_custom_call.1} parent=1 // pred_region
      %s48 = ssub.s32 8192, 8192
      %49 = vsyncadd [#allocation10], %s48
      %s50 = sshll.u32 [#allocation9], 4
      %s51 = int_to_ptr.vmem [resolvable:$true] %s50
      %56 = dma.hbm_to_vmem [thread:$0]  %s5, 8192, %s51, [#allocation10], 512, 512, 32
    $region25: #{tpu_custom_call.1} parent=1 // pred_fallthru
      _
    // Predicated region
    $region26: #{tpu_custom_call.1} parent=1 // pred_check
      _
    $region27: #{tpu_custom_call.1} parent=1 // pred_check_branch
      %58 = sbr.rel (0) target = $region29
    $region28: #{tpu_custom_call.1} parent=1 // pred_region
      _
    $region29: #{tpu_custom_call.1} parent=1 // pred_fallthru
      _
    // Predicated region
    $region30: #{tpu_custom_call.1} parent=1 // pred_check
      _
    $region31: #{tpu_custom_call.1} parent=1 // pred_check_branch
      %60 = sbr.rel (0) target = $region33
    $region32: #{tpu_custom_call.1} parent=1 // pred_region
      _
    $region33: #{tpu_custom_call.1} parent=1 // pred_fallthru
      _
    // Predicated region
    $region34: #{tpu_custom_call.1} parent=1 // pred_check
      _
    $region35: #{tpu_custom_call.1} parent=1 // pred_check_branch
      %62 = sbr.rel (0) target = $region37
    $region36: #{tpu_custom_call.1} parent=1 // pred_region
      %63 = dma.done [#allocation7], 32
    $region37: #{tpu_custom_call.1} parent=1 // pred_fallthru
      _
    // Predicated region
    $region38: #{tpu_custom_call.1} parent=1 // pred_check
      _
    $region39: #{tpu_custom_call.1} parent=1 // pred_check_branch
      %65 = sbr.rel (0) target = $region41
    $region40: #{tpu_custom_call.1} parent=1 // pred_region
      %66 = dma.done [#allocation5], 8192
    $region41: #{tpu_custom_call.1} parent=1 // pred_fallthru
      _
    // Predicated region
    $region42: #{tpu_custom_call.1} parent=1 // pred_check
      _
    $region43: #{tpu_custom_call.1} parent=1 // pred_check_branch
      %68 = sbr.rel (0) target = $region45
    $region44: #{tpu_custom_call.1} parent=1 // pred_region
      %69 = dma.done [#allocation10], 8192
    $region45: #{tpu_custom_call.1} parent=1 // pred_fallthru
      _
    %70 = sfence
    %71 = vst [vmem:[#allocation2] sm:$0xff] 0.0
    %72 = vst [vmem:[#allocation2 + $0x8] sm:$0xff] 0.0
    %73 = vst [vmem:[#allocation2 + $0x10] sm:$0xff] 0.0
    %74 = vst [vmem:[#allocation2 + $0x18] sm:$0xff] 0.0
    %75 = vst [vmem:[#allocation2 + $0x20] sm:$0xff] 0.0
    %76 = vst [vmem:[#allocation2 + $0x28] sm:$0xff] 0.0
    %77 = vst [vmem:[#allocation2 + $0x30] sm:$0xff] 0.0
    %78 = vst [vmem:[#allocation2 + $0x38] sm:$0xff] 0.0
    %s79 = sld [smem:[#allocation4]]
    %s80 = sld [smem:[#allocation4 + $0x7]]
    %s81 = scalar_lea.vmem %s1, %s79
    %v82 = vld [vmem:[%s81] sm:$0x1]
    %s83 = scalar_lea.vmem %s2, %s80
    %v84 = vld [vmem:[%s83] sm:$0x1]
    %v85 = vadd.f32 %v82, %v84
    %86 = vst [vmem:[#allocation2] sm:$0x1] %v85
    %s87 = sld [smem:[#allocation4 + $0x80]]
    %s88 = sld [smem:[#allocation4 + $0x87]]
    %s89 = scalar_lea.vmem %s1, %s87
    %v90 = vld [vmem:[%s89] sm:$0x1]
    %s91 = scalar_lea.vmem %s2, %s88
    %v92 = vld [vmem:[%s91] sm:$0x1]
    %v93 = vadd.f32 %v90, %v92
    %94 = vst [vmem:[#allocation2 + $0x1] sm:$0x1] %v93
    %s95 = sld [smem:[#allocation4 + $0x1]]
    %s96 = sld [smem:[#allocation4 + $0x6]]
    %s97 = scalar_lea.vmem %s1, %s95
    %v98 = vld [vmem:[%s97] sm:$0x1]
    %s99 = scalar_lea.vmem %s2, %s96
    %v100 = vld [vmem:[%s99] sm:$0x1]
    %v101 = vadd.f32 %v98, %v100
    %102 = vst [vmem:[#allocation2 + $0x8] sm:$0x1] %v101
    %s103 = sld [smem:[#allocation4 + $0x81]]
    %s104 = sld [smem:[#allocation4 + $0x86]]
    %s105 = scalar_lea.vmem %s1, %s103
    %v106 = vld [vmem:[%s105] sm:$0x1]
    %s107 = scalar_lea.vmem %s2, %s104
    %v108 = vld [vmem:[%s107] sm:$0x1]
    %v109 = vadd.f32 %v106, %v108
    %110 = vst [vmem:[#allocation2 + $0x9] sm:$0x1] %v109
    %s111 = sld [smem:[#allocation4 + $0x2]]
    %s112 = sld [smem:[#allocation4 + $0x5]]
    %s113 = scalar_lea.vmem %s1, %s111
    %v114 = vld [vmem:[%s113] sm:$0x1]
    %s115 = scalar_lea.vmem %s2, %s112
    %v116 = vld [vmem:[%s115] sm:$0x1]
    %v117 = vadd.f32 %v114, %v116
    %118 = vst [vmem:[#allocation2 + $0x10] sm:$0x1] %v117
    %s119 = sld [smem:[#allocation4 + $0x82]]
    %s120 = sld [smem:[#allocation4 + $0x85]]
    %s121 = scalar_lea.vmem %s1, %s119
    %v122 = vld [vmem:[%s121] sm:$0x1]
    %s123 = scalar_lea.vmem %s2, %s120
    %v124 = vld [vmem:[%s123] sm:$0x1]
    %v125 = vadd.f32 %v122, %v124
    %126 = vst [vmem:[#allocation2 + $0x11] sm:$0x1] %v125
    %s127 = sld [smem:[#allocation4 + $0x3]]
    %s128 = sld [smem:[#allocation4 + $0x4]]
    %s129 = scalar_lea.vmem %s1, %s127
    %v130 = vld [vmem:[%s129] sm:$0x1]
    %s131 = scalar_lea.vmem %s2, %s128
    %v132 = vld [vmem:[%s131] sm:$0x1]
    %v133 = vadd.f32 %v130, %v132
    %134 = vst [vmem:[#allocation2 + $0x18] sm:$0x1] %v133
    %s135 = sld [smem:[#allocation4 + $0x83]]
    %s136 = sld [smem:[#allocation4 + $0x84]]
    %s137 = scalar_lea.vmem %s1, %s135
    %v138 = vld [vmem:[%s137] sm:$0x1]
    %s139 = scalar_lea.vmem %s2, %s136
    %v140 = vld [vmem:[%s139] sm:$0x1]
    %v141 = vadd.f32 %v138, %v140
    %142 = vst [vmem:[#allocation2 + $0x19] sm:$0x1] %v141
    %s143 = sld [smem:[#allocation4 + $0x4]]
    %s144 = sld [smem:[#allocation4 + $0x3]]
    %s145 = scalar_lea.vmem %s1, %s143
    %v146 = vld [vmem:[%s145] sm:$0x1]
    %s147 = scalar_lea.vmem %s2, %s144
    %v148 = vld [vmem:[%s147] sm:$0x1]
    %v149 = vadd.f32 %v146, %v148
    %150 = vst [vmem:[#allocation2 + $0x20] sm:$0x1] %v149
    %s151 = sld [smem:[#allocation4 + $0x84]]
    %s152 = sld [smem:[#allocation4 + $0x83]]
    %s153 = scalar_lea.vmem %s1, %s151
    %v154 = vld [vmem:[%s153] sm:$0x1]
    %s155 = scalar_lea.vmem %s2, %s152
    %v156 = vld [vmem:[%s155] sm:$0x1]
    %v157 = vadd.f32 %v154, %v156
    %158 = vst [vmem:[#allocation2 + $0x21] sm:$0x1] %v157
    %s159 = sld [smem:[#allocation4 + $0x5]]
    %s160 = sld [smem:[#allocation4 + $0x2]]
    %s161 = scalar_lea.vmem %s1, %s159
    %v162 = vld [vmem:[%s161] sm:$0x1]
    %s163 = scalar_lea.vmem %s2, %s160
    %v164 = vld [vmem:[%s163] sm:$0x1]
    %v165 = vadd.f32 %v162, %v164
    %166 = vst [vmem:[#allocation2 + $0x28] sm:$0x1] %v165
    %s167 = sld [smem:[#allocation4 + $0x85]]
    %s168 = sld [smem:[#allocation4 + $0x82]]
    %s169 = scalar_lea.vmem %s1, %s167
    %v170 = vld [vmem:[%s169] sm:$0x1]
    %s171 = scalar_lea.vmem %s2, %s168
    %v172 = vld [vmem:[%s171] sm:$0x1]
    %v173 = vadd.f32 %v170, %v172
    %174 = vst [vmem:[#allocation2 + $0x29] sm:$0x1] %v173
    %s175 = sld [smem:[#allocation4 + $0x6]]
    %s176 = sld [smem:[#allocation4 + $0x1]]
    %s177 = scalar_lea.vmem %s1, %s175
    %v178 = vld [vmem:[%s177] sm:$0x1]
    %s179 = scalar_lea.vmem %s2, %s176
    %v180 = vld [vmem:[%s179] sm:$0x1]
    %v181 = vadd.f32 %v178, %v180
    %182 = vst [vmem:[#allocation2 + $0x30] sm:$0x1] %v181
    %s183 = sld [smem:[#allocation4 + $0x86]]
    %s184 = sld [smem:[#allocation4 + $0x81]]
    %s185 = scalar_lea.vmem %s1, %s183
    %v186 = vld [vmem:[%s185] sm:$0x1]
    %s187 = scalar_lea.vmem %s2, %s184
    %v188 = vld [vmem:[%s187] sm:$0x1]
    %v189 = vadd.f32 %v186, %v188
    %190 = vst [vmem:[#allocation2 + $0x31] sm:$0x1] %v189
    %s191 = sld [smem:[#allocation4 + $0x7]]
    %s192 = sld [smem:[#allocation4]]
    %s193 = scalar_lea.vmem %s1, %s191
    %v194 = vld [vmem:[%s193] sm:$0x1]
    %s195 = scalar_lea.vmem %s2, %s192
    %v196 = vld [vmem:[%s195] sm:$0x1]
    %v197 = vadd.f32 %v194, %v196
    %198 = vst [vmem:[#allocation2 + $0x38] sm:$0x1] %v197
    %s199 = sld [smem:[#allocation4 + $0x87]]
    %s200 = sld [smem:[#allocation4 + $0x80]]
    %s201 = scalar_lea.vmem %s1, %s199
    %v202 = vld [vmem:[%s201] sm:$0x1]
    %s203 = scalar_lea.vmem %s2, %s200
    %v204 = vld [vmem:[%s203] sm:$0x1]
    %v205 = vadd.f32 %v202, %v204
    %206 = vst [vmem:[#allocation2 + $0x39] sm:$0x1] %v205
    %v207 = vld [vmem:[#allocation2] sm:$0xff]
    %v208 = vld [vmem:[#allocation2 + $0x8] sm:$0xff]
    %v209 = vld [vmem:[#allocation2 + $0x10] sm:$0xff]
    %v210 = vld [vmem:[#allocation2 + $0x18] sm:$0xff]
    %v211 = vld [vmem:[#allocation2 + $0x20] sm:$0xff]
    %v212 = vld [vmem:[#allocation2 + $0x28] sm:$0xff]
    %v213 = vld [vmem:[#allocation2 + $0x30] sm:$0xff]
    %v214 = vld [vmem:[#allocation2 + $0x38] sm:$0xff]
    %v215 = vld [vmem:[#allocation8] sm:$0xff]
    %v216 = vld [vmem:[#allocation8 + $0x8] sm:$0xff]
    %v217 = vld [vmem:[#allocation8 + $0x10] sm:$0xff]
    %v218 = vld [vmem:[#allocation8 + $0x18] sm:$0xff]
    %v219 = vld [vmem:[#allocation8 + $0x20] sm:$0xff]
    %v220 = vld [vmem:[#allocation8 + $0x28] sm:$0xff]
    %v221 = vld [vmem:[#allocation8 + $0x30] sm:$0xff]
    %v222 = vld [vmem:[#allocation8 + $0x38] sm:$0xff]
    %v223 = vld [vmem:[#allocation8 + $0x40] sm:$0xff]
    %v224 = vld [vmem:[#allocation8 + $0x48] sm:$0xff]
    %v225 = vld [vmem:[#allocation8 + $0x50] sm:$0xff]
    %v226 = vld [vmem:[#allocation8 + $0x58] sm:$0xff]
    %v227 = vld [vmem:[#allocation8 + $0x60] sm:$0xff]
    %v228 = vld [vmem:[#allocation8 + $0x68] sm:$0xff]
    %v229 = vld [vmem:[#allocation8 + $0x70] sm:$0xff]
    %v230 = vld [vmem:[#allocation8 + $0x78] sm:$0xff]
    %v231 = vld [vmem:[#allocation8 + $0x80] sm:$0xff]
    %v232 = vld [vmem:[#allocation8 + $0x88] sm:$0xff]
    %v233 = vld [vmem:[#allocation8 + $0x90] sm:$0xff]
    %v234 = vld [vmem:[#allocation8 + $0x98] sm:$0xff]
    %v235 = vld [vmem:[#allocation8 + $0xa0] sm:$0xff]
    %v236 = vld [vmem:[#allocation8 + $0xa8] sm:$0xff]
    %v237 = vld [vmem:[#allocation8 + $0xb0] sm:$0xff]
    %v238 = vld [vmem:[#allocation8 + $0xb8] sm:$0xff]
    %v239 = vld [vmem:[#allocation8 + $0xc0] sm:$0xff]
    %v240 = vld [vmem:[#allocation8 + $0xc8] sm:$0xff]
    %v241 = vld [vmem:[#allocation8 + $0xd0] sm:$0xff]
    %v242 = vld [vmem:[#allocation8 + $0xd8] sm:$0xff]
    %v243 = vld [vmem:[#allocation8 + $0xe0] sm:$0xff]
    %v244 = vld [vmem:[#allocation8 + $0xe8] sm:$0xff]
    %v245 = vld [vmem:[#allocation8 + $0xf0] sm:$0xff]
    %v246 = vld [vmem:[#allocation8 + $0xf8] sm:$0xff]
    %v247 = vld [vmem:[#allocation8 + $0x100] sm:$0xff]
    %v248 = vld [vmem:[#allocation8 + $0x108] sm:$0xff]
    %v249 = vld [vmem:[#allocation8 + $0x110] sm:$0xff]
    %v250 = vld [vmem:[#allocation8 + $0x118] sm:$0xff]
    %v251 = vld [vmem:[#allocation8 + $0x120] sm:$0xff]
    %v252 = vld [vmem:[#allocation8 + $0x128] sm:$0xff]
    %v253 = vld [vmem:[#allocation8 + $0x130] sm:$0xff]
    %v254 = vld [vmem:[#allocation8 + $0x138] sm:$0xff]
    %v255 = vld [vmem:[#allocation8 + $0x140] sm:$0xff]
    %v256 = vld [vmem:[#allocation8 + $0x148] sm:$0xff]
    %v257 = vld [vmem:[#allocation8 + $0x150] sm:$0xff]
    %v258 = vld [vmem:[#allocation8 + $0x158] sm:$0xff]
    %v259 = vld [vmem:[#allocation8 + $0x160] sm:$0xff]
    %v260 = vld [vmem:[#allocation8 + $0x168] sm:$0xff]
    %v261 = vld [vmem:[#allocation8 + $0x170] sm:$0xff]
    %v262 = vld [vmem:[#allocation8 + $0x178] sm:$0xff]
    %v263 = vld [vmem:[#allocation8 + $0x180] sm:$0xff]
    %v264 = vld [vmem:[#allocation8 + $0x188] sm:$0xff]
    %v265 = vld [vmem:[#allocation8 + $0x190] sm:$0xff]
    %v266 = vld [vmem:[#allocation8 + $0x198] sm:$0xff]
    %v267 = vld [vmem:[#allocation8 + $0x1a0] sm:$0xff]
    %v268 = vld [vmem:[#allocation8 + $0x1a8] sm:$0xff]
    %v269 = vld [vmem:[#allocation8 + $0x1b0] sm:$0xff]
    %v270 = vld [vmem:[#allocation8 + $0x1b8] sm:$0xff]
    %v271 = vld [vmem:[#allocation8 + $0x1c0] sm:$0xff]
    %v272 = vld [vmem:[#allocation8 + $0x1c8] sm:$0xff]
    %v273 = vld [vmem:[#allocation8 + $0x1d0] sm:$0xff]
    %v274 = vld [vmem:[#allocation8 + $0x1d8] sm:$0xff]
    %v275 = vld [vmem:[#allocation8 + $0x1e0] sm:$0xff]
    %v276 = vld [vmem:[#allocation8 + $0x1e8] sm:$0xff]
    %v277 = vld [vmem:[#allocation8 + $0x1f0] sm:$0xff]
    %v278 = vld [vmem:[#allocation8 + $0x1f8] sm:$0xff]
    %v279 = vld [vmem:[%s4] sm:$0xf]
    %v281 = vlaneseq
    %v282 = vshrl.u32 %v281, 7
    %v283 = vsub.s32 0, %v282
    %v284 = vrot.slane %v279, %v283
    %v285 = vlaneseq
    %v286 = vshrl.u32 %v285, 7
    %v287 = vsub.s32 1, %v286
    %v288 = vrot.slane %v279, %v287
    %v289 = vlaneseq
    %v290 = vshrl.u32 %v289, 7
    %v291 = vsub.s32 2, %v290
    %v292 = vrot.slane %v279, %v291
    %v293 = vlaneseq
    %v294 = vshrl.u32 %v293, 7
    %v295 = vsub.s32 3, %v294
    %v296 = vrot.slane %v279, %v295
    %301 = vmatprep.subr.mxu0 %v216
    %302 = vmatpush1.msra.mxu0 %v215
    %303 = vmatprep.subr.mxu0 %v220
    %304 = vmatpush1.msra.mxu0 %v219
    %305 = vmatprep.subr.mxu0 %v224
    %306 = vmatpush1.msra.mxu0 %v223
    %307 = vmatprep.subr.mxu0 %v228
    %308 = vmatpush1.msra.mxu0 %v227
    %309 = vmatprep.subr.mxu0 %v232
    %310 = vmatpush1.msra.mxu0 %v231
    %311 = vmatprep.subr.mxu0 %v236
    %312 = vmatpush1.msra.mxu0 %v235
    %313 = vmatprep.subr.mxu0 %v240
    %314 = vmatpush1.msra.mxu0 %v239
    %315 = vmatprep.subr.mxu0 %v244
    %316 = vmatpush1.msra.mxu0 %v243
    %317 = vmatprep.subr.mxu0 %v248
    %318 = vmatpush1.msra.mxu0 %v247
    %319 = vmatprep.subr.mxu0 %v252
    %320 = vmatpush1.msra.mxu0 %v251
    %321 = vmatprep.subr.mxu0 %v256
    %322 = vmatpush1.msra.mxu0 %v255
    %323 = vmatprep.subr.mxu0 %v260
    %324 = vmatpush1.msra.mxu0 %v259
    %325 = vmatprep.subr.mxu0 %v264
    %326 = vmatpush1.msra.mxu0 %v263
    %327 = vmatprep.subr.mxu0 %v268
    %328 = vmatpush1.msra.mxu0 %v267
    %329 = vmatprep.subr.mxu0 %v272
    %330 = vmatpush1.msra.mxu0 %v271
    %331 = vmatprep.subr.mxu0 %v276
    %332 = vmatpush1.msra.mxu0 %v275
    %333 = vmatprep.subr.mxu0 0.0
    %334 = vmatpush1.msra.mxu0 0.0
    %335 = vmatprep.subr.mxu0 0.0
    %336 = vmatpush1.msra.mxu0 0.0
    %337 = vmatprep.subr.mxu0 0.0
    %338 = vmatpush1.msra.mxu0 0.0
    %339 = vmatprep.subr.mxu0 0.0
    %340 = vmatpush1.msra.mxu0 0.0
    %341 = vmatprep.subr.mxu0 0.0
    %342 = vmatpush1.msra.mxu0 0.0
    %343 = vmatprep.subr.mxu0 0.0
    %344 = vmatpush1.msra.mxu0 0.0
    %345 = vmatprep.subr.mxu0 0.0
    %346 = vmatpush1.msra.mxu0 0.0
    %347 = vmatprep.subr.mxu0 0.0
    %348 = vmatpush1.msra.mxu0 0.0
    %349 = vmatprep.subr.mxu0 0.0
    %350 = vmatpush1.msra.mxu0 0.0
    %351 = vmatprep.subr.mxu0 0.0
    %352 = vmatpush1.msra.mxu0 0.0
    %353 = vmatprep.subr.mxu0 0.0
    %354 = vmatpush1.msra.mxu0 0.0
    %355 = vmatprep.subr.mxu0 0.0
    %356 = vmatpush1.msra.mxu0 0.0
    %357 = vmatprep.subr.mxu0 0.0
    %358 = vmatpush1.msra.mxu0 0.0
    %359 = vmatprep.subr.mxu0 0.0
    %360 = vmatpush1.msra.mxu0 0.0
    %361 = vmatprep.subr.mxu0 0.0
    %362 = vmatpush1.msra.mxu0 0.0
    %363 = vmatprep.subr.mxu0 0.0
    %364 = vmatpush1.msra.mxu0 0.0
    %365 = vmatprep.mubr.f32.mxu0 0.0
    %366 = vmatmul.mubr.f32.gmra.mrb[0].mxu0 %v207
    %v367 = vpop.f32.mrb[0].mxu0
    %v368 = vadd.f32 %v284, %v367
    %v369 = vpop.f32.mrb[0].mxu0
    %v370 = vadd.f32 %v288, %v369
    %371 = vmatprep.mubr.f32.mxu0 0.0
    %372 = vmatmul.mubr.f32.gmra.mrb[0].mxu0 %v208
    %v373 = vpop.f32.mrb[0].mxu0
    %v374 = vadd.f32 %v284, %v373
    %v375 = vpop.f32.mrb[0].mxu0
    %v376 = vadd.f32 %v288, %v375
    %377 = vmatprep.mubr.f32.mxu0 0.0
    %378 = vmatmul.mubr.f32.gmra.mrb[0].mxu0 %v209
    %v379 = vpop.f32.mrb[0].mxu0
    %v380 = vadd.f32 %v284, %v379
    %v381 = vpop.f32.mrb[0].mxu0
    %v382 = vadd.f32 %v288, %v381
    %383 = vmatprep.mubr.f32.mxu0 0.0
    %384 = vmatmul.mubr.f32.gmra.mrb[0].mxu0 %v210
    %v385 = vpop.f32.mrb[0].mxu0
    %v386 = vadd.f32 %v284, %v385
    %v387 = vpop.f32.mrb[0].mxu0
    %v388 = vadd.f32 %v288, %v387
    %389 = vmatprep.mubr.f32.mxu0 0.0
    %390 = vmatmul.mubr.f32.gmra.mrb[0].mxu0 %v211
    %v391 = vpop.f32.mrb[0].mxu0
    %v392 = vadd.f32 %v284, %v391
    %v393 = vpop.f32.mrb[0].mxu0
    %v394 = vadd.f32 %v288, %v393
    %395 = vmatprep.mubr.f32.mxu0 0.0
    %396 = vmatmul.mubr.f32.gmra.mrb[0].mxu0 %v212
    %v397 = vpop.f32.mrb[0].mxu0
    %v398 = vadd.f32 %v284, %v397
    %v399 = vpop.f32.mrb[0].mxu0
    %v400 = vadd.f32 %v288, %v399
    %401 = vmatprep.mubr.f32.mxu0 0.0
    %402 = vmatmul.mubr.f32.gmra.mrb[0].mxu0 %v213
    %v403 = vpop.f32.mrb[0].mxu0
    %v404 = vadd.f32 %v284, %v403
    %v405 = vpop.f32.mrb[0].mxu0
    %v406 = vadd.f32 %v288, %v405
    %407 = vmatprep.mubr.f32.mxu0 0.0
    %408 = vmatmul.mubr.f32.gmra.mrb[0].mxu0 %v214
    %v409 = vpop.f32.mrb[0].mxu0
    %v410 = vadd.f32 %v284, %v409
    %v411 = vpop.f32.mrb[0].mxu0
    %v412 = vadd.f32 %v288, %v411
    %413 = vdwg.mxu0
    %414 = vmatprep.subr.mxu0 %v218
    %415 = vmatpush1.msra.mxu0 %v217
    %416 = vmatprep.subr.mxu0 %v222
    %417 = vmatpush1.msra.mxu0 %v221
    %418 = vmatprep.subr.mxu0 %v226
    %419 = vmatpush1.msra.mxu0 %v225
    %420 = vmatprep.subr.mxu0 %v230
    %421 = vmatpush1.msra.mxu0 %v229
    %422 = vmatprep.subr.mxu0 %v234
    %423 = vmatpush1.msra.mxu0 %v233
    %424 = vmatprep.subr.mxu0 %v238
    %425 = vmatpush1.msra.mxu0 %v237
    %426 = vmatprep.subr.mxu0 %v242
    %427 = vmatpush1.msra.mxu0 %v241
    %428 = vmatprep.subr.mxu0 %v246
    %429 = vmatpush1.msra.mxu0 %v245
    %430 = vmatprep.subr.mxu0 %v250
    %431 = vmatpush1.msra.mxu0 %v249
    %432 = vmatprep.subr.mxu0 %v254
    %433 = vmatpush1.msra.mxu0 %v253
    %434 = vmatprep.subr.mxu0 %v258
    %435 = vmatpush1.msra.mxu0 %v257
    %436 = vmatprep.subr.mxu0 %v262
    %437 = vmatpush1.msra.mxu0 %v261
    %438 = vmatprep.subr.mxu0 %v266
    %439 = vmatpush1.msra.mxu0 %v265
    %440 = vmatprep.subr.mxu0 %v270
    %441 = vmatpush1.msra.mxu0 %v269
    %442 = vmatprep.subr.mxu0 %v274
    %443 = vmatpush1.msra.mxu0 %v273
    %444 = vmatprep.subr.mxu0 %v278
    %445 = vmatpush1.msra.mxu0 %v277
    %446 = vmatprep.subr.mxu0 0.0
    %447 = vmatpush1.msra.mxu0 0.0
    %448 = vmatprep.subr.mxu0 0.0
    %449 = vmatpush1.msra.mxu0 0.0
    %450 = vmatprep.subr.mxu0 0.0
    %451 = vmatpush1.msra.mxu0 0.0
    %452 = vmatprep.subr.mxu0 0.0
    %453 = vmatpush1.msra.mxu0 0.0
    %454 = vmatprep.subr.mxu0 0.0
    %455 = vmatpush1.msra.mxu0 0.0
    %456 = vmatprep.subr.mxu0 0.0
    %457 = vmatpush1.msra.mxu0 0.0
    %458 = vmatprep.subr.mxu0 0.0
    %459 = vmatpush1.msra.mxu0 0.0
    %460 = vmatprep.subr.mxu0 0.0
    %461 = vmatpush1.msra.mxu0 0.0
    %462 = vmatprep.subr.mxu0 0.0
    %463 = vmatpush1.msra.mxu0 0.0
    %464 = vmatprep.subr.mxu0 0.0
    %465 = vmatpush1.msra.mxu0 0.0
    %466 = vmatprep.subr.mxu0 0.0
    %467 = vmatpush1.msra.mxu0 0.0
    %468 = vmatprep.subr.mxu0 0.0
    %469 = vmatpush1.msra.mxu0 0.0
    %470 = vmatprep.subr.mxu0 0.0
    %471 = vmatpush1.msra.mxu0 0.0
    %472 = vmatprep.subr.mxu0 0.0
    %473 = vmatpush1.msra.mxu0 0.0
    %474 = vmatprep.subr.mxu0 0.0
    %475 = vmatpush1.msra.mxu0 0.0
    %476 = vmatprep.subr.mxu0 0.0
    %477 = vmatpush1.msra.mxu0 0.0
    %478 = vmatprep.mubr.f32.mxu0 0.0
    %479 = vmatmul.mubr.f32.gmra.mrb[0].mxu0 %v207
    %v480 = vpop.f32.mrb[0].mxu0
    %v481 = vadd.f32 %v292, %v480
    %v482 = vpop.f32.mrb[0].mxu0
    %v483 = vadd.f32 %v296, %v482
    %484 = vmatprep.mubr.f32.mxu0 0.0
    %485 = vmatmul.mubr.f32.gmra.mrb[0].mxu0 %v208
    %v486 = vpop.f32.mrb[0].mxu0
    %v487 = vadd.f32 %v292, %v486
    %v488 = vpop.f32.mrb[0].mxu0
    %v489 = vadd.f32 %v296, %v488
    %490 = vmatprep.mubr.f32.mxu0 0.0
    %491 = vmatmul.mubr.f32.gmra.mrb[0].mxu0 %v209
    %v492 = vpop.f32.mrb[0].mxu0
    %v493 = vadd.f32 %v292, %v492
    %v494 = vpop.f32.mrb[0].mxu0
    %v495 = vadd.f32 %v296, %v494
    %496 = vmatprep.mubr.f32.mxu0 0.0
    %497 = vmatmul.mubr.f32.gmra.mrb[0].mxu0 %v210
    %v498 = vpop.f32.mrb[0].mxu0
    %v499 = vadd.f32 %v292, %v498
    %v500 = vpop.f32.mrb[0].mxu0
    %v501 = vadd.f32 %v296, %v500
    %502 = vmatprep.mubr.f32.mxu0 0.0
    %503 = vmatmul.mubr.f32.gmra.mrb[0].mxu0 %v211
    %v504 = vpop.f32.mrb[0].mxu0
    %v505 = vadd.f32 %v292, %v504
    %v506 = vpop.f32.mrb[0].mxu0
    %v507 = vadd.f32 %v296, %v506
    %508 = vmatprep.mubr.f32.mxu0 0.0
    %509 = vmatmul.mubr.f32.gmra.mrb[0].mxu0 %v212
    %v510 = vpop.f32.mrb[0].mxu0
    %v511 = vadd.f32 %v292, %v510
    %v512 = vpop.f32.mrb[0].mxu0
    %v513 = vadd.f32 %v296, %v512
    %514 = vmatprep.mubr.f32.mxu0 0.0
    %515 = vmatmul.mubr.f32.gmra.mrb[0].mxu0 %v213
    %v516 = vpop.f32.mrb[0].mxu0
    %v517 = vadd.f32 %v292, %v516
    %v518 = vpop.f32.mrb[0].mxu0
    %v519 = vadd.f32 %v296, %v518
    %520 = vmatprep.mubr.f32.mxu0 0.0
    %521 = vmatmul.mubr.f32.gmra.mrb[0].mxu0 %v214
    %v522 = vpop.f32.mrb[0].mxu0
    %v523 = vadd.f32 %v292, %v522
    %v524 = vpop.f32.mrb[0].mxu0
    %v525 = vadd.f32 %v296, %v524
    %526 = vdwg.mxu0
    %527 = vst [vmem:[#allocation3] sm:$0xff] %v368
    %528 = vst [vmem:[#allocation3 + $0x8] sm:$0xff] %v370
    %529 = vst [vmem:[#allocation3 + $0x10] sm:$0xff] %v481
    %530 = vst [vmem:[#allocation3 + $0x18] sm:$0xff] %v483
    %531 = vst [vmem:[#allocation3 + $0x20] sm:$0xff] %v374
    %532 = vst [vmem:[#allocation3 + $0x28] sm:$0xff] %v376
    %533 = vst [vmem:[#allocation3 + $0x30] sm:$0xff] %v487
    %534 = vst [vmem:[#allocation3 + $0x38] sm:$0xff] %v489
    %535 = vst [vmem:[#allocation3 + $0x40] sm:$0xff] %v380
    %536 = vst [vmem:[#allocation3 + $0x48] sm:$0xff] %v382
    %537 = vst [vmem:[#allocation3 + $0x50] sm:$0xff] %v493
    %538 = vst [vmem:[#allocation3 + $0x58] sm:$0xff] %v495
    %539 = vst [vmem:[#allocation3 + $0x60] sm:$0xff] %v386
    %540 = vst [vmem:[#allocation3 + $0x68] sm:$0xff] %v388
    %541 = vst [vmem:[#allocation3 + $0x70] sm:$0xff] %v499
    %542 = vst [vmem:[#allocation3 + $0x78] sm:$0xff] %v501
    %543 = vst [vmem:[#allocation3 + $0x80] sm:$0xff] %v392
    %544 = vst [vmem:[#allocation3 + $0x88] sm:$0xff] %v394
    %545 = vst [vmem:[#allocation3 + $0x90] sm:$0xff] %v505
    %546 = vst [vmem:[#allocation3 + $0x98] sm:$0xff] %v507
    %547 = vst [vmem:[#allocation3 + $0xa0] sm:$0xff] %v398
    %548 = vst [vmem:[#allocation3 + $0xa8] sm:$0xff] %v400
    %549 = vst [vmem:[#allocation3 + $0xb0] sm:$0xff] %v511
    %550 = vst [vmem:[#allocation3 + $0xb8] sm:$0xff] %v513
    %551 = vst [vmem:[#allocation3 + $0xc0] sm:$0xff] %v404
    %552 = vst [vmem:[#allocation3 + $0xc8] sm:$0xff] %v406
    %553 = vst [vmem:[#allocation3 + $0xd0] sm:$0xff] %v517
    %554 = vst [vmem:[#allocation3 + $0xd8] sm:$0xff] %v519
    %555 = vst [vmem:[#allocation3 + $0xe0] sm:$0xff] %v410
    %556 = vst [vmem:[#allocation3 + $0xe8] sm:$0xff] %v412
    %557 = vst [vmem:[#allocation3 + $0xf0] sm:$0xff] %v523
    %558 = vst [vmem:[#allocation3 + $0xf8] sm:$0xff] %v525
    %v559 = vld [vmem:[#allocation3] sm:$0xff]
    %v560 = vld [vmem:[#allocation3 + $0x8] sm:$0xff]
    %v561 = vld [vmem:[#allocation3 + $0x10] sm:$0xff]
    %v562 = vld [vmem:[#allocation3 + $0x18] sm:$0xff]
    %v563 = vld [vmem:[#allocation9] sm:$0xff]
    %v564 = vld [vmem:[#allocation9 + $0x8] sm:$0xff]
    %v565 = vld [vmem:[#allocation9 + $0x10] sm:$0xff]
    %v566 = vld [vmem:[#allocation9 + $0x18] sm:$0xff]
    %v567 = vld [vmem:[#allocation9 + $0x20] sm:$0xff]
    %v568 = vld [vmem:[#allocation9 + $0x28] sm:$0xff]
    %v569 = vld [vmem:[#allocation9 + $0x30] sm:$0xff]
    %v570 = vld [vmem:[#allocation9 + $0x38] sm:$0xff]
    %v571 = vld [vmem:[#allocation9 + $0x40] sm:$0xff]
    %v572 = vld [vmem:[#allocation9 + $0x48] sm:$0xff]
    %v573 = vld [vmem:[#allocation9 + $0x50] sm:$0xff]
    %v574 = vld [vmem:[#allocation9 + $0x58] sm:$0xff]
    %v575 = vld [vmem:[#allocation9 + $0x60] sm:$0xff]
    %v576 = vld [vmem:[#allocation9 + $0x68] sm:$0xff]
    %v577 = vld [vmem:[#allocation9 + $0x70] sm:$0xff]
    %v578 = vld [vmem:[#allocation9 + $0x78] sm:$0xff]
    %v579 = vld [vmem:[#allocation9 + $0x80] sm:$0xff]
    %v580 = vld [vmem:[#allocation9 + $0x88] sm:$0xff]
    %v581 = vld [vmem:[#allocation9 + $0x90] sm:$0xff]
    %v582 = vld [vmem:[#allocation9 + $0x98] sm:$0xff]
    %v583 = vld [vmem:[#allocation9 + $0xa0] sm:$0xff]
    %v584 = vld [vmem:[#allocation9 + $0xa8] sm:$0xff]
    %v585 = vld [vmem:[#allocation9 + $0xb0] sm:$0xff]
    %v586 = vld [vmem:[#allocation9 + $0xb8] sm:$0xff]
    %v587 = vld [vmem:[#allocation9 + $0xc0] sm:$0xff]
    %v588 = vld [vmem:[#allocation9 + $0xc8] sm:$0xff]
    %v589 = vld [vmem:[#allocation9 + $0xd0] sm:$0xff]
    %v590 = vld [vmem:[#allocation9 + $0xd8] sm:$0xff]
    %v591 = vld [vmem:[#allocation9 + $0xe0] sm:$0xff]
    %v592 = vld [vmem:[#allocation9 + $0xe8] sm:$0xff]
    %v593 = vld [vmem:[#allocation9 + $0xf0] sm:$0xff]
    %v594 = vld [vmem:[#allocation9 + $0xf8] sm:$0xff]
    %v595 = vld [vmem:[#allocation9 + $0x100] sm:$0xff]
    %v596 = vld [vmem:[#allocation9 + $0x108] sm:$0xff]
    %v597 = vld [vmem:[#allocation9 + $0x110] sm:$0xff]
    %v598 = vld [vmem:[#allocation9 + $0x118] sm:$0xff]
    %v599 = vld [vmem:[#allocation9 + $0x120] sm:$0xff]
    %v600 = vld [vmem:[#allocation9 + $0x128] sm:$0xff]
    %v601 = vld [vmem:[#allocation9 + $0x130] sm:$0xff]
    %v602 = vld [vmem:[#allocation9 + $0x138] sm:$0xff]
    %v603 = vld [vmem:[#allocation9 + $0x140] sm:$0xff]
    %v604 = vld [vmem:[#allocation9 + $0x148] sm:$0xff]
    %v605 = vld [vmem:[#allocation9 + $0x150] sm:$0xff]
    %v606 = vld [vmem:[#allocation9 + $0x158] sm:$0xff]
    %v607 = vld [vmem:[#allocation9 + $0x160] sm:$0xff]
    %v608 = vld [vmem:[#allocation9 + $0x168] sm:$0xff]
    %v609 = vld [vmem:[#allocation9 + $0x170] sm:$0xff]
    %v610 = vld [vmem:[#allocation9 + $0x178] sm:$0xff]
    %v611 = vld [vmem:[#allocation9 + $0x180] sm:$0xff]
    %v612 = vld [vmem:[#allocation9 + $0x188] sm:$0xff]
    %v613 = vld [vmem:[#allocation9 + $0x190] sm:$0xff]
    %v614 = vld [vmem:[#allocation9 + $0x198] sm:$0xff]
    %v615 = vld [vmem:[#allocation9 + $0x1a0] sm:$0xff]
    %v616 = vld [vmem:[#allocation9 + $0x1a8] sm:$0xff]
    %v617 = vld [vmem:[#allocation9 + $0x1b0] sm:$0xff]
    %v618 = vld [vmem:[#allocation9 + $0x1b8] sm:$0xff]
    %v619 = vld [vmem:[#allocation9 + $0x1c0] sm:$0xff]
    %v620 = vld [vmem:[#allocation9 + $0x1c8] sm:$0xff]
    %v621 = vld [vmem:[#allocation9 + $0x1d0] sm:$0xff]
    %v622 = vld [vmem:[#allocation9 + $0x1d8] sm:$0xff]
    %v623 = vld [vmem:[#allocation9 + $0x1e0] sm:$0xff]
    %v624 = vld [vmem:[#allocation9 + $0x1e8] sm:$0xff]
    %v625 = vld [vmem:[#allocation9 + $0x1f0] sm:$0xff]
    %v626 = vld [vmem:[#allocation9 + $0x1f8] sm:$0xff]
    %627 = vmatprep.subr.mxu0 %v564
    %628 = vmatpush1.msra.mxu0 %v563
    %629 = vmatprep.subr.mxu0 %v568
    %630 = vmatpush1.msra.mxu0 %v567
    %631 = vmatprep.subr.mxu0 %v572
    %632 = vmatpush1.msra.mxu0 %v571
    %633 = vmatprep.subr.mxu0 %v576
    %634 = vmatpush1.msra.mxu0 %v575
    %635 = vmatprep.subr.mxu0 %v580
    %636 = vmatpush1.msra.mxu0 %v579
    %637 = vmatprep.subr.mxu0 %v584
    %638 = vmatpush1.msra.mxu0 %v583
    %639 = vmatprep.subr.mxu0 %v588
    %640 = vmatpush1.msra.mxu0 %v587
    %641 = vmatprep.subr.mxu0 %v592
    %642 = vmatpush1.msra.mxu0 %v591
    %643 = vmatprep.subr.mxu0 %v596
    %644 = vmatpush1.msra.mxu0 %v595
    %645 = vmatprep.subr.mxu0 %v600
    %646 = vmatpush1.msra.mxu0 %v599
    %647 = vmatprep.subr.mxu0 %v604
    %648 = vmatpush1.msra.mxu0 %v603
    %649 = vmatprep.subr.mxu0 %v608
    %650 = vmatpush1.msra.mxu0 %v607
    %651 = vmatprep.subr.mxu0 %v612
    %652 = vmatpush1.msra.mxu0 %v611
    %653 = vmatprep.subr.mxu0 %v616
    %654 = vmatpush1.msra.mxu0 %v615
    %655 = vmatprep.subr.mxu0 %v620
    %656 = vmatpush1.msra.mxu0 %v619
    %657 = vmatprep.subr.mxu0 %v624
    %658 = vmatpush1.msra.mxu0 %v623
    %659 = vmatprep.subr.mxu0 0.0
    %660 = vmatpush1.msra.mxu0 0.0
    %661 = vmatprep.subr.mxu0 0.0
    %662 = vmatpush1.msra.mxu0 0.0
    %663 = vmatprep.subr.mxu0 0.0
    %664 = vmatpush1.msra.mxu0 0.0
    %665 = vmatprep.subr.mxu0 0.0
    %666 = vmatpush1.msra.mxu0 0.0
    %667 = vmatprep.subr.mxu0 0.0
    %668 = vmatpush1.msra.mxu0 0.0
    %669 = vmatprep.subr.mxu0 0.0
    %670 = vmatpush1.msra.mxu0 0.0
    %671 = vmatprep.subr.mxu0 0.0
    %672 = vmatpush1.msra.mxu0 0.0
    %673 = vmatprep.subr.mxu0 0.0
    %674 = vmatpush1.msra.mxu0 0.0
    %675 = vmatprep.subr.mxu0 0.0
    %676 = vmatpush1.msra.mxu0 0.0
    %677 = vmatprep.subr.mxu0 0.0
    %678 = vmatpush1.msra.mxu0 0.0
    %679 = vmatprep.subr.mxu0 0.0
    %680 = vmatpush1.msra.mxu0 0.0
    %681 = vmatprep.subr.mxu0 0.0
    %682 = vmatpush1.msra.mxu0 0.0
    %683 = vmatprep.subr.mxu0 0.0
    %684 = vmatpush1.msra.mxu0 0.0
    %685 = vmatprep.subr.mxu0 0.0
    %686 = vmatpush1.msra.mxu0 0.0
    %687 = vmatprep.subr.mxu0 0.0
    %688 = vmatpush1.msra.mxu0 0.0
    %689 = vmatprep.subr.mxu0 0.0
    %690 = vmatpush1.msra.mxu0 0.0
    %691 = vmatprep.mubr.f32.mxu0 0.0
    %692 = vmatmul.mubr.f32.gmra.mrb[0].mxu0 0.0
    %v693 = vpop.f32.mrb[0].mxu0
    %v694 = vadd.f32 0.0, %v693
    %v695 = vpop.f32.mrb[0].mxu0
    %v696 = vadd.f32 0.0, %v695
    %697 = vdwg.mxu0
    %698 = vmatprep.subr.mxu0 %v566
    %699 = vmatpush1.msra.mxu0 %v565
    %700 = vmatprep.subr.mxu0 %v570
    %701 = vmatpush1.msra.mxu0 %v569
    %702 = vmatprep.subr.mxu0 %v574
    %703 = vmatpush1.msra.mxu0 %v573
    %704 = vmatprep.subr.mxu0 %v578
    %705 = vmatpush1.msra.mxu0 %v577
    %706 = vmatprep.subr.mxu0 %v582
    %707 = vmatpush1.msra.mxu0 %v581
    %708 = vmatprep.subr.mxu0 %v586
    %709 = vmatpush1.msra.mxu0 %v585
    %710 = vmatprep.subr.mxu0 %v590
    %711 = vmatpush1.msra.mxu0 %v589
    %712 = vmatprep.subr.mxu0 %v594
    %713 = vmatpush1.msra.mxu0 %v593
    %714 = vmatprep.subr.mxu0 %v598
    %715 = vmatpush1.msra.mxu0 %v597
    %716 = vmatprep.subr.mxu0 %v602
    %717 = vmatpush1.msra.mxu0 %v601
    %718 = vmatprep.subr.mxu0 %v606
    %719 = vmatpush1.msra.mxu0 %v605
    %720 = vmatprep.subr.mxu0 %v610
    %721 = vmatpush1.msra.mxu0 %v609
    %722 = vmatprep.subr.mxu0 %v614
    %723 = vmatpush1.msra.mxu0 %v613
    %724 = vmatprep.subr.mxu0 %v618
    %725 = vmatpush1.msra.mxu0 %v617
    %726 = vmatprep.subr.mxu0 %v622
    %727 = vmatpush1.msra.mxu0 %v621
    %728 = vmatprep.subr.mxu0 %v626
    %729 = vmatpush1.msra.mxu0 %v625
    %730 = vmatprep.subr.mxu0 0.0
    %731 = vmatpush1.msra.mxu0 0.0
    %732 = vmatprep.subr.mxu0 0.0
    %733 = vmatpush1.msra.mxu0 0.0
    %734 = vmatprep.subr.mxu0 0.0
    %735 = vmatpush1.msra.mxu0 0.0
    %736 = vmatprep.subr.mxu0 0.0
    %737 = vmatpush1.msra.mxu0 0.0
    %738 = vmatprep.subr.mxu0 0.0
    %739 = vmatpush1.msra.mxu0 0.0
    %740 = vmatprep.subr.mxu0 0.0
    %741 = vmatpush1.msra.mxu0 0.0
    %742 = vmatprep.subr.mxu0 0.0
    %743 = vmatpush1.msra.mxu0 0.0
    %744 = vmatprep.subr.mxu0 0.0
    %745 = vmatpush1.msra.mxu0 0.0
    %746 = vmatprep.subr.mxu0 0.0
    %747 = vmatpush1.msra.mxu0 0.0
    %748 = vmatprep.subr.mxu0 0.0
    %749 = vmatpush1.msra.mxu0 0.0
    %750 = vmatprep.subr.mxu0 0.0
    %751 = vmatpush1.msra.mxu0 0.0
    %752 = vmatprep.subr.mxu0 0.0
    %753 = vmatpush1.msra.mxu0 0.0
    %754 = vmatprep.subr.mxu0 0.0
    %755 = vmatpush1.msra.mxu0 0.0
    %756 = vmatprep.subr.mxu0 0.0
    %757 = vmatpush1.msra.mxu0 0.0
    %758 = vmatprep.subr.mxu0 0.0
    %759 = vmatpush1.msra.mxu0 0.0
    %760 = vmatprep.subr.mxu0 0.0
    %761 = vmatpush1.msra.mxu0 0.0
    %762 = vmatprep.mubr.f32.mxu0 0.0
    %763 = vmatmul.mubr.f32.gmra.mrb[0].mxu0 0.0
    %v764 = vpop.f32.mrb[0].mxu0
    %v765 = vadd.f32 0.0, %v764
    %v766 = vpop.f32.mrb[0].mxu0
    %v767 = vadd.f32 0.0, %v766
    %768 = vdwg.mxu0
    %v769 = vadd.f32 %v559, %v694
    %v770 = vadd.f32 %v560, %v696
    %v771 = vadd.f32 %v561, %v765
    %v772 = vadd.f32 %v562, %v767
    %v773 = vxor.u32 %v769, 2147483648
    %v774 = vmul.f32 %v773, 1.442695
    %v775 = vpow.pop %v774
    %v776 = vadd.f32 %v775, 1.0
    %v777 = vrcp.pop %v776
    %v778 = vmul.f32 1.0, %v777
    %v779 = vxor.u32 %v770, 2147483648
    %v780 = vmul.f32 %v779, 1.442695
    %v781 = vpow.pop %v780
    %v782 = vadd.f32 %v781, 1.0
    %v783 = vrcp.pop %v782
    %v784 = vmul.f32 1.0, %v783
    %v785 = vtanh.pop %v771
    %v786 = vxor.u32 %v772, 2147483648
    %v787 = vmul.f32 %v786, 1.442695
    %v788 = vpow.pop %v787
    %v789 = vadd.f32 %v788, 1.0
    %v790 = vrcp.pop %v789
    %v791 = vmul.f32 1.0, %v790
    %v792 = vmul.f32 %v784, 0.0
    %v793 = vmul.f32 %v778, %v785
    %v794 = vadd.f32 %v792, %v793
    %v795 = vtanh.pop %v794
    %v796 = vmul.f32 %v791, %v795
    %v797 = vld [vmem:[#allocation3 + $0x20] sm:$0xff]
    %v798 = vld [vmem:[#allocation3 + $0x28] sm:$0xff]
    %v799 = vld [vmem:[#allocation3 + $0x30] sm:$0xff]
    %v800 = vld [vmem:[#allocation3 + $0x38] sm:$0xff]
    %801 = vmatprep.subr.mxu0 %v564
    %802 = vmatpush1.msra.mxu0 %v563
    %803 = vmatprep.subr.mxu0 %v568
    %804 = vmatpush1.msra.mxu0 %v567
    %805 = vmatprep.subr.mxu0 %v572
    %806 = vmatpush1.msra.mxu0 %v571
    %807 = vmatprep.subr.mxu0 %v576
    %808 = vmatpush1.msra.mxu0 %v575
    %809 = vmatprep.subr.mxu0 %v580
    %810 = vmatpush1.msra.mxu0 %v579
    %811 = vmatprep.subr.mxu0 %v584
    %812 = vmatpush1.msra.mxu0 %v583
    %813 = vmatprep.subr.mxu0 %v588
    %814 = vmatpush1.msra.mxu0 %v587
    %815 = vmatprep.subr.mxu0 %v592
    %816 = vmatpush1.msra.mxu0 %v591
    %817 = vmatprep.subr.mxu0 %v596
    %818 = vmatpush1.msra.mxu0 %v595
    %819 = vmatprep.subr.mxu0 %v600
    %820 = vmatpush1.msra.mxu0 %v599
    %821 = vmatprep.subr.mxu0 %v604
    %822 = vmatpush1.msra.mxu0 %v603
    %823 = vmatprep.subr.mxu0 %v608
    %824 = vmatpush1.msra.mxu0 %v607
    %825 = vmatprep.subr.mxu0 %v612
    %826 = vmatpush1.msra.mxu0 %v611
    %827 = vmatprep.subr.mxu0 %v616
    %828 = vmatpush1.msra.mxu0 %v615
    %829 = vmatprep.subr.mxu0 %v620
    %830 = vmatpush1.msra.mxu0 %v619
    %831 = vmatprep.subr.mxu0 %v624
    %832 = vmatpush1.msra.mxu0 %v623
    %833 = vmatprep.subr.mxu0 0.0
    %834 = vmatpush1.msra.mxu0 0.0
    %835 = vmatprep.subr.mxu0 0.0
    %836 = vmatpush1.msra.mxu0 0.0
    %837 = vmatprep.subr.mxu0 0.0
    %838 = vmatpush1.msra.mxu0 0.0
    %839 = vmatprep.subr.mxu0 0.0
    %840 = vmatpush1.msra.mxu0 0.0
    %841 = vmatprep.subr.mxu0 0.0
    %842 = vmatpush1.msra.mxu0 0.0
    %843 = vmatprep.subr.mxu0 0.0
    %844 = vmatpush1.msra.mxu0 0.0
    %845 = vmatprep.subr.mxu0 0.0
    %846 = vmatpush1.msra.mxu0 0.0
    %847 = vmatprep.subr.mxu0 0.0
    %848 = vmatpush1.msra.mxu0 0.0
    %849 = vmatprep.subr.mxu0 0.0
    %850 = vmatpush1.msra.mxu0 0.0
    %851 = vmatprep.subr.mxu0 0.0
    %852 = vmatpush1.msra.mxu0 0.0
    %853 = vmatprep.subr.mxu0 0.0
    %854 = vmatpush1.msra.mxu0 0.0
    %855 = vmatprep.subr.mxu0 0.0
    %856 = vmatpush1.msra.mxu0 0.0
    %857 = vmatprep.subr.mxu0 0.0
    %858 = vmatpush1.msra.mxu0 0.0
    %859 = vmatprep.subr.mxu0 0.0
    %860 = vmatpush1.msra.mxu0 0.0
    %861 = vmatprep.subr.mxu0 0.0
    %862 = vmatpush1.msra.mxu0 0.0
    %863 = vmatprep.subr.mxu0 0.0
    %864 = vmatpush1.msra.mxu0 0.0
    %865 = vmatprep.mubr.f32.mxu0 0.0
    %866 = vmatmul.mubr.f32.gmra.mrb[0].mxu0 %v796
    %v867 = vpop.f32.mrb[0].mxu0
    %v868 = vadd.f32 0.0, %v867
    %v869 = vpop.f32.mrb[0].mxu0
    %v870 = vadd.f32 0.0, %v869
    %871 = vdwg.mxu0
    %872 = vmatprep.subr.mxu0 %v566
    %873 = vmatpush1.msra.mxu0 %v565
    %874 = vmatprep.subr.mxu0 %v570
    %875 = vmatpush1.msra.mxu0 %v569
    %876 = vmatprep.subr.mxu0 %v574
    %877 = vmatpush1.msra.mxu0 %v573
    %878 = vmatprep.subr.mxu0 %v578
    %879 = vmatpush1.msra.mxu0 %v577
    %880 = vmatprep.subr.mxu0 %v582
    %881 = vmatpush1.msra.mxu0 %v581
    %882 = vmatprep.subr.mxu0 %v586
    %883 = vmatpush1.msra.mxu0 %v585
    %884 = vmatprep.subr.mxu0 %v590
    %885 = vmatpush1.msra.mxu0 %v589
    %886 = vmatprep.subr.mxu0 %v594
    %887 = vmatpush1.msra.mxu0 %v593
    %888 = vmatprep.subr.mxu0 %v598
    %889 = vmatpush1.msra.mxu0 %v597
    %890 = vmatprep.subr.mxu0 %v602
    %891 = vmatpush1.msra.mxu0 %v601
    %892 = vmatprep.subr.mxu0 %v606
    %893 = vmatpush1.msra.mxu0 %v605
    %894 = vmatprep.subr.mxu0 %v610
    %895 = vmatpush1.msra.mxu0 %v609
    %896 = vmatprep.subr.mxu0 %v614
    %897 = vmatpush1.msra.mxu0 %v613
    %898 = vmatprep.subr.mxu0 %v618
    %899 = vmatpush1.msra.mxu0 %v617
    %900 = vmatprep.subr.mxu0 %v622
    %901 = vmatpush1.msra.mxu0 %v621
    %902 = vmatprep.subr.mxu0 %v626
    %903 = vmatpush1.msra.mxu0 %v625
    %904 = vmatprep.subr.mxu0 0.0
    %905 = vmatpush1.msra.mxu0 0.0
    %906 = vmatprep.subr.mxu0 0.0
    %907 = vmatpush1.msra.mxu0 0.0
    %908 = vmatprep.subr.mxu0 0.0
    %909 = vmatpush1.msra.mxu0 0.0
    %910 = vmatprep.subr.mxu0 0.0
    %911 = vmatpush1.msra.mxu0 0.0
    %912 = vmatprep.subr.mxu0 0.0
    %913 = vmatpush1.msra.mxu0 0.0
    %914 = vmatprep.subr.mxu0 0.0
    %915 = vmatpush1.msra.mxu0 0.0
    %916 = vmatprep.subr.mxu0 0.0
    %917 = vmatpush1.msra.mxu0 0.0
    %918 = vmatprep.subr.mxu0 0.0
    %919 = vmatpush1.msra.mxu0 0.0
    %920 = vmatprep.subr.mxu0 0.0
    %921 = vmatpush1.msra.mxu0 0.0
    %922 = vmatprep.subr.mxu0 0.0
    %923 = vmatpush1.msra.mxu0 0.0
    %924 = vmatprep.subr.mxu0 0.0
    %925 = vmatpush1.msra.mxu0 0.0
    %926 = vmatprep.subr.mxu0 0.0
    %927 = vmatpush1.msra.mxu0 0.0
    %928 = vmatprep.subr.mxu0 0.0
    %929 = vmatpush1.msra.mxu0 0.0
    %930 = vmatprep.subr.mxu0 0.0
    %931 = vmatpush1.msra.mxu0 0.0
    %932 = vmatprep.subr.mxu0 0.0
    %933 = vmatpush1.msra.mxu0 0.0
    %934 = vmatprep.subr.mxu0 0.0
    %935 = vmatpush1.msra.mxu0 0.0
    %936 = vmatprep.mubr.f32.mxu0 0.0
    %937 = vmatmul.mubr.f32.gmra.mrb[0].mxu0 %v796
    %v938 = vpop.f32.mrb[0].mxu0
    %v939 = vadd.f32 0.0, %v938
    %v940 = vpop.f32.mrb[0].mxu0
    %v941 = vadd.f32 0.0, %v940
    %942 = vdwg.mxu0
    %v943 = vadd.f32 %v797, %v868
    %v944 = vadd.f32 %v798, %v870
    %v945 = vadd.f32 %v799, %v939
    %v946 = vadd.f32 %v800, %v941
    %v947 = vxor.u32 %v943, 2147483648
    %v948 = vmul.f32 %v947, 1.442695
    %v949 = vpow.pop %v948
    %v950 = vadd.f32 %v949, 1.0
    %v951 = vrcp.pop %v950
    %v952 = vmul.f32 1.0, %v951
    %v953 = vxor.u32 %v944, 2147483648
    %v954 = vmul.f32 %v953, 1.442695
    %v955 = vpow.pop %v954
    %v956 = vadd.f32 %v955, 1.0
    %v957 = vrcp.pop %v956
    %v958 = vmul.f32 1.0, %v957
    %v959 = vtanh.pop %v945
    %v960 = vxor.u32 %v946, 2147483648
    %v961 = vmul.f32 %v960, 1.442695
    %v962 = vpow.pop %v961
    %v963 = vadd.f32 %v962, 1.0
    %v964 = vrcp.pop %v963
    %v965 = vmul.f32 1.0, %v964
    %v966 = vmul.f32 %v958, %v794
    %v967 = vmul.f32 %v952, %v959
    %v968 = vadd.f32 %v966, %v967
    %v969 = vtanh.pop %v968
    %v970 = vmul.f32 %v965, %v969
    %v971 = vld [vmem:[#allocation3 + $0x40] sm:$0xff]
    %v972 = vld [vmem:[#allocation3 + $0x48] sm:$0xff]
    %v973 = vld [vmem:[#allocation3 + $0x50] sm:$0xff]
    %v974 = vld [vmem:[#allocation3 + $0x58] sm:$0xff]
    %975 = vmatprep.subr.mxu0 %v564
    %976 = vmatpush1.msra.mxu0 %v563
    %977 = vmatprep.subr.mxu0 %v568
    %978 = vmatpush1.msra.mxu0 %v567
    %979 = vmatprep.subr.mxu0 %v572
    %980 = vmatpush1.msra.mxu0 %v571
    %981 = vmatprep.subr.mxu0 %v576
    %982 = vmatpush1.msra.mxu0 %v575
    %983 = vmatprep.subr.mxu0 %v580
    %984 = vmatpush1.msra.mxu0 %v579
    %985 = vmatprep.subr.mxu0 %v584
    %986 = vmatpush1.msra.mxu0 %v583
    %987 = vmatprep.subr.mxu0 %v588
    %988 = vmatpush1.msra.mxu0 %v587
    %989 = vmatprep.subr.mxu0 %v592
    %990 = vmatpush1.msra.mxu0 %v591
    %991 = vmatprep.subr.mxu0 %v596
    %992 = vmatpush1.msra.mxu0 %v595
    %993 = vmatprep.subr.mxu0 %v600
    %994 = vmatpush1.msra.mxu0 %v599
    %995 = vmatprep.subr.mxu0 %v604
    %996 = vmatpush1.msra.mxu0 %v603
    %997 = vmatprep.subr.mxu0 %v608
    %998 = vmatpush1.msra.mxu0 %v607
    %999 = vmatprep.subr.mxu0 %v612
    %1000 = vmatpush1.msra.mxu0 %v611
    %1001 = vmatprep.subr.mxu0 %v616
    %1002 = vmatpush1.msra.mxu0 %v615
    %1003 = vmatprep.subr.mxu0 %v620
    %1004 = vmatpush1.msra.mxu0 %v619
    %1005 = vmatprep.subr.mxu0 %v624
    %1006 = vmatpush1.msra.mxu0 %v623
    %1007 = vmatprep.subr.mxu0 0.0
    %1008 = vmatpush1.msra.mxu0 0.0
    %1009 = vmatprep.subr.mxu0 0.0
    %1010 = vmatpush1.msra.mxu0 0.0
    %1011 = vmatprep.subr.mxu0 0.0
    %1012 = vmatpush1.msra.mxu0 0.0
    %1013 = vmatprep.subr.mxu0 0.0
    %1014 = vmatpush1.msra.mxu0 0.0
    %1015 = vmatprep.subr.mxu0 0.0
    %1016 = vmatpush1.msra.mxu0 0.0
    %1017 = vmatprep.subr.mxu0 0.0
    %1018 = vmatpush1.msra.mxu0 0.0
    %1019 = vmatprep.subr.mxu0 0.0
    %1020 = vmatpush1.msra.mxu0 0.0
    %1021 = vmatprep.subr.mxu0 0.0
    %1022 = vmatpush1.msra.mxu0 0.0
    %1023 = vmatprep.subr.mxu0 0.0
    %1024 = vmatpush1.msra.mxu0 0.0
    %1025 = vmatprep.subr.mxu0 0.0
    %1026 = vmatpush1.msra.mxu0 0.0
    %1027 = vmatprep.subr.mxu0 0.0
    %1028 = vmatpush1.msra.mxu0 0.0
    %1029 = vmatprep.subr.mxu0 0.0
    %1030 = vmatpush1.msra.mxu0 0.0
    %1031 = vmatprep.subr.mxu0 0.0
    %1032 = vmatpush1.msra.mxu0 0.0
    %1033 = vmatprep.subr.mxu0 0.0
    %1034 = vmatpush1.msra.mxu0 0.0
    %1035 = vmatprep.subr.mxu0 0.0
    %1036 = vmatpush1.msra.mxu0 0.0
    %1037 = vmatprep.subr.mxu0 0.0
    %1038 = vmatpush1.msra.mxu0 0.0
    %1039 = vmatprep.mubr.f32.mxu0 0.0
    %1040 = vmatmul.mubr.f32.gmra.mrb[0].mxu0 %v970
    %v1041 = vpop.f32.mrb[0].mxu0
    %v1042 = vadd.f32 0.0, %v1041
    %v1043 = vpop.f32.mrb[0].mxu0
    %v1044 = vadd.f32 0.0, %v1043
    %1045 = vdwg.mxu0
    %1046 = vmatprep.subr.mxu0 %v566
    %1047 = vmatpush1.msra.mxu0 %v565
    %1048 = vmatprep.subr.mxu0 %v570
    %1049 = vmatpush1.msra.mxu0 %v569
    %1050 = vmatprep.subr.mxu0 %v574
    %1051 = vmatpush1.msra.mxu0 %v573
    %1052 = vmatprep.subr.mxu0 %v578
    %1053 = vmatpush1.msra.mxu0 %v577
    %1054 = vmatprep.subr.mxu0 %v582
    %1055 = vmatpush1.msra.mxu0 %v581
    %1056 = vmatprep.subr.mxu0 %v586
    %1057 = vmatpush1.msra.mxu0 %v585
    %1058 = vmatprep.subr.mxu0 %v590
    %1059 = vmatpush1.msra.mxu0 %v589
    %1060 = vmatprep.subr.mxu0 %v594
    %1061 = vmatpush1.msra.mxu0 %v593
    %1062 = vmatprep.subr.mxu0 %v598
    %1063 = vmatpush1.msra.mxu0 %v597
    %1064 = vmatprep.subr.mxu0 %v602
    %1065 = vmatpush1.msra.mxu0 %v601
    %1066 = vmatprep.subr.mxu0 %v606
    %1067 = vmatpush1.msra.mxu0 %v605
    %1068 = vmatprep.subr.mxu0 %v610
    %1069 = vmatpush1.msra.mxu0 %v609
    %1070 = vmatprep.subr.mxu0 %v614
    %1071 = vmatpush1.msra.mxu0 %v613
    %1072 = vmatprep.subr.mxu0 %v618
    %1073 = vmatpush1.msra.mxu0 %v617
    %1074 = vmatprep.subr.mxu0 %v622
    %1075 = vmatpush1.msra.mxu0 %v621
    %1076 = vmatprep.subr.mxu0 %v626
    %1077 = vmatpush1.msra.mxu0 %v625
    %1078 = vmatprep.subr.mxu0 0.0
    %1079 = vmatpush1.msra.mxu0 0.0
    %1080 = vmatprep.subr.mxu0 0.0
    %1081 = vmatpush1.msra.mxu0 0.0
    %1082 = vmatprep.subr.mxu0 0.0
    %1083 = vmatpush1.msra.mxu0 0.0
    %1084 = vmatprep.subr.mxu0 0.0
    %1085 = vmatpush1.msra.mxu0 0.0
    %1086 = vmatprep.subr.mxu0 0.0
    %1087 = vmatpush1.msra.mxu0 0.0
    %1088 = vmatprep.subr.mxu0 0.0
    %1089 = vmatpush1.msra.mxu0 0.0
    %1090 = vmatprep.subr.mxu0 0.0
    %1091 = vmatpush1.msra.mxu0 0.0
    %1092 = vmatprep.subr.mxu0 0.0
    %1093 = vmatpush1.msra.mxu0 0.0
    %1094 = vmatprep.subr.mxu0 0.0
    %1095 = vmatpush1.msra.mxu0 0.0
    %1096 = vmatprep.subr.mxu0 0.0
    %1097 = vmatpush1.msra.mxu0 0.0
    %1098 = vmatprep.subr.mxu0 0.0
    %1099 = vmatpush1.msra.mxu0 0.0
    %1100 = vmatprep.subr.mxu0 0.0
    %1101 = vmatpush1.msra.mxu0 0.0
    %1102 = vmatprep.subr.mxu0 0.0
    %1103 = vmatpush1.msra.mxu0 0.0
    %1104 = vmatprep.subr.mxu0 0.0
    %1105 = vmatpush1.msra.mxu0 0.0
    %1106 = vmatprep.subr.mxu0 0.0
    %1107 = vmatpush1.msra.mxu0 0.0
    %1108 = vmatprep.subr.mxu0 0.0
    %1109 = vmatpush1.msra.mxu0 0.0
    %1110 = vmatprep.mubr.f32.mxu0 0.0
    %1111 = vmatmul.mubr.f32.gmra.mrb[0].mxu0 %v970
    %v1112 = vpop.f32.mrb[0].mxu0
    %v1113 = vadd.f32 0.0, %v1112
    %v1114 = vpop.f32.mrb[0].mxu0
    %v1115 = vadd.f32 0.0, %v1114
    %1116 = vdwg.mxu0
    %v1117 = vadd.f32 %v971, %v1042
    %v1118 = vadd.f32 %v972, %v1044
    %v1119 = vadd.f32 %v973, %v1113
    %v1120 = vadd.f32 %v974, %v1115
    %v1121 = vxor.u32 %v1117, 2147483648
    %v1122 = vmul.f32 %v1121, 1.442695
    %v1123 = vpow.pop %v1122
    %v1124 = vadd.f32 %v1123, 1.0
    %v1125 = vrcp.pop %v1124
    %v1126 = vmul.f32 1.0, %v1125
    %v1127 = vxor.u32 %v1118, 2147483648
    %v1128 = vmul.f32 %v1127, 1.442695
    %v1129 = vpow.pop %v1128
    %v1130 = vadd.f32 %v1129, 1.0
    %v1131 = vrcp.pop %v1130
    %v1132 = vmul.f32 1.0, %v1131
    %v1133 = vtanh.pop %v1119
    %v1134 = vxor.u32 %v1120, 2147483648
    %v1135 = vmul.f32 %v1134, 1.442695
    %v1136 = vpow.pop %v1135
    %v1137 = vadd.f32 %v1136, 1.0
    %v1138 = vrcp.pop %v1137
    %v1139 = vmul.f32 1.0, %v1138
    %v1140 = vmul.f32 %v1132, %v968
    %v1141 = vmul.f32 %v1126, %v1133
    %v1142 = vadd.f32 %v1140, %v1141
    %v1143 = vtanh.pop %v1142
    %v1144 = vmul.f32 %v1139, %v1143
    %v1145 = vld [vmem:[#allocation3 + $0x60] sm:$0xff]
    %v1146 = vld [vmem:[#allocation3 + $0x68] sm:$0xff]
    %v1147 = vld [vmem:[#allocation3 + $0x70] sm:$0xff]
    %v1148 = vld [vmem:[#allocation3 + $0x78] sm:$0xff]
    %1149 = vmatprep.subr.mxu0 %v564
    %1150 = vmatpush1.msra.mxu0 %v563
    %1151 = vmatprep.subr.mxu0 %v568
    %1152 = vmatpush1.msra.mxu0 %v567
    %1153 = vmatprep.subr.mxu0 %v572
    %1154 = vmatpush1.msra.mxu0 %v571
    %1155 = vmatprep.subr.mxu0 %v576
    %1156 = vmatpush1.msra.mxu0 %v575
    %1157 = vmatprep.subr.mxu0 %v580
    %1158 = vmatpush1.msra.mxu0 %v579
    %1159 = vmatprep.subr.mxu0 %v584
    %1160 = vmatpush1.msra.mxu0 %v583
    %1161 = vmatprep.subr.mxu0 %v588
    %1162 = vmatpush1.msra.mxu0 %v587
    %1163 = vmatprep.subr.mxu0 %v592
    %1164 = vmatpush1.msra.mxu0 %v591
    %1165 = vmatprep.subr.mxu0 %v596
    %1166 = vmatpush1.msra.mxu0 %v595
    %1167 = vmatprep.subr.mxu0 %v600
    %1168 = vmatpush1.msra.mxu0 %v599
    %1169 = vmatprep.subr.mxu0 %v604
    %1170 = vmatpush1.msra.mxu0 %v603
    %1171 = vmatprep.subr.mxu0 %v608
    %1172 = vmatpush1.msra.mxu0 %v607
    %1173 = vmatprep.subr.mxu0 %v612
    %1174 = vmatpush1.msra.mxu0 %v611
    %1175 = vmatprep.subr.mxu0 %v616
    %1176 = vmatpush1.msra.mxu0 %v615
    %1177 = vmatprep.subr.mxu0 %v620
    %1178 = vmatpush1.msra.mxu0 %v619
    %1179 = vmatprep.subr.mxu0 %v624
    %1180 = vmatpush1.msra.mxu0 %v623
    %1181 = vmatprep.subr.mxu0 0.0
    %1182 = vmatpush1.msra.mxu0 0.0
    %1183 = vmatprep.subr.mxu0 0.0
    %1184 = vmatpush1.msra.mxu0 0.0
    %1185 = vmatprep.subr.mxu0 0.0
    %1186 = vmatpush1.msra.mxu0 0.0
    %1187 = vmatprep.subr.mxu0 0.0
    %1188 = vmatpush1.msra.mxu0 0.0
    %1189 = vmatprep.subr.mxu0 0.0
    %1190 = vmatpush1.msra.mxu0 0.0
    %1191 = vmatprep.subr.mxu0 0.0
    %1192 = vmatpush1.msra.mxu0 0.0
    %1193 = vmatprep.subr.mxu0 0.0
    %1194 = vmatpush1.msra.mxu0 0.0
    %1195 = vmatprep.subr.mxu0 0.0
    %1196 = vmatpush1.msra.mxu0 0.0
    %1197 = vmatprep.subr.mxu0 0.0
    %1198 = vmatpush1.msra.mxu0 0.0
    %1199 = vmatprep.subr.mxu0 0.0
    %1200 = vmatpush1.msra.mxu0 0.0
    %1201 = vmatprep.subr.mxu0 0.0
    %1202 = vmatpush1.msra.mxu0 0.0
    %1203 = vmatprep.subr.mxu0 0.0
    %1204 = vmatpush1.msra.mxu0 0.0
    %1205 = vmatprep.subr.mxu0 0.0
    %1206 = vmatpush1.msra.mxu0 0.0
    %1207 = vmatprep.subr.mxu0 0.0
    %1208 = vmatpush1.msra.mxu0 0.0
    %1209 = vmatprep.subr.mxu0 0.0
    %1210 = vmatpush1.msra.mxu0 0.0
    %1211 = vmatprep.subr.mxu0 0.0
    %1212 = vmatpush1.msra.mxu0 0.0
    %1213 = vmatprep.mubr.f32.mxu0 0.0
    %1214 = vmatmul.mubr.f32.gmra.mrb[0].mxu0 %v1144
    %v1215 = vpop.f32.mrb[0].mxu0
    %v1216 = vadd.f32 0.0, %v1215
    %v1217 = vpop.f32.mrb[0].mxu0
    %v1218 = vadd.f32 0.0, %v1217
    %1219 = vdwg.mxu0
    %1220 = vmatprep.subr.mxu0 %v566
    %1221 = vmatpush1.msra.mxu0 %v565
    %1222 = vmatprep.subr.mxu0 %v570
    %1223 = vmatpush1.msra.mxu0 %v569
    %1224 = vmatprep.subr.mxu0 %v574
    %1225 = vmatpush1.msra.mxu0 %v573
    %1226 = vmatprep.subr.mxu0 %v578
    %1227 = vmatpush1.msra.mxu0 %v577
    %1228 = vmatprep.subr.mxu0 %v582
    %1229 = vmatpush1.msra.mxu0 %v581
    %1230 = vmatprep.subr.mxu0 %v586
    %1231 = vmatpush1.msra.mxu0 %v585
    %1232 = vmatprep.subr.mxu0 %v590
    %1233 = vmatpush1.msra.mxu0 %v589
    %1234 = vmatprep.subr.mxu0 %v594
    %1235 = vmatpush1.msra.mxu0 %v593
    %1236 = vmatprep.subr.mxu0 %v598
    %1237 = vmatpush1.msra.mxu0 %v597
    %1238 = vmatprep.subr.mxu0 %v602
    %1239 = vmatpush1.msra.mxu0 %v601
    %1240 = vmatprep.subr.mxu0 %v606
    %1241 = vmatpush1.msra.mxu0 %v605
    %1242 = vmatprep.subr.mxu0 %v610
    %1243 = vmatpush1.msra.mxu0 %v609
    %1244 = vmatprep.subr.mxu0 %v614
    %1245 = vmatpush1.msra.mxu0 %v613
    %1246 = vmatprep.subr.mxu0 %v618
    %1247 = vmatpush1.msra.mxu0 %v617
    %1248 = vmatprep.subr.mxu0 %v622
    %1249 = vmatpush1.msra.mxu0 %v621
    %1250 = vmatprep.subr.mxu0 %v626
    %1251 = vmatpush1.msra.mxu0 %v625
    %1252 = vmatprep.subr.mxu0 0.0
    %1253 = vmatpush1.msra.mxu0 0.0
    %1254 = vmatprep.subr.mxu0 0.0
    %1255 = vmatpush1.msra.mxu0 0.0
    %1256 = vmatprep.subr.mxu0 0.0
    %1257 = vmatpush1.msra.mxu0 0.0
    %1258 = vmatprep.subr.mxu0 0.0
    %1259 = vmatpush1.msra.mxu0 0.0
    %1260 = vmatprep.subr.mxu0 0.0
    %1261 = vmatpush1.msra.mxu0 0.0
    %1262 = vmatprep.subr.mxu0 0.0
    %1263 = vmatpush1.msra.mxu0 0.0
    %1264 = vmatprep.subr.mxu0 0.0
    %1265 = vmatpush1.msra.mxu0 0.0
    %1266 = vmatprep.subr.mxu0 0.0
    %1267 = vmatpush1.msra.mxu0 0.0
    %1268 = vmatprep.subr.mxu0 0.0
    %1269 = vmatpush1.msra.mxu0 0.0
    %1270 = vmatprep.subr.mxu0 0.0
    %1271 = vmatpush1.msra.mxu0 0.0
    %1272 = vmatprep.subr.mxu0 0.0
    %1273 = vmatpush1.msra.mxu0 0.0
    %1274 = vmatprep.subr.mxu0 0.0
    %1275 = vmatpush1.msra.mxu0 0.0
    %1276 = vmatprep.subr.mxu0 0.0
    %1277 = vmatpush1.msra.mxu0 0.0
    %1278 = vmatprep.subr.mxu0 0.0
    %1279 = vmatpush1.msra.mxu0 0.0
    %1280 = vmatprep.subr.mxu0 0.0
    %1281 = vmatpush1.msra.mxu0 0.0
    %1282 = vmatprep.subr.mxu0 0.0
    %1283 = vmatpush1.msra.mxu0 0.0
    %1284 = vmatprep.mubr.f32.mxu0 0.0
    %1285 = vmatmul.mubr.f32.gmra.mrb[0].mxu0 %v1144
    %v1286 = vpop.f32.mrb[0].mxu0
    %v1287 = vadd.f32 0.0, %v1286
    %v1288 = vpop.f32.mrb[0].mxu0
    %v1289 = vadd.f32 0.0, %v1288
    %1290 = vdwg.mxu0
    %v1291 = vadd.f32 %v1145, %v1216
    %v1292 = vadd.f32 %v1146, %v1218
    %v1293 = vadd.f32 %v1147, %v1287
    %v1294 = vadd.f32 %v1148, %v1289
    %v1295 = vxor.u32 %v1291, 2147483648
    %v1296 = vmul.f32 %v1295, 1.442695
    %v1297 = vpow.pop %v1296
    %v1298 = vadd.f32 %v1297, 1.0
    %v1299 = vrcp.pop %v1298
    %v1300 = vmul.f32 1.0, %v1299
    %v1301 = vxor.u32 %v1292, 2147483648
    %v1302 = vmul.f32 %v1301, 1.442695
    %v1303 = vpow.pop %v1302
    %v1304 = vadd.f32 %v1303, 1.0
    %v1305 = vrcp.pop %v1304
    %v1306 = vmul.f32 1.0, %v1305
    %v1307 = vtanh.pop %v1293
    %v1308 = vxor.u32 %v1294, 2147483648
    %v1309 = vmul.f32 %v1308, 1.442695
    %v1310 = vpow.pop %v1309
    %v1311 = vadd.f32 %v1310, 1.0
    %v1312 = vrcp.pop %v1311
    %v1313 = vmul.f32 1.0, %v1312
    %v1314 = vmul.f32 %v1306, %v1142
    %v1315 = vmul.f32 %v1300, %v1307
    %v1316 = vadd.f32 %v1314, %v1315
    %v1317 = vtanh.pop %v1316
    %v1318 = vmul.f32 %v1313, %v1317
    %v1319 = vld [vmem:[#allocation3 + $0x80] sm:$0xff]
    %v1320 = vld [vmem:[#allocation3 + $0x88] sm:$0xff]
    %v1321 = vld [vmem:[#allocation3 + $0x90] sm:$0xff]
    %v1322 = vld [vmem:[#allocation3 + $0x98] sm:$0xff]
    %1323 = vmatprep.subr.mxu0 %v564
    %1324 = vmatpush1.msra.mxu0 %v563
    %1325 = vmatprep.subr.mxu0 %v568
    %1326 = vmatpush1.msra.mxu0 %v567
    %1327 = vmatprep.subr.mxu0 %v572
    %1328 = vmatpush1.msra.mxu0 %v571
    %1329 = vmatprep.subr.mxu0 %v576
    %1330 = vmatpush1.msra.mxu0 %v575
    %1331 = vmatprep.subr.mxu0 %v580
    %1332 = vmatpush1.msra.mxu0 %v579
    %1333 = vmatprep.subr.mxu0 %v584
    %1334 = vmatpush1.msra.mxu0 %v583
    %1335 = vmatprep.subr.mxu0 %v588
    %1336 = vmatpush1.msra.mxu0 %v587
    %1337 = vmatprep.subr.mxu0 %v592
    %1338 = vmatpush1.msra.mxu0 %v591
    %1339 = vmatprep.subr.mxu0 %v596
    %1340 = vmatpush1.msra.mxu0 %v595
    %1341 = vmatprep.subr.mxu0 %v600
    %1342 = vmatpush1.msra.mxu0 %v599
    %1343 = vmatprep.subr.mxu0 %v604
    %1344 = vmatpush1.msra.mxu0 %v603
    %1345 = vmatprep.subr.mxu0 %v608
    %1346 = vmatpush1.msra.mxu0 %v607
    %1347 = vmatprep.subr.mxu0 %v612
    %1348 = vmatpush1.msra.mxu0 %v611
    %1349 = vmatprep.subr.mxu0 %v616
    %1350 = vmatpush1.msra.mxu0 %v615
    %1351 = vmatprep.subr.mxu0 %v620
    %1352 = vmatpush1.msra.mxu0 %v619
    %1353 = vmatprep.subr.mxu0 %v624
    %1354 = vmatpush1.msra.mxu0 %v623
    %1355 = vmatprep.subr.mxu0 0.0
    %1356 = vmatpush1.msra.mxu0 0.0
    %1357 = vmatprep.subr.mxu0 0.0
    %1358 = vmatpush1.msra.mxu0 0.0
    %1359 = vmatprep.subr.mxu0 0.0
    %1360 = vmatpush1.msra.mxu0 0.0
    %1361 = vmatprep.subr.mxu0 0.0
    %1362 = vmatpush1.msra.mxu0 0.0
    %1363 = vmatprep.subr.mxu0 0.0
    %1364 = vmatpush1.msra.mxu0 0.0
    %1365 = vmatprep.subr.mxu0 0.0
    %1366 = vmatpush1.msra.mxu0 0.0
    %1367 = vmatprep.subr.mxu0 0.0
    %1368 = vmatpush1.msra.mxu0 0.0
    %1369 = vmatprep.subr.mxu0 0.0
    %1370 = vmatpush1.msra.mxu0 0.0
    %1371 = vmatprep.subr.mxu0 0.0
    %1372 = vmatpush1.msra.mxu0 0.0
    %1373 = vmatprep.subr.mxu0 0.0
    %1374 = vmatpush1.msra.mxu0 0.0
    %1375 = vmatprep.subr.mxu0 0.0
    %1376 = vmatpush1.msra.mxu0 0.0
    %1377 = vmatprep.subr.mxu0 0.0
    %1378 = vmatpush1.msra.mxu0 0.0
    %1379 = vmatprep.subr.mxu0 0.0
    %1380 = vmatpush1.msra.mxu0 0.0
    %1381 = vmatprep.subr.mxu0 0.0
    %1382 = vmatpush1.msra.mxu0 0.0
    %1383 = vmatprep.subr.mxu0 0.0
    %1384 = vmatpush1.msra.mxu0 0.0
    %1385 = vmatprep.subr.mxu0 0.0
    %1386 = vmatpush1.msra.mxu0 0.0
    %1387 = vmatprep.mubr.f32.mxu0 0.0
    %1388 = vmatmul.mubr.f32.gmra.mrb[0].mxu0 %v1318
    %v1389 = vpop.f32.mrb[0].mxu0
    %v1390 = vadd.f32 0.0, %v1389
    %v1391 = vpop.f32.mrb[0].mxu0
    %v1392 = vadd.f32 0.0, %v1391
    %1393 = vdwg.mxu0
    %1394 = vmatprep.subr.mxu0 %v566
    %1395 = vmatpush1.msra.mxu0 %v565
    %1396 = vmatprep.subr.mxu0 %v570
    %1397 = vmatpush1.msra.mxu0 %v569
    %1398 = vmatprep.subr.mxu0 %v574
    %1399 = vmatpush1.msra.mxu0 %v573
    %1400 = vmatprep.subr.mxu0 %v578
    %1401 = vmatpush1.msra.mxu0 %v577
    %1402 = vmatprep.subr.mxu0 %v582
    %1403 = vmatpush1.msra.mxu0 %v581
    %1404 = vmatprep.subr.mxu0 %v586
    %1405 = vmatpush1.msra.mxu0 %v585
    %1406 = vmatprep.subr.mxu0 %v590
    %1407 = vmatpush1.msra.mxu0 %v589
    %1408 = vmatprep.subr.mxu0 %v594
    %1409 = vmatpush1.msra.mxu0 %v593
    %1410 = vmatprep.subr.mxu0 %v598
    %1411 = vmatpush1.msra.mxu0 %v597
    %1412 = vmatprep.subr.mxu0 %v602
    %1413 = vmatpush1.msra.mxu0 %v601
    %1414 = vmatprep.subr.mxu0 %v606
    %1415 = vmatpush1.msra.mxu0 %v605
    %1416 = vmatprep.subr.mxu0 %v610
    %1417 = vmatpush1.msra.mxu0 %v609
    %1418 = vmatprep.subr.mxu0 %v614
    %1419 = vmatpush1.msra.mxu0 %v613
    %1420 = vmatprep.subr.mxu0 %v618
    %1421 = vmatpush1.msra.mxu0 %v617
    %1422 = vmatprep.subr.mxu0 %v622
    %1423 = vmatpush1.msra.mxu0 %v621
    %1424 = vmatprep.subr.mxu0 %v626
    %1425 = vmatpush1.msra.mxu0 %v625
    %1426 = vmatprep.subr.mxu0 0.0
    %1427 = vmatpush1.msra.mxu0 0.0
    %1428 = vmatprep.subr.mxu0 0.0
    %1429 = vmatpush1.msra.mxu0 0.0
    %1430 = vmatprep.subr.mxu0 0.0
    %1431 = vmatpush1.msra.mxu0 0.0
    %1432 = vmatprep.subr.mxu0 0.0
    %1433 = vmatpush1.msra.mxu0 0.0
    %1434 = vmatprep.subr.mxu0 0.0
    %1435 = vmatpush1.msra.mxu0 0.0
    %1436 = vmatprep.subr.mxu0 0.0
    %1437 = vmatpush1.msra.mxu0 0.0
    %1438 = vmatprep.subr.mxu0 0.0
    %1439 = vmatpush1.msra.mxu0 0.0
    %1440 = vmatprep.subr.mxu0 0.0
    %1441 = vmatpush1.msra.mxu0 0.0
    %1442 = vmatprep.subr.mxu0 0.0
    %1443 = vmatpush1.msra.mxu0 0.0
    %1444 = vmatprep.subr.mxu0 0.0
    %1445 = vmatpush1.msra.mxu0 0.0
    %1446 = vmatprep.subr.mxu0 0.0
    %1447 = vmatpush1.msra.mxu0 0.0
    %1448 = vmatprep.subr.mxu0 0.0
    %1449 = vmatpush1.msra.mxu0 0.0
    %1450 = vmatprep.subr.mxu0 0.0
    %1451 = vmatpush1.msra.mxu0 0.0
    %1452 = vmatprep.subr.mxu0 0.0
    %1453 = vmatpush1.msra.mxu0 0.0
    %1454 = vmatprep.subr.mxu0 0.0
    %1455 = vmatpush1.msra.mxu0 0.0
    %1456 = vmatprep.subr.mxu0 0.0
    %1457 = vmatpush1.msra.mxu0 0.0
    %1458 = vmatprep.mubr.f32.mxu0 0.0
    %1459 = vmatmul.mubr.f32.gmra.mrb[0].mxu0 %v1318
    %v1460 = vpop.f32.mrb[0].mxu0
    %v1461 = vadd.f32 0.0, %v1460
    %v1462 = vpop.f32.mrb[0].mxu0
    %v1463 = vadd.f32 0.0, %v1462
    %1464 = vdwg.mxu0
    %v1465 = vadd.f32 %v1319, %v1390
    %v1466 = vadd.f32 %v1320, %v1392
    %v1467 = vadd.f32 %v1321, %v1461
    %v1468 = vadd.f32 %v1322, %v1463
    %v1469 = vxor.u32 %v1465, 2147483648
    %v1470 = vmul.f32 %v1469, 1.442695
    %v1471 = vpow.pop %v1470
    %v1472 = vadd.f32 %v1471, 1.0
    %v1473 = vrcp.pop %v1472
    %v1474 = vmul.f32 1.0, %v1473
    %v1475 = vxor.u32 %v1466, 2147483648
    %v1476 = vmul.f32 %v1475, 1.442695
    %v1477 = vpow.pop %v1476
    %v1478 = vadd.f32 %v1477, 1.0
    %v1479 = vrcp.pop %v1478
    %v1480 = vmul.f32 1.0, %v1479
    %v1481 = vtanh.pop %v1467
    %v1482 = vxor.u32 %v1468, 2147483648
    %v1483 = vmul.f32 %v1482, 1.442695
    %v1484 = vpow.pop %v1483
    %v1485 = vadd.f32 %v1484, 1.0
    %v1486 = vrcp.pop %v1485
    %v1487 = vmul.f32 1.0, %v1486
    %v1488 = vmul.f32 %v1480, %v1316
    %v1489 = vmul.f32 %v1474, %v1481
    %v1490 = vadd.f32 %v1488, %v1489
    %v1491 = vtanh.pop %v1490
    %v1492 = vmul.f32 %v1487, %v1491
    %v1493 = vld [vmem:[#allocation3 + $0xa0] sm:$0xff]
    %v1494 = vld [vmem:[#allocation3 + $0xa8] sm:$0xff]
    %v1495 = vld [vmem:[#allocation3 + $0xb0] sm:$0xff]
    %v1496 = vld [vmem:[#allocation3 + $0xb8] sm:$0xff]
    %1497 = vmatprep.subr.mxu0 %v564
    %1498 = vmatpush1.msra.mxu0 %v563
    %1499 = vmatprep.subr.mxu0 %v568
    %1500 = vmatpush1.msra.mxu0 %v567
    %1501 = vmatprep.subr.mxu0 %v572
    %1502 = vmatpush1.msra.mxu0 %v571
    %1503 = vmatprep.subr.mxu0 %v576
    %1504 = vmatpush1.msra.mxu0 %v575
    %1505 = vmatprep.subr.mxu0 %v580
    %1506 = vmatpush1.msra.mxu0 %v579
    %1507 = vmatprep.subr.mxu0 %v584
    %1508 = vmatpush1.msra.mxu0 %v583
    %1509 = vmatprep.subr.mxu0 %v588
    %1510 = vmatpush1.msra.mxu0 %v587
    %1511 = vmatprep.subr.mxu0 %v592
    %1512 = vmatpush1.msra.mxu0 %v591
    %1513 = vmatprep.subr.mxu0 %v596
    %1514 = vmatpush1.msra.mxu0 %v595
    %1515 = vmatprep.subr.mxu0 %v600
    %1516 = vmatpush1.msra.mxu0 %v599
    %1517 = vmatprep.subr.mxu0 %v604
    %1518 = vmatpush1.msra.mxu0 %v603
    %1519 = vmatprep.subr.mxu0 %v608
    %1520 = vmatpush1.msra.mxu0 %v607
    %1521 = vmatprep.subr.mxu0 %v612
    %1522 = vmatpush1.msra.mxu0 %v611
    %1523 = vmatprep.subr.mxu0 %v616
    %1524 = vmatpush1.msra.mxu0 %v615
    %1525 = vmatprep.subr.mxu0 %v620
    %1526 = vmatpush1.msra.mxu0 %v619
    %1527 = vmatprep.subr.mxu0 %v624
    %1528 = vmatpush1.msra.mxu0 %v623
    %1529 = vmatprep.subr.mxu0 0.0
    %1530 = vmatpush1.msra.mxu0 0.0
    %1531 = vmatprep.subr.mxu0 0.0
    %1532 = vmatpush1.msra.mxu0 0.0
    %1533 = vmatprep.subr.mxu0 0.0
    %1534 = vmatpush1.msra.mxu0 0.0
    %1535 = vmatprep.subr.mxu0 0.0
    %1536 = vmatpush1.msra.mxu0 0.0
    %1537 = vmatprep.subr.mxu0 0.0
    %1538 = vmatpush1.msra.mxu0 0.0
    %1539 = vmatprep.subr.mxu0 0.0
    %1540 = vmatpush1.msra.mxu0 0.0
    %1541 = vmatprep.subr.mxu0 0.0
    %1542 = vmatpush1.msra.mxu0 0.0
    %1543 = vmatprep.subr.mxu0 0.0
    %1544 = vmatpush1.msra.mxu0 0.0
    %1545 = vmatprep.subr.mxu0 0.0
    %1546 = vmatpush1.msra.mxu0 0.0
    %1547 = vmatprep.subr.mxu0 0.0
    %1548 = vmatpush1.msra.mxu0 0.0
    %1549 = vmatprep.subr.mxu0 0.0
    %1550 = vmatpush1.msra.mxu0 0.0
    %1551 = vmatprep.subr.mxu0 0.0
    %1552 = vmatpush1.msra.mxu0 0.0
    %1553 = vmatprep.subr.mxu0 0.0
    %1554 = vmatpush1.msra.mxu0 0.0
    %1555 = vmatprep.subr.mxu0 0.0
    %1556 = vmatpush1.msra.mxu0 0.0
    %1557 = vmatprep.subr.mxu0 0.0
    %1558 = vmatpush1.msra.mxu0 0.0
    %1559 = vmatprep.subr.mxu0 0.0
    %1560 = vmatpush1.msra.mxu0 0.0
    %1561 = vmatprep.mubr.f32.mxu0 0.0
    %1562 = vmatmul.mubr.f32.gmra.mrb[0].mxu0 %v1492
    %v1563 = vpop.f32.mrb[0].mxu0
    %v1564 = vadd.f32 0.0, %v1563
    %v1565 = vpop.f32.mrb[0].mxu0
    %v1566 = vadd.f32 0.0, %v1565
    %1567 = vdwg.mxu0
    %1568 = vmatprep.subr.mxu0 %v566
    %1569 = vmatpush1.msra.mxu0 %v565
    %1570 = vmatprep.subr.mxu0 %v570
    %1571 = vmatpush1.msra.mxu0 %v569
    %1572 = vmatprep.subr.mxu0 %v574
    %1573 = vmatpush1.msra.mxu0 %v573
    %1574 = vmatprep.subr.mxu0 %v578
    %1575 = vmatpush1.msra.mxu0 %v577
    %1576 = vmatprep.subr.mxu0 %v582
    %1577 = vmatpush1.msra.mxu0 %v581
    %1578 = vmatprep.subr.mxu0 %v586
    %1579 = vmatpush1.msra.mxu0 %v585
    %1580 = vmatprep.subr.mxu0 %v590
    %1581 = vmatpush1.msra.mxu0 %v589
    %1582 = vmatprep.subr.mxu0 %v594
    %1583 = vmatpush1.msra.mxu0 %v593
    %1584 = vmatprep.subr.mxu0 %v598
    %1585 = vmatpush1.msra.mxu0 %v597
    %1586 = vmatprep.subr.mxu0 %v602
    %1587 = vmatpush1.msra.mxu0 %v601
    %1588 = vmatprep.subr.mxu0 %v606
    %1589 = vmatpush1.msra.mxu0 %v605
    %1590 = vmatprep.subr.mxu0 %v610
    %1591 = vmatpush1.msra.mxu0 %v609
    %1592 = vmatprep.subr.mxu0 %v614
    %1593 = vmatpush1.msra.mxu0 %v613
    %1594 = vmatprep.subr.mxu0 %v618
    %1595 = vmatpush1.msra.mxu0 %v617
    %1596 = vmatprep.subr.mxu0 %v622
    %1597 = vmatpush1.msra.mxu0 %v621
    %1598 = vmatprep.subr.mxu0 %v626
    %1599 = vmatpush1.msra.mxu0 %v625
    %1600 = vmatprep.subr.mxu0 0.0
    %1601 = vmatpush1.msra.mxu0 0.0
    %1602 = vmatprep.subr.mxu0 0.0
    %1603 = vmatpush1.msra.mxu0 0.0
    %1604 = vmatprep.subr.mxu0 0.0
    %1605 = vmatpush1.msra.mxu0 0.0
    %1606 = vmatprep.subr.mxu0 0.0
    %1607 = vmatpush1.msra.mxu0 0.0
    %1608 = vmatprep.subr.mxu0 0.0
    %1609 = vmatpush1.msra.mxu0 0.0
    %1610 = vmatprep.subr.mxu0 0.0
    %1611 = vmatpush1.msra.mxu0 0.0
    %1612 = vmatprep.subr.mxu0 0.0
    %1613 = vmatpush1.msra.mxu0 0.0
    %1614 = vmatprep.subr.mxu0 0.0
    %1615 = vmatpush1.msra.mxu0 0.0
    %1616 = vmatprep.subr.mxu0 0.0
    %1617 = vmatpush1.msra.mxu0 0.0
    %1618 = vmatprep.subr.mxu0 0.0
    %1619 = vmatpush1.msra.mxu0 0.0
    %1620 = vmatprep.subr.mxu0 0.0
    %1621 = vmatpush1.msra.mxu0 0.0
    %1622 = vmatprep.subr.mxu0 0.0
    %1623 = vmatpush1.msra.mxu0 0.0
    %1624 = vmatprep.subr.mxu0 0.0
    %1625 = vmatpush1.msra.mxu0 0.0
    %1626 = vmatprep.subr.mxu0 0.0
    %1627 = vmatpush1.msra.mxu0 0.0
    %1628 = vmatprep.subr.mxu0 0.0
    %1629 = vmatpush1.msra.mxu0 0.0
    %1630 = vmatprep.subr.mxu0 0.0
    %1631 = vmatpush1.msra.mxu0 0.0
    %1632 = vmatprep.mubr.f32.mxu0 0.0
    %1633 = vmatmul.mubr.f32.gmra.mrb[0].mxu0 %v1492
    %v1634 = vpop.f32.mrb[0].mxu0
    %v1635 = vadd.f32 0.0, %v1634
    %v1636 = vpop.f32.mrb[0].mxu0
    %v1637 = vadd.f32 0.0, %v1636
    %1638 = vdwg.mxu0
    %v1639 = vadd.f32 %v1493, %v1564
    %v1640 = vadd.f32 %v1494, %v1566
    %v1641 = vadd.f32 %v1495, %v1635
    %v1642 = vadd.f32 %v1496, %v1637
    %v1643 = vxor.u32 %v1639, 2147483648
    %v1644 = vmul.f32 %v1643, 1.442695
    %v1645 = vpow.pop %v1644
    %v1646 = vadd.f32 %v1645, 1.0
    %v1647 = vrcp.pop %v1646
    %v1648 = vmul.f32 1.0, %v1647
    %v1649 = vxor.u32 %v1640, 2147483648
    %v1650 = vmul.f32 %v1649, 1.442695
    %v1651 = vpow.pop %v1650
    %v1652 = vadd.f32 %v1651, 1.0
    %v1653 = vrcp.pop %v1652
    %v1654 = vmul.f32 1.0, %v1653
    %v1655 = vtanh.pop %v1641
    %v1656 = vxor.u32 %v1642, 2147483648
    %v1657 = vmul.f32 %v1656, 1.442695
    %v1658 = vpow.pop %v1657
    %v1659 = vadd.f32 %v1658, 1.0
    %v1660 = vrcp.pop %v1659
    %v1661 = vmul.f32 1.0, %v1660
    %v1662 = vmul.f32 %v1654, %v1490
    %v1663 = vmul.f32 %v1648, %v1655
    %v1664 = vadd.f32 %v1662, %v1663
    %v1665 = vtanh.pop %v1664
    %v1666 = vmul.f32 %v1661, %v1665
    %v1667 = vld [vmem:[#allocation3 + $0xc0] sm:$0xff]
    %v1668 = vld [vmem:[#allocation3 + $0xc8] sm:$0xff]
    %v1669 = vld [vmem:[#allocation3 + $0xd0] sm:$0xff]
    %v1670 = vld [vmem:[#allocation3 + $0xd8] sm:$0xff]
    %1671 = vmatprep.subr.mxu0 %v564
    %1672 = vmatpush1.msra.mxu0 %v563
    %1673 = vmatprep.subr.mxu0 %v568
    %1674 = vmatpush1.msra.mxu0 %v567
    %1675 = vmatprep.subr.mxu0 %v572
    %1676 = vmatpush1.msra.mxu0 %v571
    %1677 = vmatprep.subr.mxu0 %v576
    %1678 = vmatpush1.msra.mxu0 %v575
    %1679 = vmatprep.subr.mxu0 %v580
    %1680 = vmatpush1.msra.mxu0 %v579
    %1681 = vmatprep.subr.mxu0 %v584
    %1682 = vmatpush1.msra.mxu0 %v583
    %1683 = vmatprep.subr.mxu0 %v588
    %1684 = vmatpush1.msra.mxu0 %v587
    %1685 = vmatprep.subr.mxu0 %v592
    %1686 = vmatpush1.msra.mxu0 %v591
    %1687 = vmatprep.subr.mxu0 %v596
    %1688 = vmatpush1.msra.mxu0 %v595
    %1689 = vmatprep.subr.mxu0 %v600
    %1690 = vmatpush1.msra.mxu0 %v599
    %1691 = vmatprep.subr.mxu0 %v604
    %1692 = vmatpush1.msra.mxu0 %v603
    %1693 = vmatprep.subr.mxu0 %v608
    %1694 = vmatpush1.msra.mxu0 %v607
    %1695 = vmatprep.subr.mxu0 %v612
    %1696 = vmatpush1.msra.mxu0 %v611
    %1697 = vmatprep.subr.mxu0 %v616
    %1698 = vmatpush1.msra.mxu0 %v615
    %1699 = vmatprep.subr.mxu0 %v620
    %1700 = vmatpush1.msra.mxu0 %v619
    %1701 = vmatprep.subr.mxu0 %v624
    %1702 = vmatpush1.msra.mxu0 %v623
    %1703 = vmatprep.subr.mxu0 0.0
    %1704 = vmatpush1.msra.mxu0 0.0
    %1705 = vmatprep.subr.mxu0 0.0
    %1706 = vmatpush1.msra.mxu0 0.0
    %1707 = vmatprep.subr.mxu0 0.0
    %1708 = vmatpush1.msra.mxu0 0.0
    %1709 = vmatprep.subr.mxu0 0.0
    %1710 = vmatpush1.msra.mxu0 0.0
    %1711 = vmatprep.subr.mxu0 0.0
    %1712 = vmatpush1.msra.mxu0 0.0
    %1713 = vmatprep.subr.mxu0 0.0
    %1714 = vmatpush1.msra.mxu0 0.0
    %1715 = vmatprep.subr.mxu0 0.0
    %1716 = vmatpush1.msra.mxu0 0.0
    %1717 = vmatprep.subr.mxu0 0.0
    %1718 = vmatpush1.msra.mxu0 0.0
    %1719 = vmatprep.subr.mxu0 0.0
    %1720 = vmatpush1.msra.mxu0 0.0
    %1721 = vmatprep.subr.mxu0 0.0
    %1722 = vmatpush1.msra.mxu0 0.0
    %1723 = vmatprep.subr.mxu0 0.0
    %1724 = vmatpush1.msra.mxu0 0.0
    %1725 = vmatprep.subr.mxu0 0.0
    %1726 = vmatpush1.msra.mxu0 0.0
    %1727 = vmatprep.subr.mxu0 0.0
    %1728 = vmatpush1.msra.mxu0 0.0
    %1729 = vmatprep.subr.mxu0 0.0
    %1730 = vmatpush1.msra.mxu0 0.0
    %1731 = vmatprep.subr.mxu0 0.0
    %1732 = vmatpush1.msra.mxu0 0.0
    %1733 = vmatprep.subr.mxu0 0.0
    %1734 = vmatpush1.msra.mxu0 0.0
    %1735 = vmatprep.mubr.f32.mxu0 0.0
    %1736 = vmatmul.mubr.f32.gmra.mrb[0].mxu0 %v1666
    %v1737 = vpop.f32.mrb[0].mxu0
    %v1738 = vadd.f32 0.0, %v1737
    %v1739 = vpop.f32.mrb[0].mxu0
    %v1740 = vadd.f32 0.0, %v1739
    %1741 = vdwg.mxu0
    %1742 = vmatprep.subr.mxu0 %v566
    %1743 = vmatpush1.msra.mxu0 %v565
    %1744 = vmatprep.subr.mxu0 %v570
    %1745 = vmatpush1.msra.mxu0 %v569
    %1746 = vmatprep.subr.mxu0 %v574
    %1747 = vmatpush1.msra.mxu0 %v573
    %1748 = vmatprep.subr.mxu0 %v578
    %1749 = vmatpush1.msra.mxu0 %v577
    %1750 = vmatprep.subr.mxu0 %v582
    %1751 = vmatpush1.msra.mxu0 %v581
    %1752 = vmatprep.subr.mxu0 %v586
    %1753 = vmatpush1.msra.mxu0 %v585
    %1754 = vmatprep.subr.mxu0 %v590
    %1755 = vmatpush1.msra.mxu0 %v589
    %1756 = vmatprep.subr.mxu0 %v594
    %1757 = vmatpush1.msra.mxu0 %v593
    %1758 = vmatprep.subr.mxu0 %v598
    %1759 = vmatpush1.msra.mxu0 %v597
    %1760 = vmatprep.subr.mxu0 %v602
    %1761 = vmatpush1.msra.mxu0 %v601
    %1762 = vmatprep.subr.mxu0 %v606
    %1763 = vmatpush1.msra.mxu0 %v605
    %1764 = vmatprep.subr.mxu0 %v610
    %1765 = vmatpush1.msra.mxu0 %v609
    %1766 = vmatprep.subr.mxu0 %v614
    %1767 = vmatpush1.msra.mxu0 %v613
    %1768 = vmatprep.subr.mxu0 %v618
    %1769 = vmatpush1.msra.mxu0 %v617
    %1770 = vmatprep.subr.mxu0 %v622
    %1771 = vmatpush1.msra.mxu0 %v621
    %1772 = vmatprep.subr.mxu0 %v626
    %1773 = vmatpush1.msra.mxu0 %v625
    %1774 = vmatprep.subr.mxu0 0.0
    %1775 = vmatpush1.msra.mxu0 0.0
    %1776 = vmatprep.subr.mxu0 0.0
    %1777 = vmatpush1.msra.mxu0 0.0
    %1778 = vmatprep.subr.mxu0 0.0
    %1779 = vmatpush1.msra.mxu0 0.0
    %1780 = vmatprep.subr.mxu0 0.0
    %1781 = vmatpush1.msra.mxu0 0.0
    %1782 = vmatprep.subr.mxu0 0.0
    %1783 = vmatpush1.msra.mxu0 0.0
    %1784 = vmatprep.subr.mxu0 0.0
    %1785 = vmatpush1.msra.mxu0 0.0
    %1786 = vmatprep.subr.mxu0 0.0
    %1787 = vmatpush1.msra.mxu0 0.0
    %1788 = vmatprep.subr.mxu0 0.0
    %1789 = vmatpush1.msra.mxu0 0.0
    %1790 = vmatprep.subr.mxu0 0.0
    %1791 = vmatpush1.msra.mxu0 0.0
    %1792 = vmatprep.subr.mxu0 0.0
    %1793 = vmatpush1.msra.mxu0 0.0
    %1794 = vmatprep.subr.mxu0 0.0
    %1795 = vmatpush1.msra.mxu0 0.0
    %1796 = vmatprep.subr.mxu0 0.0
    %1797 = vmatpush1.msra.mxu0 0.0
    %1798 = vmatprep.subr.mxu0 0.0
    %1799 = vmatpush1.msra.mxu0 0.0
    %1800 = vmatprep.subr.mxu0 0.0
    %1801 = vmatpush1.msra.mxu0 0.0
    %1802 = vmatprep.subr.mxu0 0.0
    %1803 = vmatpush1.msra.mxu0 0.0
    %1804 = vmatprep.subr.mxu0 0.0
    %1805 = vmatpush1.msra.mxu0 0.0
    %1806 = vmatprep.mubr.f32.mxu0 0.0
    %1807 = vmatmul.mubr.f32.gmra.mrb[0].mxu0 %v1666
    %v1808 = vpop.f32.mrb[0].mxu0
    %v1809 = vadd.f32 0.0, %v1808
    %v1810 = vpop.f32.mrb[0].mxu0
    %v1811 = vadd.f32 0.0, %v1810
    %1812 = vdwg.mxu0
    %v1813 = vadd.f32 %v1667, %v1738
    %v1814 = vadd.f32 %v1668, %v1740
    %v1815 = vadd.f32 %v1669, %v1809
    %v1816 = vadd.f32 %v1670, %v1811
    %v1817 = vxor.u32 %v1813, 2147483648
    %v1818 = vmul.f32 %v1817, 1.442695
    %v1819 = vpow.pop %v1818
    %v1820 = vadd.f32 %v1819, 1.0
    %v1821 = vrcp.pop %v1820
    %v1822 = vmul.f32 1.0, %v1821
    %v1823 = vxor.u32 %v1814, 2147483648
    %v1824 = vmul.f32 %v1823, 1.442695
    %v1825 = vpow.pop %v1824
    %v1826 = vadd.f32 %v1825, 1.0
    %v1827 = vrcp.pop %v1826
    %v1828 = vmul.f32 1.0, %v1827
    %v1829 = vtanh.pop %v1815
    %v1830 = vxor.u32 %v1816, 2147483648
    %v1831 = vmul.f32 %v1830, 1.442695
    %v1832 = vpow.pop %v1831
    %v1833 = vadd.f32 %v1832, 1.0
    %v1834 = vrcp.pop %v1833
    %v1835 = vmul.f32 1.0, %v1834
    %v1836 = vmul.f32 %v1828, %v1664
    %v1837 = vmul.f32 %v1822, %v1829
    %v1838 = vadd.f32 %v1836, %v1837
    %v1839 = vtanh.pop %v1838
    %v1840 = vmul.f32 %v1835, %v1839
    %v1841 = vld [vmem:[#allocation3 + $0xe0] sm:$0xff]
    %v1842 = vld [vmem:[#allocation3 + $0xe8] sm:$0xff]
    %v1843 = vld [vmem:[#allocation3 + $0xf0] sm:$0xff]
    %v1844 = vld [vmem:[#allocation3 + $0xf8] sm:$0xff]
    %1845 = vmatprep.subr.mxu0 %v564
    %1846 = vmatpush1.msra.mxu0 %v563
    %1847 = vmatprep.subr.mxu0 %v568
    %1848 = vmatpush1.msra.mxu0 %v567
    %1849 = vmatprep.subr.mxu0 %v572
    %1850 = vmatpush1.msra.mxu0 %v571
    %1851 = vmatprep.subr.mxu0 %v576
    %1852 = vmatpush1.msra.mxu0 %v575
    %1853 = vmatprep.subr.mxu0 %v580
    %1854 = vmatpush1.msra.mxu0 %v579
    %1855 = vmatprep.subr.mxu0 %v584
    %1856 = vmatpush1.msra.mxu0 %v583
    %1857 = vmatprep.subr.mxu0 %v588
    %1858 = vmatpush1.msra.mxu0 %v587
    %1859 = vmatprep.subr.mxu0 %v592
    %1860 = vmatpush1.msra.mxu0 %v591
    %1861 = vmatprep.subr.mxu0 %v596
    %1862 = vmatpush1.msra.mxu0 %v595
    %1863 = vmatprep.subr.mxu0 %v600
    %1864 = vmatpush1.msra.mxu0 %v599
    %1865 = vmatprep.subr.mxu0 %v604
    %1866 = vmatpush1.msra.mxu0 %v603
    %1867 = vmatprep.subr.mxu0 %v608
    %1868 = vmatpush1.msra.mxu0 %v607
    %1869 = vmatprep.subr.mxu0 %v612
    %1870 = vmatpush1.msra.mxu0 %v611
    %1871 = vmatprep.subr.mxu0 %v616
    %1872 = vmatpush1.msra.mxu0 %v615
    %1873 = vmatprep.subr.mxu0 %v620
    %1874 = vmatpush1.msra.mxu0 %v619
    %1875 = vmatprep.subr.mxu0 %v624
    %1876 = vmatpush1.msra.mxu0 %v623
    %1877 = vmatprep.subr.mxu0 0.0
    %1878 = vmatpush1.msra.mxu0 0.0
    %1879 = vmatprep.subr.mxu0 0.0
    %1880 = vmatpush1.msra.mxu0 0.0
    %1881 = vmatprep.subr.mxu0 0.0
    %1882 = vmatpush1.msra.mxu0 0.0
    %1883 = vmatprep.subr.mxu0 0.0
    %1884 = vmatpush1.msra.mxu0 0.0
    %1885 = vmatprep.subr.mxu0 0.0
    %1886 = vmatpush1.msra.mxu0 0.0
    %1887 = vmatprep.subr.mxu0 0.0
    %1888 = vmatpush1.msra.mxu0 0.0
    %1889 = vmatprep.subr.mxu0 0.0
    %1890 = vmatpush1.msra.mxu0 0.0
    %1891 = vmatprep.subr.mxu0 0.0
    %1892 = vmatpush1.msra.mxu0 0.0
    %1893 = vmatprep.subr.mxu0 0.0
    %1894 = vmatpush1.msra.mxu0 0.0
    %1895 = vmatprep.subr.mxu0 0.0
    %1896 = vmatpush1.msra.mxu0 0.0
    %1897 = vmatprep.subr.mxu0 0.0
    %1898 = vmatpush1.msra.mxu0 0.0
    %1899 = vmatprep.subr.mxu0 0.0
    %1900 = vmatpush1.msra.mxu0 0.0
    %1901 = vmatprep.subr.mxu0 0.0
    %1902 = vmatpush1.msra.mxu0 0.0
    %1903 = vmatprep.subr.mxu0 0.0
    %1904 = vmatpush1.msra.mxu0 0.0
    %1905 = vmatprep.subr.mxu0 0.0
    %1906 = vmatpush1.msra.mxu0 0.0
    %1907 = vmatprep.subr.mxu0 0.0
    %1908 = vmatpush1.msra.mxu0 0.0
    %1909 = vmatprep.mubr.f32.mxu0 0.0
    %1910 = vmatmul.mubr.f32.gmra.mrb[0].mxu0 %v1840
    %v1911 = vpop.f32.mrb[0].mxu0
    %v1912 = vadd.f32 0.0, %v1911
    %v1913 = vpop.f32.mrb[0].mxu0
    %v1914 = vadd.f32 0.0, %v1913
    %1915 = vdwg.mxu0
    %1916 = vmatprep.subr.mxu0 %v566
    %1917 = vmatpush1.msra.mxu0 %v565
    %1918 = vmatprep.subr.mxu0 %v570
    %1919 = vmatpush1.msra.mxu0 %v569
    %1920 = vmatprep.subr.mxu0 %v574
    %1921 = vmatpush1.msra.mxu0 %v573
    %1922 = vmatprep.subr.mxu0 %v578
    %1923 = vmatpush1.msra.mxu0 %v577
    %1924 = vmatprep.subr.mxu0 %v582
    %1925 = vmatpush1.msra.mxu0 %v581
    %1926 = vmatprep.subr.mxu0 %v586
    %1927 = vmatpush1.msra.mxu0 %v585
    %1928 = vmatprep.subr.mxu0 %v590
    %1929 = vmatpush1.msra.mxu0 %v589
    %1930 = vmatprep.subr.mxu0 %v594
    %1931 = vmatpush1.msra.mxu0 %v593
    %1932 = vmatprep.subr.mxu0 %v598
    %1933 = vmatpush1.msra.mxu0 %v597
    %1934 = vmatprep.subr.mxu0 %v602
    %1935 = vmatpush1.msra.mxu0 %v601
    %1936 = vmatprep.subr.mxu0 %v606
    %1937 = vmatpush1.msra.mxu0 %v605
    %1938 = vmatprep.subr.mxu0 %v610
    %1939 = vmatpush1.msra.mxu0 %v609
    %1940 = vmatprep.subr.mxu0 %v614
    %1941 = vmatpush1.msra.mxu0 %v613
    %1942 = vmatprep.subr.mxu0 %v618
    %1943 = vmatpush1.msra.mxu0 %v617
    %1944 = vmatprep.subr.mxu0 %v622
    %1945 = vmatpush1.msra.mxu0 %v621
    %1946 = vmatprep.subr.mxu0 %v626
    %1947 = vmatpush1.msra.mxu0 %v625
    %1948 = vmatprep.subr.mxu0 0.0
    %1949 = vmatpush1.msra.mxu0 0.0
    %1950 = vmatprep.subr.mxu0 0.0
    %1951 = vmatpush1.msra.mxu0 0.0
    %1952 = vmatprep.subr.mxu0 0.0
    %1953 = vmatpush1.msra.mxu0 0.0
    %1954 = vmatprep.subr.mxu0 0.0
    %1955 = vmatpush1.msra.mxu0 0.0
    %1956 = vmatprep.subr.mxu0 0.0
    %1957 = vmatpush1.msra.mxu0 0.0
    %1958 = vmatprep.subr.mxu0 0.0
    %1959 = vmatpush1.msra.mxu0 0.0
    %1960 = vmatprep.subr.mxu0 0.0
    %1961 = vmatpush1.msra.mxu0 0.0
    %1962 = vmatprep.subr.mxu0 0.0
    %1963 = vmatpush1.msra.mxu0 0.0
    %1964 = vmatprep.subr.mxu0 0.0
    %1965 = vmatpush1.msra.mxu0 0.0
    %1966 = vmatprep.subr.mxu0 0.0
    %1967 = vmatpush1.msra.mxu0 0.0
    %1968 = vmatprep.subr.mxu0 0.0
    %1969 = vmatpush1.msra.mxu0 0.0
    %1970 = vmatprep.subr.mxu0 0.0
    %1971 = vmatpush1.msra.mxu0 0.0
    %1972 = vmatprep.subr.mxu0 0.0
    %1973 = vmatpush1.msra.mxu0 0.0
    %1974 = vmatprep.subr.mxu0 0.0
    %1975 = vmatpush1.msra.mxu0 0.0
    %1976 = vmatprep.subr.mxu0 0.0
    %1977 = vmatpush1.msra.mxu0 0.0
    %1978 = vmatprep.subr.mxu0 0.0
    %1979 = vmatpush1.msra.mxu0 0.0
    %1980 = vmatprep.mubr.f32.mxu0 0.0
    %1981 = vmatmul.mubr.f32.gmra.mrb[0].mxu0 %v1840
    %v1982 = vpop.f32.mrb[0].mxu0
    %v1983 = vadd.f32 0.0, %v1982
    %v1984 = vpop.f32.mrb[0].mxu0
    %v1985 = vadd.f32 0.0, %v1984
    %1986 = vdwg.mxu0
    %v1987 = vadd.f32 %v1841, %v1912
    %v1988 = vadd.f32 %v1842, %v1914
    %v1989 = vadd.f32 %v1843, %v1983
    %v1990 = vadd.f32 %v1844, %v1985
    %v1991 = vxor.u32 %v1987, 2147483648
    %v1992 = vmul.f32 %v1991, 1.442695
    %v1993 = vpow.pop %v1992
    %v1994 = vadd.f32 %v1993, 1.0
    %v1995 = vrcp.pop %v1994
    %v1996 = vmul.f32 1.0, %v1995
    %v1997 = vxor.u32 %v1988, 2147483648
    %v1998 = vmul.f32 %v1997, 1.442695
    %v1999 = vpow.pop %v1998
    %v2000 = vadd.f32 %v1999, 1.0
    %v2001 = vrcp.pop %v2000
    %v2002 = vmul.f32 1.0, %v2001
    %v2003 = vtanh.pop %v1989
    %v2004 = vxor.u32 %v1990, 2147483648
    %v2005 = vmul.f32 %v2004, 1.442695
    %v2006 = vpow.pop %v2005
    %v2007 = vadd.f32 %v2006, 1.0
    %v2008 = vrcp.pop %v2007
    %v2009 = vmul.f32 1.0, %v2008
    %v2010 = vmul.f32 %v2002, %v1838
    %v2011 = vmul.f32 %v1996, %v2003
    %v2012 = vadd.f32 %v2010, %v2011
    %v2013 = vtanh.pop %v2012
    %v2014 = vmul.f32 %v2009, %v2013
    %v2015 = vld [vmem:[%s6] sm:$0xff]
    %v2016 = vld [vmem:[%s6 + $0x8] sm:$0xff]
    %v2017 = vld [vmem:[%s6 + $0x10] sm:$0xff]
    %v2018 = vld [vmem:[%s6 + $0x18] sm:$0xff]
    %v2019 = vld [vmem:[%s6 + $0x20] sm:$0xff]
    %v2020 = vld [vmem:[%s6 + $0x28] sm:$0xff]
    %v2021 = vld [vmem:[%s6 + $0x30] sm:$0xff]
    %v2022 = vld [vmem:[%s6 + $0x38] sm:$0xff]
    %v2023 = vld [vmem:[%s6 + $0x40] sm:$0xff]
    %v2024 = vld [vmem:[%s6 + $0x48] sm:$0xff]
    %v2025 = vld [vmem:[%s6 + $0x50] sm:$0xff]
    %v2026 = vld [vmem:[%s6 + $0x58] sm:$0xff]
    %v2027 = vld [vmem:[%s6 + $0x60] sm:$0xff]
    %v2028 = vld [vmem:[%s6 + $0x68] sm:$0xff]
    %v2029 = vld [vmem:[%s6 + $0x70] sm:$0xff]
    %v2030 = vld [vmem:[%s6 + $0x78] sm:$0xff]
    %v2031 = vld [vmem:[%s7] sm:$0x1]
    %v2033 = vlaneseq
    %v2034 = vshrl.u32 %v2033, 7
    %v2035 = vsub.s32 0, %v2034
    %v2036 = vrot.slane %v2031, %v2035
    %2038 = vmatprep.subr.mxu0 0.0
    %2039 = vmatpush1.msra.mxu0 %v2015
    %2040 = vmatprep.subr.mxu0 0.0
    %2041 = vmatpush1.msra.mxu0 %v2016
    %2042 = vmatprep.subr.mxu0 0.0
    %2043 = vmatpush1.msra.mxu0 %v2017
    %2044 = vmatprep.subr.mxu0 0.0
    %2045 = vmatpush1.msra.mxu0 %v2018
    %2046 = vmatprep.subr.mxu0 0.0
    %2047 = vmatpush1.msra.mxu0 %v2019
    %2048 = vmatprep.subr.mxu0 0.0
    %2049 = vmatpush1.msra.mxu0 %v2020
    %2050 = vmatprep.subr.mxu0 0.0
    %2051 = vmatpush1.msra.mxu0 %v2021
    %2052 = vmatprep.subr.mxu0 0.0
    %2053 = vmatpush1.msra.mxu0 %v2022
    %2054 = vmatprep.subr.mxu0 0.0
    %2055 = vmatpush1.msra.mxu0 %v2023
    %2056 = vmatprep.subr.mxu0 0.0
    %2057 = vmatpush1.msra.mxu0 %v2024
    %2058 = vmatprep.subr.mxu0 0.0
    %2059 = vmatpush1.msra.mxu0 %v2025
    %2060 = vmatprep.subr.mxu0 0.0
    %2061 = vmatpush1.msra.mxu0 %v2026
    %2062 = vmatprep.subr.mxu0 0.0
    %2063 = vmatpush1.msra.mxu0 %v2027
    %2064 = vmatprep.subr.mxu0 0.0
    %2065 = vmatpush1.msra.mxu0 %v2028
    %2066 = vmatprep.subr.mxu0 0.0
    %2067 = vmatpush1.msra.mxu0 %v2029
    %2068 = vmatprep.subr.mxu0 0.0
    %2069 = vmatpush1.msra.mxu0 %v2030
    %2070 = vmatprep.subr.mxu0 0.0
    %2071 = vmatpush1.msra.mxu0 0.0
    %2072 = vmatprep.subr.mxu0 0.0
    %2073 = vmatpush1.msra.mxu0 0.0
    %2074 = vmatprep.subr.mxu0 0.0
    %2075 = vmatpush1.msra.mxu0 0.0
    %2076 = vmatprep.subr.mxu0 0.0
    %2077 = vmatpush1.msra.mxu0 0.0
    %2078 = vmatprep.subr.mxu0 0.0
    %2079 = vmatpush1.msra.mxu0 0.0
    %2080 = vmatprep.subr.mxu0 0.0
    %2081 = vmatpush1.msra.mxu0 0.0
    %2082 = vmatprep.subr.mxu0 0.0
    %2083 = vmatpush1.msra.mxu0 0.0
    %2084 = vmatprep.subr.mxu0 0.0
    %2085 = vmatpush1.msra.mxu0 0.0
    %2086 = vmatprep.subr.mxu0 0.0
    %2087 = vmatpush1.msra.mxu0 0.0
    %2088 = vmatprep.subr.mxu0 0.0
    %2089 = vmatpush1.msra.mxu0 0.0
    %2090 = vmatprep.subr.mxu0 0.0
    %2091 = vmatpush1.msra.mxu0 0.0
    %2092 = vmatprep.subr.mxu0 0.0
    %2093 = vmatpush1.msra.mxu0 0.0
    %2094 = vmatprep.subr.mxu0 0.0
    %2095 = vmatpush1.msra.mxu0 0.0
    %2096 = vmatprep.subr.mxu0 0.0
    %2097 = vmatpush1.msra.mxu0 0.0
    %2098 = vmatprep.subr.mxu0 0.0
    %2099 = vmatpush1.msra.mxu0 0.0
    %2100 = vmatprep.subr.mxu0 0.0
    %2101 = vmatpush1.msra.mxu0 0.0
    %2102 = vmatprep.mubr.f32.mxu0 0.0
    %2103 = vmatmul.mubr.f32.gmra.mrb[0].mxu0 %v2014
    %v2104 = vpop.f32.mrb[0].mxu0
    %v2105 = vadd.f32 %v2036, %v2104
    %v2106 = vpop.f32.mrb[0].mxu0
    %2107 = vdwg.mxu0
    %vm2108 = vcmask 64512
    %v2109 = vsel %vm2108, %v2105, -inf
    %2110 = vmax.xlane.f32.xlu0 %v2109
    %v2111 = vpop.xlane.xlu0 %2110
    %v2112 = vsub.f32 %v2105, %v2111
    %v2113 = vmul.f32 %v2112, 1.442695
    %v2114 = vpow.pop %v2113
    %v2115 = vsel %vm2108, %v2114, 0.0
    %2116 = vadd.xlane.f32.xlu0 %v2115
    %v2117 = vpop.xlane.xlu0 %2116
    %v2118 = vrcp.pop %v2117
    %v2119 = vmul.f32 %v2114, %v2118
    %vm2120 = vcmask 58368
    %2121 = vst.msk [vmem:[#allocation11] sm:$0x3] %vm2120, %v2119
    // Predicated region
    $region46: #{tpu_custom_call.1} parent=1 // pred_check
      _
    $region47: #{tpu_custom_call.1} parent=1 // pred_check_branch
      %2123 = sbr.rel (0) target = $region49
    $region48: #{tpu_custom_call.1} parent=1 // pred_region
      %s2125 = ssub.s32 32, 32
      %2126 = vsyncadd [#allocation6], %s2125
      %s2128 = sshll.u32 [#allocation11], 4
      %s2129 = int_to_ptr.vmem [resolvable:$true] %s2128
      %2131 = dma.vmem_to_hbm [thread:$0]  %s2129, 32, %s8, [#allocation6]
    $region49: #{tpu_custom_call.1} parent=1 // pred_fallthru
      _
    // Predicated region
    $region50: #{tpu_custom_call.1} parent=1 // pred_check
      _
    $region51: #{tpu_custom_call.1} parent=1 // pred_check_branch
      %2133 = sbr.rel (0) target = $region53
    $region52: #{tpu_custom_call.1} parent=1 // pred_region
      %2134 = dma.done [#allocation6], 32
    $region53: #{tpu_custom_call.1} parent=1 // pred_fallthru
      _
    %2135 = vsyncpa [#allocation5], 1
    %2136 = vsyncpa [#allocation10], 1
    %2137 = vsyncpa [#allocation6], 1
    %2138 = vsyncpa [#allocation7], 1

</llo_original>
